<compile_context>
chip_gen: v7x
topology: tpu7x:2x2x1
jax: 0.10.0
libtpu: 0.0.40
codegen_flags: <defaults>
</compile_context>

<pallas_src>
import jax
import jax.numpy as jnp
from jax import lax
from jax.experimental import pallas as pl
from jax.experimental.pallas import tpu as pltpu


# ---------------------------------------------------------------------------
# Fused kernel: one invocation == all T decoder steps
# ---------------------------------------------------------------------------
def _decoder_att_fused_kernel(
    # inputs
    x_ref, h0_ref, enc_ref,
    wemb_ref, bemb_ref,
    wattn_e_ref, wattn_h_ref, battn_ref,
    wcomb_e_ref, wcomb_a_ref, bcomb_ref,
    wih_ref, bih_ref, whh_ref, bhh_ref,
    wout_ref, bout_ref,
    # outputs
    out_ref, hfin_ref, attnw_ref,
    # scratch
    emb_scr, h_scr,
):
  f32 = jnp.float32
  bf16 = jnp.bfloat16
  T, B, O_in = x_ref.shape
  H = h0_ref.shape[1]
  O = out_ref.shape[2]

  # --- phase 1: embedding for ALL steps in one batched matmul (hoisted) -----
  x_all = x_ref[...].reshape(T * B, O_in)                       # bf16
  emb_all = (jnp.dot(x_all, wemb_ref[...], preferred_element_type=f32)
             + bemb_ref[...])                                   # (T*B, H) f32
  emb_scr[...] = emb_all.reshape(T, B, H)

  # --- phase 2: sequential GRU-with-attention recurrence --------------------
  def step(t, h):                                               # h: (B, H) f32
    emb = emb_scr[t]                                            # (B, H) f32
    emb_b = emb.astype(bf16)
    hb = h.astype(bf16)

    # attn_weights = softmax(attn(cat(embedded, hidden)))  -- split weights
    logits = (jnp.dot(emb_b, wattn_e_ref[...], preferred_element_type=f32)
              + jnp.dot(hb, wattn_h_ref[...], preferred_element_type=f32)
              + battn_ref[...])                                 # (B, L)
    m = jnp.max(logits, axis=1, keepdims=True)
    e = jnp.exp(logits - m)
    attn_w = e * pl.reciprocal(jnp.sum(e, axis=1, keepdims=True), approx=True)

    # attn_applied = bmm(attn_weights, encoder_outputs) -> (B, H)
    attn_applied = jnp.dot(attn_w.astype(bf16), enc_ref[...],
                           preferred_element_type=f32)

    # output = tanh(attn_combine(cat(embedded, attn_applied)))  -- split weights
    comb = (jnp.dot(emb_b, wcomb_e_ref[...], preferred_element_type=f32)
            + jnp.dot(attn_applied.astype(bf16), wcomb_a_ref[...],
                      preferred_element_type=f32)
            + bcomb_ref[...])                                   # (B, H)
    x_gru = jnp.tanh(comb)

    # Single-step GRU; fused 3H-wide gate matmuls, PyTorch [r|z|n] gate order.
    gi = (jnp.dot(x_gru.astype(bf16), wih_ref[...], preferred_element_type=f32)
          + bih_ref[...])                                       # (B, 3H)
    gh = (jnp.dot(hb, whh_ref[...], preferred_element_type=f32)
          + bhh_ref[...])                                       # (B, 3H)
    r = jax.nn.sigmoid(gi[:, :H] + gh[:, :H])
    z = jax.nn.sigmoid(gi[:, H:2 * H] + gh[:, H:2 * H])
    n = jnp.tanh(gi[:, 2 * H:] + r * gh[:, 2 * H:])
    h_new = (1.0 - z) * n + z * h                               # (B, H) f32

    attnw_ref[t] = attn_w
    h_scr[t] = h_new
    return h_new

  h_fin = lax.fori_loop(0, T, step, h0_ref[...], unroll=True)
  hfin_ref[...] = h_fin

  # --- phase 3: output projection for ALL steps in one matmul (hoisted) -----
  h_all = h_scr[...].reshape(T * B, H).astype(bf16)
  out_all = jnp.tanh(jnp.dot(h_all, wout_ref[...], preferred_element_type=f32)
                     + bout_ref[...])                           # (T*B, O) f32
  out_ref[...] = out_all.reshape(T, B, O)


# ---------------------------------------------------------------------------
# Wrapper: weight re-packing (transpose / split / bf16) + single pallas_call
# ---------------------------------------------------------------------------
@jax.jit
def decoder_rnn_att_decode(params, x_seq, hidden, encoder_outputs):
  """Runs T teacher-forced decoder steps (step t uses x_seq[t]) in one kernel.

  Returns (outputs (T,B,O), final_hidden (1,B,H), attn_weights (T,B,L)).
  Each step is exactly DecoderRNNAtt.forward(x_seq[t], h_t, encoder_outputs).
  """
  f32, bf16 = jnp.float32, jnp.bfloat16
  H = params["emb_w"].shape[0]
  O = params["out_w"].shape[0]
  T, B, _ = x_seq.shape
  L = encoder_outputs.shape[0]

  h0 = hidden[0].astype(f32)                               # (B, H)
  enc = encoder_outputs.astype(bf16)                       # (L, H)
  x_bf = x_seq.astype(bf16)                                # (T, B, O)

  # --- layout plumbing (zero-cost, outside the kernel) ----------------------
  wemb = params["emb_w"].T.astype(bf16)                    # (O, H)
  bemb = params["emb_b"][None, :].astype(f32)              # (1, H)
  wattn_t = params["attn_w"].T.astype(bf16)                # (2H, L) [emb | h]
  wattn_e, wattn_h = wattn_t[:H], wattn_t[H:]              # (H, L) each
  battn = params["attn_b"][None, :].astype(f32)            # (1, L)
  wcomb_t = params["comb_w"].T.astype(bf16)                # (2H, H) [emb | attn]
  wcomb_e, wcomb_a = wcomb_t[:H], wcomb_t[H:]              # (H, H) each
  bcomb = params["comb_b"][None, :].astype(f32)            # (1, H)
  wih = params["gru_w_ih"].T.astype(bf16)                  # (H, 3H)  [r|z|n]
  whh = params["gru_w_hh"].T.astype(bf16)                  # (H, 3H)
  bih = params["gru_b_ih"][None, :].astype(f32)            # (1, 3H)
  bhh = params["gru_b_hh"][None, :].astype(f32)            # (1, 3H)
  wout = params["out_w"].T.astype(bf16)                    # (H, O)
  bout = params["out_b"][None, :].astype(f32)              # (1, O)

  args = (x_bf, h0, enc,
          wemb, bemb,
          wattn_e, wattn_h, battn,
          wcomb_e, wcomb_a, bcomb,
          wih, bih, whh, bhh,
          wout, bout)

  def _resident(arr):          # whole array, DMA'd once, resident for the call
    return pl.BlockSpec(arr.shape, lambda i, n=arr.ndim: (0,) * n)

  out_shapes = (
      jax.ShapeDtypeStruct((T, B, O), f32),                # out_seq
      jax.ShapeDtypeStruct((B, H), f32),                   # final hidden
      jax.ShapeDtypeStruct((T, B, L), f32),                # attn weights
  )
  out_specs = (
      pl.BlockSpec((T, B, O), lambda i: (0, 0, 0)),
      pl.BlockSpec((B, H), lambda i: (0, 0)),
      pl.BlockSpec((T, B, L), lambda i: (0, 0, 0)),
  )

  grid_spec = pltpu.PrefetchScalarGridSpec(
      num_scalar_prefetch=0,
      grid=(1,),                                           # single invocation
      in_specs=[_resident(a) for a in args],
      out_specs=out_specs,
      scratch_shapes=[
          pltpu.VMEM((T, B, H), f32),                      # hoisted embeddings
          pltpu.VMEM((T, B, H), f32),                      # per-step hidden
      ],
  )

  out_seq, h_fin, attn_seq = pl.pallas_call(
      _decoder_att_fused_kernel,
      grid_spec=grid_spec,
      out_shape=out_shapes,
      compiler_params=pltpu.CompilerParams(
          dimension_semantics=("arbitrary",)),
  )(*args)

  return out_seq, h_fin[None], attn_seq


def decoder_rnn_att_forward(params, x, hidden, encoder_outputs):
  """Single-step API matching DecoderRNNAtt.forward (T=1 case of the fused kernel)."""
  out_seq, h_new, attn_seq = decoder_rnn_att_decode(
      params, x[None], hidden, encoder_outputs)
  return out_seq[0], h_new, attn_seq[0]


# ---------------------------------------------------------------------------
# Pure-JAX reference (direct transcription of the PyTorch forward, eval mode)
# ---------------------------------------------------------------------------
def reference_forward(params, x, hidden, encoder_outputs):
  H = params["emb_w"].shape[0]
  h0 = hidden[0]
  emb = x @ params["emb_w"].T + params["emb_b"]
  logits = jnp.concatenate([emb, h0], axis=1) @ params["attn_w"].T + params["attn_b"]
  attn_w = jax.nn.softmax(logits, axis=1)
  attn_applied = attn_w @ encoder_outputs
  comb = jnp.concatenate([emb, attn_applied], axis=1) @ params["comb_w"].T + params["comb_b"]
  x_gru = jnp.tanh(comb)
  gi = x_gru @ params["gru_w_ih"].T + params["gru_b_ih"]
  gh = h0 @ params["gru_w_hh"].T + params["gru_b_hh"]
  r = jax.nn.sigmoid(gi[:, :H] + gh[:, :H])
  z = jax.nn.sigmoid(gi[:, H:2 * H] + gh[:, H:2 * H])
  n = jnp.tanh(gi[:, 2 * H:] + r * gh[:, 2 * H:])
  h_new = (1.0 - z) * n + z * h0
  out = jnp.tanh(h_new @ params["out_w"].T + params["out_b"])
  return out, h_new[None], attn_w


def reference_decode(params, x_seq, hidden, encoder_outputs):
  outs, attns = [], []
  h = hidden
  for t in range(x_seq.shape[0]):
    o, h, a = reference_forward(params, x_seq[t], h, encoder_outputs)
    outs.append(o)
    attns.append(a)
  return jnp.stack(outs), h, jnp.stack(attns)


# ---------------------------------------------------------------------------
# Deterministic parameter init (shapes match the PyTorch __init__)
# ---------------------------------------------------------------------------
def init_params(key, output_size, hidden_size, max_length):
  H, O, L = hidden_size, output_size, max_length
  ks = jax.random.split(key, 12)
  u = lambda k, shape: (jax.random.uniform(k, shape, jnp.float32) - 0.5) * 0.2
  return {
      "emb_w": u(ks[0], (H, O)),        "emb_b": u(ks[1], (H,)),
      "attn_w": u(ks[2], (L, 2 * H)),   "attn_b": u(ks[3], (L,)),
      "comb_w": u(ks[4], (H, 2 * H)),   "comb_b": u(ks[5], (H,)),
      "gru_w_ih": u(ks[6], (3 * H, H)), "gru_w_hh": u(ks[7], (3 * H, H)),
      "gru_b_ih": u(ks[8], (3 * H,)),   "gru_b_hh": u(ks[9], (3 * H,)),
      "out_w": u(ks[10], (O, H)),       "out_b": u(ks[11], (O,)),
  }


if __name__ == "__main__":
  T, B, O, H, L = 4, 2, 16, 32, 128   # steps, batch, output_size, hidden, max_length

  key = jax.random.PRNGKey(0)
  kp, kx, kh, ke = jax.random.split(key, 4)
  params = init_params(kp, O, H, L)

  x_seq = jax.random.normal(kx, (T, B, O), jnp.float32)        # decoder inputs per step
  hidden = jax.random.normal(kh, (1, B, H), jnp.float32)       # initial GRU hidden
  encoder_outputs = jax.random.normal(ke, (L, H), jnp.float32)

  # Fused multi-step decode (main kernel invocation).
  out_seq, h_fin, attn_seq = decoder_rnn_att_decode(params, x_seq, hidden, encoder_outputs)
  jax.block_until_ready((out_seq, h_fin, attn_seq))

  # Single-step path (exact DecoderRNNAtt.forward interface).
  out1, h1, attn1 = decoder_rnn_att_forward(params, x_seq[0], hidden, encoder_outputs)
  jax.block_until_ready((out1, h1, attn1))

  # References (pure f32 JAX).
  ref_seq, ref_h, ref_attn = reference_decode(params, x_seq, hidden, encoder_outputs)
  r1_out, r1_h, r1_attn = reference_forward(params, x_seq[0], hidden, encoder_outputs)

  assert out_seq.shape == (T, B, O)
  assert h_fin.shape == (1, B, H)
  assert attn_seq.shape == (T, B, L)

  # bf16 MXU operands + approx reciprocal -> relaxed tolerance vs f32 reference.
  tol = dict(atol=2e-2, rtol=2e-2)
  assert jnp.allclose(out_seq, ref_seq, **tol)
  assert jnp.allclose(h_fin, ref_h, **tol)
  assert jnp.allclose(attn_seq, ref_attn, **tol)
  assert jnp.allclose(out1, r1_out, **tol)
  assert jnp.allclose(h1, r1_h, **tol)
  assert jnp.allclose(attn1, r1_attn, **tol)

  print("KERNEL_OK")
</pallas_src>

<mosaic_0001>
module attributes {stable_mosaic.version = 11 : i64} {
  func.func @_decoder_att_fused_kernel(%arg0: i32, %arg1: memref<4x2x16xbf16, #tpu.memory_space<vmem>>, %arg2: memref<2x32xf32, #tpu.memory_space<vmem>>, %arg3: memref<128x32xbf16, #tpu.memory_space<vmem>>, %arg4: memref<16x32xbf16, #tpu.memory_space<vmem>>, %arg5: memref<1x32xf32, #tpu.memory_space<vmem>>, %arg6: memref<32x128xbf16, #tpu.memory_space<vmem>>, %arg7: memref<32x128xbf16, #tpu.memory_space<vmem>>, %arg8: memref<1x128xf32, #tpu.memory_space<vmem>>, %arg9: memref<32x32xbf16, #tpu.memory_space<vmem>>, %arg10: memref<32x32xbf16, #tpu.memory_space<vmem>>, %arg11: memref<1x32xf32, #tpu.memory_space<vmem>>, %arg12: memref<32x96xbf16, #tpu.memory_space<vmem>>, %arg13: memref<1x96xf32, #tpu.memory_space<vmem>>, %arg14: memref<32x96xbf16, #tpu.memory_space<vmem>>, %arg15: memref<1x96xf32, #tpu.memory_space<vmem>>, %arg16: memref<32x16xbf16, #tpu.memory_space<vmem>>, %arg17: memref<1x16xf32, #tpu.memory_space<vmem>>, %arg18: memref<4x2x16xf32, #tpu.memory_space<vmem>>, %arg19: memref<2x32xf32, #tpu.memory_space<vmem>>, %arg20: memref<4x2x128xf32, #tpu.memory_space<vmem>>, %arg21: memref<4x2x32xf32, #tpu.memory_space<vmem>>, %arg22: memref<4x2x32xf32, #tpu.memory_space<vmem>>) attributes {dimension_semantics = [#tpu.dimension_semantics<arbitrary>], iteration_bounds = array<i64: 1>, scalar_prefetch = 0 : i64, scratch_operands = 2 : i64, tpu.core_type = #tpu.core_type<tc>, window_params = [{pipeline_mode = #tpu.pipeline_mode<synchronous>, transform_indices = @transform_0, window_bounds = array<i64: 4, 2, 16>}, {pipeline_mode = #tpu.pipeline_mode<synchronous>, transform_indices = @transform_1, window_bounds = array<i64: 2, 32>}, {pipeline_mode = #tpu.pipeline_mode<synchronous>, transform_indices = @transform_2, window_bounds = array<i64: 128, 32>}, {pipeline_mode = #tpu.pipeline_mode<synchronous>, transform_indices = @transform_3, window_bounds = array<i64: 16, 32>}, {pipeline_mode = #tpu.pipeline_mode<synchronous>, transform_indices = @transform_4, window_bounds = array<i64: 1, 32>}, {pipeline_mode = #tpu.pipeline_mode<synchronous>, transform_indices = @transform_5, window_bounds = array<i64: 32, 128>}, {pipeline_mode = #tpu.pipeline_mode<synchronous>, transform_indices = @transform_6, window_bounds = array<i64: 32, 128>}, {pipeline_mode = #tpu.pipeline_mode<synchronous>, transform_indices = @transform_7, window_bounds = array<i64: 1, 128>}, {pipeline_mode = #tpu.pipeline_mode<synchronous>, transform_indices = @transform_8, window_bounds = array<i64: 32, 32>}, {pipeline_mode = #tpu.pipeline_mode<synchronous>, transform_indices = @transform_9, window_bounds = array<i64: 32, 32>}, {pipeline_mode = #tpu.pipeline_mode<synchronous>, transform_indices = @transform_10, window_bounds = array<i64: 1, 32>}, {pipeline_mode = #tpu.pipeline_mode<synchronous>, transform_indices = @transform_11, window_bounds = array<i64: 32, 96>}, {pipeline_mode = #tpu.pipeline_mode<synchronous>, transform_indices = @transform_12, window_bounds = array<i64: 1, 96>}, {pipeline_mode = #tpu.pipeline_mode<synchronous>, transform_indices = @transform_13, window_bounds = array<i64: 32, 96>}, {pipeline_mode = #tpu.pipeline_mode<synchronous>, transform_indices = @transform_14, window_bounds = array<i64: 1, 96>}, {pipeline_mode = #tpu.pipeline_mode<synchronous>, transform_indices = @transform_15, window_bounds = array<i64: 32, 16>}, {pipeline_mode = #tpu.pipeline_mode<synchronous>, transform_indices = @transform_16, window_bounds = array<i64: 1, 16>}, {pipeline_mode = #tpu.pipeline_mode<synchronous>, transform_indices = @transform_17, window_bounds = array<i64: 4, 2, 16>}, {pipeline_mode = #tpu.pipeline_mode<synchronous>, transform_indices = @transform_18, window_bounds = array<i64: 2, 32>}, {pipeline_mode = #tpu.pipeline_mode<synchronous>, transform_indices = @transform_19, window_bounds = array<i64: 4, 2, 128>}]} {
    %c0 = arith.constant 0 : index
    %c0_0 = arith.constant 0 : index
    %c0_1 = arith.constant 0 : index
    %0 = vector.load %arg1[%c0, %c0_0, %c0_1] : memref<4x2x16xbf16, #tpu.memory_space<vmem>>, vector<4x2x16xbf16>
    %1 = vector.shape_cast %0 : vector<4x2x16xbf16> to vector<8x16xbf16>
    %c0_2 = arith.constant 0 : index
    %c0_3 = arith.constant 0 : index
    %2 = vector.load %arg4[%c0_2, %c0_3] : memref<16x32xbf16, #tpu.memory_space<vmem>>, vector<16x32xbf16>
    %cst = arith.constant dense<0.000000e+00> : vector<8x32xf32>
    %3 = tpu.matmul %1, %2, %cst {dimension_numbers = #tpu.dot_dimension_numbers<[1], [0], [0], [1], [0, 0, 1, 1], [], []>} : vector<8x16xbf16>, vector<16x32xbf16>, vector<8x32xf32> -> vector<8x32xf32>
    %c0_4 = arith.constant 0 : index
    %c0_5 = arith.constant 0 : index
    %4 = vector.load %arg5[%c0_4, %c0_5] : memref<1x32xf32, #tpu.memory_space<vmem>>, vector<1x32xf32>
    %5 = vector.broadcast %4 : vector<1x32xf32> to vector<8x32xf32>
    %6 = arith.addf %3, %5 : vector<8x32xf32>
    %7 = vector.shape_cast %6 : vector<8x32xf32> to vector<4x2x32xf32>
    %c0_6 = arith.constant 0 : index
    %c0_7 = arith.constant 0 : index
    %c0_8 = arith.constant 0 : index
    %8 = vector.load %arg21[%c0_6, %c0_7, %c0_8] : memref<4x2x32xf32, #tpu.memory_space<vmem>>, vector<4x2x32xf32>
    tpu.vector_store %arg21[%c0_6, %c0_7, %c0_8], %7 {strides = array<i32>} : memref<4x2x32xf32, #tpu.memory_space<vmem>>, vector<4x2x32xf32>,
    %c0_9 = arith.constant 0 : index
    %c0_10 = arith.constant 0 : index
    %9 = vector.load %arg2[%c0_9, %c0_10] : memref<2x32xf32, #tpu.memory_space<vmem>>, vector<2x32xf32>
    %c0_i32 = arith.constant 0 : i32
    %10 = arith.index_cast %c0_i32 : i32 to index
    %c0_11 = arith.constant 0 : index
    %c0_12 = arith.constant 0 : index
    %11 = vector.load %arg21[%10, %c0_11, %c0_12] : memref<4x2x32xf32, #tpu.memory_space<vmem>>, vector<1x2x32xf32>
    %12 = vector.shape_cast %11 : vector<1x2x32xf32> to vector<2x32xf32>
    %13 = arith.truncf %12 : vector<2x32xf32> to vector<2x32xbf16>
    %14 = arith.truncf %9 : vector<2x32xf32> to vector<2x32xbf16>
    %c0_13 = arith.constant 0 : index
    %c0_14 = arith.constant 0 : index
    %15 = vector.load %arg6[%c0_13, %c0_14] : memref<32x128xbf16, #tpu.memory_space<vmem>>, vector<32x128xbf16>
    %cst_15 = arith.constant dense<0.000000e+00> : vector<2x128xf32>
    %16 = tpu.matmul %13, %15, %cst_15 {dimension_numbers = #tpu.dot_dimension_numbers<[1], [0], [0], [1], [0, 0, 1, 1], [], []>} : vector<2x32xbf16>, vector<32x128xbf16>, vector<2x128xf32> -> vector<2x128xf32>
    %c0_16 = arith.constant 0 : index
    %c0_17 = arith.constant 0 : index
    %17 = vector.load %arg7[%c0_16, %c0_17] : memref<32x128xbf16, #tpu.memory_space<vmem>>, vector<32x128xbf16>
    %cst_18 = arith.constant dense<0.000000e+00> : vector<2x128xf32>
    %18 = tpu.matmul %14, %17, %cst_18 {dimension_numbers = #tpu.dot_dimension_numbers<[1], [0], [0], [1], [0, 0, 1, 1], [], []>} : vector<2x32xbf16>, vector<32x128xbf16>, vector<2x128xf32> -> vector<2x128xf32>
    %19 = arith.addf %16, %18 : vector<2x128xf32>
    %c0_19 = arith.constant 0 : index
    %c0_20 = arith.constant 0 : index
    %20 = vector.load %arg8[%c0_19, %c0_20] : memref<1x128xf32, #tpu.memory_space<vmem>>, vector<1x128xf32>
    %21 = vector.broadcast %20 : vector<1x128xf32> to vector<2x128xf32>
    %22 = arith.addf %19, %21 : vector<2x128xf32>
    %cst_21 = arith.constant dense<0xFF800000> : vector<2xf32>
    %23 = vector.multi_reduction <maximumf>, %22, %cst_21 [1] : vector<2x128xf32> to vector<2xf32>
    %24 = vector.shape_cast %23 : vector<2xf32> to vector<2x1xf32>
    %25 = vector.broadcast %24 : vector<2x1xf32> to vector<2x128xf32>
    %26 = arith.subf %22, %25 : vector<2x128xf32>
    %27 = math.exp %26 : vector<2x128xf32>
    %cst_22 = arith.constant dense<0.000000e+00> : vector<2xf32>
    %28 = vector.multi_reduction <add>, %27, %cst_22 [1] : vector<2x128xf32> to vector<2xf32>
    %29 = vector.shape_cast %28 : vector<2xf32> to vector<2x1xf32>
    %30 = tpu.reciprocal %29 {approx = true} : vector<2x1xf32> -> vector<2x1xf32>
    %31 = vector.broadcast %30 : vector<2x1xf32> to vector<2x128xf32>
    %32 = arith.mulf %27, %31 : vector<2x128xf32>
    %33 = arith.truncf %32 : vector<2x128xf32> to vector<2x128xbf16>
    %c0_23 = arith.constant 0 : index
    %c0_24 = arith.constant 0 : index
    %34 = vector.load %arg3[%c0_23, %c0_24] : memref<128x32xbf16, #tpu.memory_space<vmem>>, vector<128x32xbf16>
    %cst_25 = arith.constant dense<0.000000e+00> : vector<2x32xf32>
    %35 = tpu.matmul %33, %34, %cst_25 {dimension_numbers = #tpu.dot_dimension_numbers<[1], [0], [0], [1], [0, 0, 1, 1], [], []>} : vector<2x128xbf16>, vector<128x32xbf16>, vector<2x32xf32> -> vector<2x32xf32>
    %c0_26 = arith.constant 0 : index
    %c0_27 = arith.constant 0 : index
    %36 = vector.load %arg9[%c0_26, %c0_27] : memref<32x32xbf16, #tpu.memory_space<vmem>>, vector<32x32xbf16>
    %cst_28 = arith.constant dense<0.000000e+00> : vector<2x32xf32>
    %37 = tpu.matmul %13, %36, %cst_28 {dimension_numbers = #tpu.dot_dimension_numbers<[1], [0], [0], [1], [0, 0, 1, 1], [], []>} : vector<2x32xbf16>, vector<32x32xbf16>, vector<2x32xf32> -> vector<2x32xf32>
    %38 = arith.truncf %35 : vector<2x32xf32> to vector<2x32xbf16>
    %c0_29 = arith.constant 0 : index
    %c0_30 = arith.constant 0 : index
    %39 = vector.load %arg10[%c0_29, %c0_30] : memref<32x32xbf16, #tpu.memory_space<vmem>>, vector<32x32xbf16>
    %cst_31 = arith.constant dense<0.000000e+00> : vector<2x32xf32>
    %40 = tpu.matmul %38, %39, %cst_31 {dimension_numbers = #tpu.dot_dimension_numbers<[1], [0], [0], [1], [0, 0, 1, 1], [], []>} : vector<2x32xbf16>, vector<32x32xbf16>, vector<2x32xf32> -> vector<2x32xf32>
    %41 = arith.addf %37, %40 : vector<2x32xf32>
    %c0_32 = arith.constant 0 : index
    %c0_33 = arith.constant 0 : index
    %42 = vector.load %arg11[%c0_32, %c0_33] : memref<1x32xf32, #tpu.memory_space<vmem>>, vector<1x32xf32>
    %43 = vector.broadcast %42 : vector<1x32xf32> to vector<2x32xf32>
    %44 = arith.addf %41, %43 : vector<2x32xf32>
    %45 = math.tanh %44 : vector<2x32xf32>
    %46 = arith.truncf %45 : vector<2x32xf32> to vector<2x32xbf16>
    %c0_34 = arith.constant 0 : index
    %c0_35 = arith.constant 0 : index
    %47 = vector.load %arg12[%c0_34, %c0_35] : memref<32x96xbf16, #tpu.memory_space<vmem>>, vector<32x96xbf16>
    %cst_36 = arith.constant dense<0.000000e+00> : vector<2x96xf32>
    %48 = tpu.matmul %46, %47, %cst_36 {dimension_numbers = #tpu.dot_dimension_numbers<[1], [0], [0], [1], [0, 0, 1, 1], [], []>} : vector<2x32xbf16>, vector<32x96xbf16>, vector<2x96xf32> -> vector<2x96xf32>
    %c0_37 = arith.constant 0 : index
    %c0_38 = arith.constant 0 : index
    %49 = vector.load %arg13[%c0_37, %c0_38] : memref<1x96xf32, #tpu.memory_space<vmem>>, vector<1x96xf32>
    %50 = vector.broadcast %49 : vector<1x96xf32> to vector<2x96xf32>
    %51 = arith.addf %48, %50 : vector<2x96xf32>
    %c0_39 = arith.constant 0 : index
    %c0_40 = arith.constant 0 : index
    %52 = vector.load %arg14[%c0_39, %c0_40] : memref<32x96xbf16, #tpu.memory_space<vmem>>, vector<32x96xbf16>
    %cst_41 = arith.constant dense<0.000000e+00> : vector<2x96xf32>
    %53 = tpu.matmul %14, %52, %cst_41 {dimension_numbers = #tpu.dot_dimension_numbers<[1], [0], [0], [1], [0, 0, 1, 1], [], []>} : vector<2x32xbf16>, vector<32x96xbf16>, vector<2x96xf32> -> vector<2x96xf32>
    %c0_42 = arith.constant 0 : index
    %c0_43 = arith.constant 0 : index
    %54 = vector.load %arg15[%c0_42, %c0_43] : memref<1x96xf32, #tpu.memory_space<vmem>>, vector<1x96xf32>
    %55 = vector.broadcast %54 : vector<1x96xf32> to vector<2x96xf32>
    %56 = arith.addf %53, %55 : vector<2x96xf32>
    %57 = vector.extract_strided_slice %51 {offsets = [0, 0], sizes = [2, 32], strides = [1, 1]} : vector<2x96xf32> to vector<2x32xf32>
    %58 = vector.extract_strided_slice %56 {offsets = [0, 0], sizes = [2, 32], strides = [1, 1]} : vector<2x96xf32> to vector<2x32xf32>
    %59 = arith.addf %57, %58 : vector<2x32xf32>
    %60 = arith.negf %59 : vector<2x32xf32>
    %61 = math.exp %60 : vector<2x32xf32>
    %cst_44 = arith.constant 1.000000e+00 : f32
    %62 = vector.broadcast %cst_44 : f32 to vector<2x32xf32>
    %63 = arith.addf %62, %61 : vector<2x32xf32>
    %64 = arith.divf %62, %63 : vector<2x32xf32>
    %65 = vector.extract_strided_slice %51 {offsets = [0, 32], sizes = [2, 32], strides = [1, 1]} : vector<2x96xf32> to vector<2x32xf32>
    %66 = vector.extract_strided_slice %56 {offsets = [0, 32], sizes = [2, 32], strides = [1, 1]} : vector<2x96xf32> to vector<2x32xf32>
    %67 = arith.addf %65, %66 : vector<2x32xf32>
    %68 = arith.negf %67 : vector<2x32xf32>
    %69 = math.exp %68 : vector<2x32xf32>
    %cst_45 = arith.constant 1.000000e+00 : f32
    %70 = vector.broadcast %cst_45 : f32 to vector<2x32xf32>
    %71 = arith.addf %70, %69 : vector<2x32xf32>
    %72 = arith.divf %70, %71 : vector<2x32xf32>
    %73 = vector.extract_strided_slice %51 {offsets = [0, 64], sizes = [2, 32], strides = [1, 1]} : vector<2x96xf32> to vector<2x32xf32>
    %74 = vector.extract_strided_slice %56 {offsets = [0, 64], sizes = [2, 32], strides = [1, 1]} : vector<2x96xf32> to vector<2x32xf32>
    %75 = arith.mulf %64, %74 : vector<2x32xf32>
    %76 = arith.addf %73, %75 : vector<2x32xf32>
    %77 = math.tanh %76 : vector<2x32xf32>
    %cst_46 = arith.constant 1.000000e+00 : f32
    %78 = vector.broadcast %cst_46 : f32 to vector<2x32xf32>
    %79 = arith.subf %78, %72 : vector<2x32xf32>
    %80 = arith.mulf %79, %77 : vector<2x32xf32>
    %81 = arith.mulf %72, %9 : vector<2x32xf32>
    %82 = arith.addf %80, %81 : vector<2x32xf32>
    %83 = arith.index_cast %c0_i32 : i32 to index
    %c0_47 = arith.constant 0 : index
    %c0_48 = arith.constant 0 : index
    %84 = vector.load %arg20[%83, %c0_47, %c0_48] : memref<4x2x128xf32, #tpu.memory_space<vmem>>, vector<1x2x128xf32>
    %85 = vector.shape_cast %84 : vector<1x2x128xf32> to vector<2x128xf32>
    %86 = vector.shape_cast %32 : vector<2x128xf32> to vector<1x2x128xf32>
    tpu.vector_store %arg20[%83, %c0_47, %c0_48], %86 {strides = array<i32>} : memref<4x2x128xf32, #tpu.memory_space<vmem>>, vector<1x2x128xf32>,
    %87 = arith.index_cast %c0_i32 : i32 to index
    %c0_49 = arith.constant 0 : index
    %c0_50 = arith.constant 0 : index
    %88 = vector.load %arg22[%87, %c0_49, %c0_50] : memref<4x2x32xf32, #tpu.memory_space<vmem>>, vector<1x2x32xf32>
    %89 = vector.shape_cast %88 : vector<1x2x32xf32> to vector<2x32xf32>
    %90 = vector.shape_cast %82 : vector<2x32xf32> to vector<1x2x32xf32>
    tpu.vector_store %arg22[%87, %c0_49, %c0_50], %90 {strides = array<i32>} : memref<4x2x32xf32, #tpu.memory_space<vmem>>, vector<1x2x32xf32>,
    %c1_i32 = arith.constant 1 : i32
    %91 = arith.index_cast %c1_i32 : i32 to index
    %c0_51 = arith.constant 0 : index
    %c0_52 = arith.constant 0 : index
    %92 = vector.load %arg21[%91, %c0_51, %c0_52] : memref<4x2x32xf32, #tpu.memory_space<vmem>>, vector<1x2x32xf32>
    %93 = vector.shape_cast %92 : vector<1x2x32xf32> to vector<2x32xf32>
    %94 = arith.truncf %93 : vector<2x32xf32> to vector<2x32xbf16>
    %95 = arith.truncf %82 : vector<2x32xf32> to vector<2x32xbf16>
    %c0_53 = arith.constant 0 : index
    %c0_54 = arith.constant 0 : index
    %96 = vector.load %arg6[%c0_53, %c0_54] : memref<32x128xbf16, #tpu.memory_space<vmem>>, vector<32x128xbf16>
    %cst_55 = arith.constant dense<0.000000e+00> : vector<2x128xf32>
    %97 = tpu.matmul %94, %96, %cst_55 {dimension_numbers = #tpu.dot_dimension_numbers<[1], [0], [0], [1], [0, 0, 1, 1], [], []>} : vector<2x32xbf16>, vector<32x128xbf16>, vector<2x128xf32> -> vector<2x128xf32>
    %c0_56 = arith.constant 0 : index
    %c0_57 = arith.constant 0 : index
    %98 = vector.load %arg7[%c0_56, %c0_57] : memref<32x128xbf16, #tpu.memory_space<vmem>>, vector<32x128xbf16>
    %cst_58 = arith.constant dense<0.000000e+00> : vector<2x128xf32>
    %99 = tpu.matmul %95, %98, %cst_58 {dimension_numbers = #tpu.dot_dimension_numbers<[1], [0], [0], [1], [0, 0, 1, 1], [], []>} : vector<2x32xbf16>, vector<32x128xbf16>, vector<2x128xf32> -> vector<2x128xf32>
    %100 = arith.addf %97, %99 : vector<2x128xf32>
    %c0_59 = arith.constant 0 : index
    %c0_60 = arith.constant 0 : index
    %101 = vector.load %arg8[%c0_59, %c0_60] : memref<1x128xf32, #tpu.memory_space<vmem>>, vector<1x128xf32>
    %102 = vector.broadcast %101 : vector<1x128xf32> to vector<2x128xf32>
    %103 = arith.addf %100, %102 : vector<2x128xf32>
    %cst_61 = arith.constant dense<0xFF800000> : vector<2xf32>
    %104 = vector.multi_reduction <maximumf>, %103, %cst_61 [1] : vector<2x128xf32> to vector<2xf32>
    %105 = vector.shape_cast %104 : vector<2xf32> to vector<2x1xf32>
    %106 = vector.broadcast %105 : vector<2x1xf32> to vector<2x128xf32>
    %107 = arith.subf %103, %106 : vector<2x128xf32>
    %108 = math.exp %107 : vector<2x128xf32>
    %cst_62 = arith.constant dense<0.000000e+00> : vector<2xf32>
    %109 = vector.multi_reduction <add>, %108, %cst_62 [1] : vector<2x128xf32> to vector<2xf32>
    %110 = vector.shape_cast %109 : vector<2xf32> to vector<2x1xf32>
    %111 = tpu.reciprocal %110 {approx = true} : vector<2x1xf32> -> vector<2x1xf32>
    %112 = vector.broadcast %111 : vector<2x1xf32> to vector<2x128xf32>
    %113 = arith.mulf %108, %112 : vector<2x128xf32>
    %114 = arith.truncf %113 : vector<2x128xf32> to vector<2x128xbf16>
    %c0_63 = arith.constant 0 : index
    %c0_64 = arith.constant 0 : index
    %115 = vector.load %arg3[%c0_63, %c0_64] : memref<128x32xbf16, #tpu.memory_space<vmem>>, vector<128x32xbf16>
    %cst_65 = arith.constant dense<0.000000e+00> : vector<2x32xf32>
    %116 = tpu.matmul %114, %115, %cst_65 {dimension_numbers = #tpu.dot_dimension_numbers<[1], [0], [0], [1], [0, 0, 1, 1], [], []>} : vector<2x128xbf16>, vector<128x32xbf16>, vector<2x32xf32> -> vector<2x32xf32>
    %c0_66 = arith.constant 0 : index
    %c0_67 = arith.constant 0 : index
    %117 = vector.load %arg9[%c0_66, %c0_67] : memref<32x32xbf16, #tpu.memory_space<vmem>>, vector<32x32xbf16>
    %cst_68 = arith.constant dense<0.000000e+00> : vector<2x32xf32>
    %118 = tpu.matmul %94, %117, %cst_68 {dimension_numbers = #tpu.dot_dimension_numbers<[1], [0], [0], [1], [0, 0, 1, 1], [], []>} : vector<2x32xbf16>, vector<32x32xbf16>, vector<2x32xf32> -> vector<2x32xf32>
    %119 = arith.truncf %116 : vector<2x32xf32> to vector<2x32xbf16>
    %c0_69 = arith.constant 0 : index
    %c0_70 = arith.constant 0 : index
    %120 = vector.load %arg10[%c0_69, %c0_70] : memref<32x32xbf16, #tpu.memory_space<vmem>>, vector<32x32xbf16>
    %cst_71 = arith.constant dense<0.000000e+00> : vector<2x32xf32>
    %121 = tpu.matmul %119, %120, %cst_71 {dimension_numbers = #tpu.dot_dimension_numbers<[1], [0], [0], [1], [0, 0, 1, 1], [], []>} : vector<2x32xbf16>, vector<32x32xbf16>, vector<2x32xf32> -> vector<2x32xf32>
    %122 = arith.addf %118, %121 : vector<2x32xf32>
    %c0_72 = arith.constant 0 : index
    %c0_73 = arith.constant 0 : index
    %123 = vector.load %arg11[%c0_72, %c0_73] : memref<1x32xf32, #tpu.memory_space<vmem>>, vector<1x32xf32>
    %124 = vector.broadcast %123 : vector<1x32xf32> to vector<2x32xf32>
    %125 = arith.addf %122, %124 : vector<2x32xf32>
    %126 = math.tanh %125 : vector<2x32xf32>
    %127 = arith.truncf %126 : vector<2x32xf32> to vector<2x32xbf16>
    %c0_74 = arith.constant 0 : index
    %c0_75 = arith.constant 0 : index
    %128 = vector.load %arg12[%c0_74, %c0_75] : memref<32x96xbf16, #tpu.memory_space<vmem>>, vector<32x96xbf16>
    %cst_76 = arith.constant dense<0.000000e+00> : vector<2x96xf32>
    %129 = tpu.matmul %127, %128, %cst_76 {dimension_numbers = #tpu.dot_dimension_numbers<[1], [0], [0], [1], [0, 0, 1, 1], [], []>} : vector<2x32xbf16>, vector<32x96xbf16>, vector<2x96xf32> -> vector<2x96xf32>
    %c0_77 = arith.constant 0 : index
    %c0_78 = arith.constant 0 : index
    %130 = vector.load %arg13[%c0_77, %c0_78] : memref<1x96xf32, #tpu.memory_space<vmem>>, vector<1x96xf32>
    %131 = vector.broadcast %130 : vector<1x96xf32> to vector<2x96xf32>
    %132 = arith.addf %129, %131 : vector<2x96xf32>
    %c0_79 = arith.constant 0 : index
    %c0_80 = arith.constant 0 : index
    %133 = vector.load %arg14[%c0_79, %c0_80] : memref<32x96xbf16, #tpu.memory_space<vmem>>, vector<32x96xbf16>
    %cst_81 = arith.constant dense<0.000000e+00> : vector<2x96xf32>
    %134 = tpu.matmul %95, %133, %cst_81 {dimension_numbers = #tpu.dot_dimension_numbers<[1], [0], [0], [1], [0, 0, 1, 1], [], []>} : vector<2x32xbf16>, vector<32x96xbf16>, vector<2x96xf32> -> vector<2x96xf32>
    %c0_82 = arith.constant 0 : index
    %c0_83 = arith.constant 0 : index
    %135 = vector.load %arg15[%c0_82, %c0_83] : memref<1x96xf32, #tpu.memory_space<vmem>>, vector<1x96xf32>
    %136 = vector.broadcast %135 : vector<1x96xf32> to vector<2x96xf32>
    %137 = arith.addf %134, %136 : vector<2x96xf32>
    %138 = vector.extract_strided_slice %132 {offsets = [0, 0], sizes = [2, 32], strides = [1, 1]} : vector<2x96xf32> to vector<2x32xf32>
    %139 = vector.extract_strided_slice %137 {offsets = [0, 0], sizes = [2, 32], strides = [1, 1]} : vector<2x96xf32> to vector<2x32xf32>
    %140 = arith.addf %138, %139 : vector<2x32xf32>
    %141 = arith.negf %140 : vector<2x32xf32>
    %142 = math.exp %141 : vector<2x32xf32>
    %cst_84 = arith.constant 1.000000e+00 : f32
    %143 = vector.broadcast %cst_84 : f32 to vector<2x32xf32>
    %144 = arith.addf %143, %142 : vector<2x32xf32>
    %145 = arith.divf %143, %144 : vector<2x32xf32>
    %146 = vector.extract_strided_slice %132 {offsets = [0, 32], sizes = [2, 32], strides = [1, 1]} : vector<2x96xf32> to vector<2x32xf32>
    %147 = vector.extract_strided_slice %137 {offsets = [0, 32], sizes = [2, 32], strides = [1, 1]} : vector<2x96xf32> to vector<2x32xf32>
    %148 = arith.addf %146, %147 : vector<2x32xf32>
    %149 = arith.negf %148 : vector<2x32xf32>
    %150 = math.exp %149 : vector<2x32xf32>
    %cst_85 = arith.constant 1.000000e+00 : f32
    %151 = vector.broadcast %cst_85 : f32 to vector<2x32xf32>
    %152 = arith.addf %151, %150 : vector<2x32xf32>
    %153 = arith.divf %151, %152 : vector<2x32xf32>
    %154 = vector.extract_strided_slice %132 {offsets = [0, 64], sizes = [2, 32], strides = [1, 1]} : vector<2x96xf32> to vector<2x32xf32>
    %155 = vector.extract_strided_slice %137 {offsets = [0, 64], sizes = [2, 32], strides = [1, 1]} : vector<2x96xf32> to vector<2x32xf32>
    %156 = arith.mulf %145, %155 : vector<2x32xf32>
    %157 = arith.addf %154, %156 : vector<2x32xf32>
    %158 = math.tanh %157 : vector<2x32xf32>
    %cst_86 = arith.constant 1.000000e+00 : f32
    %159 = vector.broadcast %cst_86 : f32 to vector<2x32xf32>
    %160 = arith.subf %159, %153 : vector<2x32xf32>
    %161 = arith.mulf %160, %158 : vector<2x32xf32>
    %162 = arith.mulf %153, %82 : vector<2x32xf32>
    %163 = arith.addf %161, %162 : vector<2x32xf32>
    %164 = arith.index_cast %c1_i32 : i32 to index
    %c0_87 = arith.constant 0 : index
    %c0_88 = arith.constant 0 : index
    %165 = vector.load %arg20[%164, %c0_87, %c0_88] : memref<4x2x128xf32, #tpu.memory_space<vmem>>, vector<1x2x128xf32>
    %166 = vector.shape_cast %165 : vector<1x2x128xf32> to vector<2x128xf32>
    %167 = vector.shape_cast %113 : vector<2x128xf32> to vector<1x2x128xf32>
    tpu.vector_store %arg20[%164, %c0_87, %c0_88], %167 {strides = array<i32>} : memref<4x2x128xf32, #tpu.memory_space<vmem>>, vector<1x2x128xf32>,
    %168 = arith.index_cast %c1_i32 : i32 to index
    %c0_89 = arith.constant 0 : index
    %c0_90 = arith.constant 0 : index
    %169 = vector.load %arg22[%168, %c0_89, %c0_90] : memref<4x2x32xf32, #tpu.memory_space<vmem>>, vector<1x2x32xf32>
    %170 = vector.shape_cast %169 : vector<1x2x32xf32> to vector<2x32xf32>
    %171 = vector.shape_cast %163 : vector<2x32xf32> to vector<1x2x32xf32>
    tpu.vector_store %arg22[%168, %c0_89, %c0_90], %171 {strides = array<i32>} : memref<4x2x32xf32, #tpu.memory_space<vmem>>, vector<1x2x32xf32>,
    %c2_i32 = arith.constant 2 : i32
    %172 = arith.index_cast %c2_i32 : i32 to index
    %c0_91 = arith.constant 0 : index
    %c0_92 = arith.constant 0 : index
    %173 = vector.load %arg21[%172, %c0_91, %c0_92] : memref<4x2x32xf32, #tpu.memory_space<vmem>>, vector<1x2x32xf32>
    %174 = vector.shape_cast %173 : vector<1x2x32xf32> to vector<2x32xf32>
    %175 = arith.truncf %174 : vector<2x32xf32> to vector<2x32xbf16>
    %176 = arith.truncf %163 : vector<2x32xf32> to vector<2x32xbf16>
    %c0_93 = arith.constant 0 : index
    %c0_94 = arith.constant 0 : index
    %177 = vector.load %arg6[%c0_93, %c0_94] : memref<32x128xbf16, #tpu.memory_space<vmem>>, vector<32x128xbf16>
    %cst_95 = arith.constant dense<0.000000e+00> : vector<2x128xf32>
    %178 = tpu.matmul %175, %177, %cst_95 {dimension_numbers = #tpu.dot_dimension_numbers<[1], [0], [0], [1], [0, 0, 1, 1], [], []>} : vector<2x32xbf16>, vector<32x128xbf16>, vector<2x128xf32> -> vector<2x128xf32>
    %c0_96 = arith.constant 0 : index
    %c0_97 = arith.constant 0 : index
    %179 = vector.load %arg7[%c0_96, %c0_97] : memref<32x128xbf16, #tpu.memory_space<vmem>>, vector<32x128xbf16>
    %cst_98 = arith.constant dense<0.000000e+00> : vector<2x128xf32>
    %180 = tpu.matmul %176, %179, %cst_98 {dimension_numbers = #tpu.dot_dimension_numbers<[1], [0], [0], [1], [0, 0, 1, 1], [], []>} : vector<2x32xbf16>, vector<32x128xbf16>, vector<2x128xf32> -> vector<2x128xf32>
    %181 = arith.addf %178, %180 : vector<2x128xf32>
    %c0_99 = arith.constant 0 : index
    %c0_100 = arith.constant 0 : index
    %182 = vector.load %arg8[%c0_99, %c0_100] : memref<1x128xf32, #tpu.memory_space<vmem>>, vector<1x128xf32>
    %183 = vector.broadcast %182 : vector<1x128xf32> to vector<2x128xf32>
    %184 = arith.addf %181, %183 : vector<2x128xf32>
    %cst_101 = arith.constant dense<0xFF800000> : vector<2xf32>
    %185 = vector.multi_reduction <maximumf>, %184, %cst_101 [1] : vector<2x128xf32> to vector<2xf32>
    %186 = vector.shape_cast %185 : vector<2xf32> to vector<2x1xf32>
    %187 = vector.broadcast %186 : vector<2x1xf32> to vector<2x128xf32>
    %188 = arith.subf %184, %187 : vector<2x128xf32>
    %189 = math.exp %188 : vector<2x128xf32>
    %cst_102 = arith.constant dense<0.000000e+00> : vector<2xf32>
    %190 = vector.multi_reduction <add>, %189, %cst_102 [1] : vector<2x128xf32> to vector<2xf32>
    %191 = vector.shape_cast %190 : vector<2xf32> to vector<2x1xf32>
    %192 = tpu.reciprocal %191 {approx = true} : vector<2x1xf32> -> vector<2x1xf32>
    %193 = vector.broadcast %192 : vector<2x1xf32> to vector<2x128xf32>
    %194 = arith.mulf %189, %193 : vector<2x128xf32>
    %195 = arith.truncf %194 : vector<2x128xf32> to vector<2x128xbf16>
    %c0_103 = arith.constant 0 : index
    %c0_104 = arith.constant 0 : index
    %196 = vector.load %arg3[%c0_103, %c0_104] : memref<128x32xbf16, #tpu.memory_space<vmem>>, vector<128x32xbf16>
    %cst_105 = arith.constant dense<0.000000e+00> : vector<2x32xf32>
    %197 = tpu.matmul %195, %196, %cst_105 {dimension_numbers = #tpu.dot_dimension_numbers<[1], [0], [0], [1], [0, 0, 1, 1], [], []>} : vector<2x128xbf16>, vector<128x32xbf16>, vector<2x32xf32> -> vector<2x32xf32>
    %c0_106 = arith.constant 0 : index
    %c0_107 = arith.constant 0 : index
    %198 = vector.load %arg9[%c0_106, %c0_107] : memref<32x32xbf16, #tpu.memory_space<vmem>>, vector<32x32xbf16>
    %cst_108 = arith.constant dense<0.000000e+00> : vector<2x32xf32>
    %199 = tpu.matmul %175, %198, %cst_108 {dimension_numbers = #tpu.dot_dimension_numbers<[1], [0], [0], [1], [0, 0, 1, 1], [], []>} : vector<2x32xbf16>, vector<32x32xbf16>, vector<2x32xf32> -> vector<2x32xf32>
    %200 = arith.truncf %197 : vector<2x32xf32> to vector<2x32xbf16>
    %c0_109 = arith.constant 0 : index
    %c0_110 = arith.constant 0 : index
    %201 = vector.load %arg10[%c0_109, %c0_110] : memref<32x32xbf16, #tpu.memory_space<vmem>>, vector<32x32xbf16>
    %cst_111 = arith.constant dense<0.000000e+00> : vector<2x32xf32>
    %202 = tpu.matmul %200, %201, %cst_111 {dimension_numbers = #tpu.dot_dimension_numbers<[1], [0], [0], [1], [0, 0, 1, 1], [], []>} : vector<2x32xbf16>, vector<32x32xbf16>, vector<2x32xf32> -> vector<2x32xf32>
    %203 = arith.addf %199, %202 : vector<2x32xf32>
    %c0_112 = arith.constant 0 : index
    %c0_113 = arith.constant 0 : index
    %204 = vector.load %arg11[%c0_112, %c0_113] : memref<1x32xf32, #tpu.memory_space<vmem>>, vector<1x32xf32>
    %205 = vector.broadcast %204 : vector<1x32xf32> to vector<2x32xf32>
    %206 = arith.addf %203, %205 : vector<2x32xf32>
    %207 = math.tanh %206 : vector<2x32xf32>
    %208 = arith.truncf %207 : vector<2x32xf32> to vector<2x32xbf16>
    %c0_114 = arith.constant 0 : index
    %c0_115 = arith.constant 0 : index
    %209 = vector.load %arg12[%c0_114, %c0_115] : memref<32x96xbf16, #tpu.memory_space<vmem>>, vector<32x96xbf16>
    %cst_116 = arith.constant dense<0.000000e+00> : vector<2x96xf32>
    %210 = tpu.matmul %208, %209, %cst_116 {dimension_numbers = #tpu.dot_dimension_numbers<[1], [0], [0], [1], [0, 0, 1, 1], [], []>} : vector<2x32xbf16>, vector<32x96xbf16>, vector<2x96xf32> -> vector<2x96xf32>
    %c0_117 = arith.constant 0 : index
    %c0_118 = arith.constant 0 : index
    %211 = vector.load %arg13[%c0_117, %c0_118] : memref<1x96xf32, #tpu.memory_space<vmem>>, vector<1x96xf32>
    %212 = vector.broadcast %211 : vector<1x96xf32> to vector<2x96xf32>
    %213 = arith.addf %210, %212 : vector<2x96xf32>
    %c0_119 = arith.constant 0 : index
    %c0_120 = arith.constant 0 : index
    %214 = vector.load %arg14[%c0_119, %c0_120] : memref<32x96xbf16, #tpu.memory_space<vmem>>, vector<32x96xbf16>
    %cst_121 = arith.constant dense<0.000000e+00> : vector<2x96xf32>
    %215 = tpu.matmul %176, %214, %cst_121 {dimension_numbers = #tpu.dot_dimension_numbers<[1], [0], [0], [1], [0, 0, 1, 1], [], []>} : vector<2x32xbf16>, vector<32x96xbf16>, vector<2x96xf32> -> vector<2x96xf32>
    %c0_122 = arith.constant 0 : index
    %c0_123 = arith.constant 0 : index
    %216 = vector.load %arg15[%c0_122, %c0_123] : memref<1x96xf32, #tpu.memory_space<vmem>>, vector<1x96xf32>
    %217 = vector.broadcast %216 : vector<1x96xf32> to vector<2x96xf32>
    %218 = arith.addf %215, %217 : vector<2x96xf32>
    %219 = vector.extract_strided_slice %213 {offsets = [0, 0], sizes = [2, 32], strides = [1, 1]} : vector<2x96xf32> to vector<2x32xf32>
    %220 = vector.extract_strided_slice %218 {offsets = [0, 0], sizes = [2, 32], strides = [1, 1]} : vector<2x96xf32> to vector<2x32xf32>
    %221 = arith.addf %219, %220 : vector<2x32xf32>
    %222 = arith.negf %221 : vector<2x32xf32>
    %223 = math.exp %222 : vector<2x32xf32>
    %cst_124 = arith.constant 1.000000e+00 : f32
    %224 = vector.broadcast %cst_124 : f32 to vector<2x32xf32>
    %225 = arith.addf %224, %223 : vector<2x32xf32>
    %226 = arith.divf %224, %225 : vector<2x32xf32>
    %227 = vector.extract_strided_slice %213 {offsets = [0, 32], sizes = [2, 32], strides = [1, 1]} : vector<2x96xf32> to vector<2x32xf32>
    %228 = vector.extract_strided_slice %218 {offsets = [0, 32], sizes = [2, 32], strides = [1, 1]} : vector<2x96xf32> to vector<2x32xf32>
    %229 = arith.addf %227, %228 : vector<2x32xf32>
    %230 = arith.negf %229 : vector<2x32xf32>
    %231 = math.exp %230 : vector<2x32xf32>
    %cst_125 = arith.constant 1.000000e+00 : f32
    %232 = vector.broadcast %cst_125 : f32 to vector<2x32xf32>
    %233 = arith.addf %232, %231 : vector<2x32xf32>
    %234 = arith.divf %232, %233 : vector<2x32xf32>
    %235 = vector.extract_strided_slice %213 {offsets = [0, 64], sizes = [2, 32], strides = [1, 1]} : vector<2x96xf32> to vector<2x32xf32>
    %236 = vector.extract_strided_slice %218 {offsets = [0, 64], sizes = [2, 32], strides = [1, 1]} : vector<2x96xf32> to vector<2x32xf32>
    %237 = arith.mulf %226, %236 : vector<2x32xf32>
    %238 = arith.addf %235, %237 : vector<2x32xf32>
    %239 = math.tanh %238 : vector<2x32xf32>
    %cst_126 = arith.constant 1.000000e+00 : f32
    %240 = vector.broadcast %cst_126 : f32 to vector<2x32xf32>
    %241 = arith.subf %240, %234 : vector<2x32xf32>
    %242 = arith.mulf %241, %239 : vector<2x32xf32>
    %243 = arith.mulf %234, %163 : vector<2x32xf32>
    %244 = arith.addf %242, %243 : vector<2x32xf32>
    %245 = arith.index_cast %c2_i32 : i32 to index
    %c0_127 = arith.constant 0 : index
    %c0_128 = arith.constant 0 : index
    %246 = vector.load %arg20[%245, %c0_127, %c0_128] : memref<4x2x128xf32, #tpu.memory_space<vmem>>, vector<1x2x128xf32>
    %247 = vector.shape_cast %246 : vector<1x2x128xf32> to vector<2x128xf32>
    %248 = vector.shape_cast %194 : vector<2x128xf32> to vector<1x2x128xf32>
    tpu.vector_store %arg20[%245, %c0_127, %c0_128], %248 {strides = array<i32>} : memref<4x2x128xf32, #tpu.memory_space<vmem>>, vector<1x2x128xf32>,
    %249 = arith.index_cast %c2_i32 : i32 to index
    %c0_129 = arith.constant 0 : index
    %c0_130 = arith.constant 0 : index
    %250 = vector.load %arg22[%249, %c0_129, %c0_130] : memref<4x2x32xf32, #tpu.memory_space<vmem>>, vector<1x2x32xf32>
    %251 = vector.shape_cast %250 : vector<1x2x32xf32> to vector<2x32xf32>
    %252 = vector.shape_cast %244 : vector<2x32xf32> to vector<1x2x32xf32>
    tpu.vector_store %arg22[%249, %c0_129, %c0_130], %252 {strides = array<i32>} : memref<4x2x32xf32, #tpu.memory_space<vmem>>, vector<1x2x32xf32>,
    %c3_i32 = arith.constant 3 : i32
    %253 = arith.index_cast %c3_i32 : i32 to index
    %c0_131 = arith.constant 0 : index
    %c0_132 = arith.constant 0 : index
    %254 = vector.load %arg21[%253, %c0_131, %c0_132] : memref<4x2x32xf32, #tpu.memory_space<vmem>>, vector<1x2x32xf32>
    %255 = vector.shape_cast %254 : vector<1x2x32xf32> to vector<2x32xf32>
    %256 = arith.truncf %255 : vector<2x32xf32> to vector<2x32xbf16>
    %257 = arith.truncf %244 : vector<2x32xf32> to vector<2x32xbf16>
    %c0_133 = arith.constant 0 : index
    %c0_134 = arith.constant 0 : index
    %258 = vector.load %arg6[%c0_133, %c0_134] : memref<32x128xbf16, #tpu.memory_space<vmem>>, vector<32x128xbf16>
    %cst_135 = arith.constant dense<0.000000e+00> : vector<2x128xf32>
    %259 = tpu.matmul %256, %258, %cst_135 {dimension_numbers = #tpu.dot_dimension_numbers<[1], [0], [0], [1], [0, 0, 1, 1], [], []>} : vector<2x32xbf16>, vector<32x128xbf16>, vector<2x128xf32> -> vector<2x128xf32>
    %c0_136 = arith.constant 0 : index
    %c0_137 = arith.constant 0 : index
    %260 = vector.load %arg7[%c0_136, %c0_137] : memref<32x128xbf16, #tpu.memory_space<vmem>>, vector<32x128xbf16>
    %cst_138 = arith.constant dense<0.000000e+00> : vector<2x128xf32>
    %261 = tpu.matmul %257, %260, %cst_138 {dimension_numbers = #tpu.dot_dimension_numbers<[1], [0], [0], [1], [0, 0, 1, 1], [], []>} : vector<2x32xbf16>, vector<32x128xbf16>, vector<2x128xf32> -> vector<2x128xf32>
    %262 = arith.addf %259, %261 : vector<2x128xf32>
    %c0_139 = arith.constant 0 : index
    %c0_140 = arith.constant 0 : index
    %263 = vector.load %arg8[%c0_139, %c0_140] : memref<1x128xf32, #tpu.memory_space<vmem>>, vector<1x128xf32>
    %264 = vector.broadcast %263 : vector<1x128xf32> to vector<2x128xf32>
    %265 = arith.addf %262, %264 : vector<2x128xf32>
    %cst_141 = arith.constant dense<0xFF800000> : vector<2xf32>
    %266 = vector.multi_reduction <maximumf>, %265, %cst_141 [1] : vector<2x128xf32> to vector<2xf32>
    %267 = vector.shape_cast %266 : vector<2xf32> to vector<2x1xf32>
    %268 = vector.broadcast %267 : vector<2x1xf32> to vector<2x128xf32>
    %269 = arith.subf %265, %268 : vector<2x128xf32>
    %270 = math.exp %269 : vector<2x128xf32>
    %cst_142 = arith.constant dense<0.000000e+00> : vector<2xf32>
    %271 = vector.multi_reduction <add>, %270, %cst_142 [1] : vector<2x128xf32> to vector<2xf32>
    %272 = vector.shape_cast %271 : vector<2xf32> to vector<2x1xf32>
    %273 = tpu.reciprocal %272 {approx = true} : vector<2x1xf32> -> vector<2x1xf32>
    %274 = vector.broadcast %273 : vector<2x1xf32> to vector<2x128xf32>
    %275 = arith.mulf %270, %274 : vector<2x128xf32>
    %276 = arith.truncf %275 : vector<2x128xf32> to vector<2x128xbf16>
    %c0_143 = arith.constant 0 : index
    %c0_144 = arith.constant 0 : index
    %277 = vector.load %arg3[%c0_143, %c0_144] : memref<128x32xbf16, #tpu.memory_space<vmem>>, vector<128x32xbf16>
    %cst_145 = arith.constant dense<0.000000e+00> : vector<2x32xf32>
    %278 = tpu.matmul %276, %277, %cst_145 {dimension_numbers = #tpu.dot_dimension_numbers<[1], [0], [0], [1], [0, 0, 1, 1], [], []>} : vector<2x128xbf16>, vector<128x32xbf16>, vector<2x32xf32> -> vector<2x32xf32>
    %c0_146 = arith.constant 0 : index
    %c0_147 = arith.constant 0 : index
    %279 = vector.load %arg9[%c0_146, %c0_147] : memref<32x32xbf16, #tpu.memory_space<vmem>>, vector<32x32xbf16>
    %cst_148 = arith.constant dense<0.000000e+00> : vector<2x32xf32>
    %280 = tpu.matmul %256, %279, %cst_148 {dimension_numbers = #tpu.dot_dimension_numbers<[1], [0], [0], [1], [0, 0, 1, 1], [], []>} : vector<2x32xbf16>, vector<32x32xbf16>, vector<2x32xf32> -> vector<2x32xf32>
    %281 = arith.truncf %278 : vector<2x32xf32> to vector<2x32xbf16>
    %c0_149 = arith.constant 0 : index
    %c0_150 = arith.constant 0 : index
    %282 = vector.load %arg10[%c0_149, %c0_150] : memref<32x32xbf16, #tpu.memory_space<vmem>>, vector<32x32xbf16>
    %cst_151 = arith.constant dense<0.000000e+00> : vector<2x32xf32>
    %283 = tpu.matmul %281, %282, %cst_151 {dimension_numbers = #tpu.dot_dimension_numbers<[1], [0], [0], [1], [0, 0, 1, 1], [], []>} : vector<2x32xbf16>, vector<32x32xbf16>, vector<2x32xf32> -> vector<2x32xf32>
    %284 = arith.addf %280, %283 : vector<2x32xf32>
    %c0_152 = arith.constant 0 : index
    %c0_153 = arith.constant 0 : index
    %285 = vector.load %arg11[%c0_152, %c0_153] : memref<1x32xf32, #tpu.memory_space<vmem>>, vector<1x32xf32>
    %286 = vector.broadcast %285 : vector<1x32xf32> to vector<2x32xf32>
    %287 = arith.addf %284, %286 : vector<2x32xf32>
    %288 = math.tanh %287 : vector<2x32xf32>
    %289 = arith.truncf %288 : vector<2x32xf32> to vector<2x32xbf16>
    %c0_154 = arith.constant 0 : index
    %c0_155 = arith.constant 0 : index
    %290 = vector.load %arg12[%c0_154, %c0_155] : memref<32x96xbf16, #tpu.memory_space<vmem>>, vector<32x96xbf16>
    %cst_156 = arith.constant dense<0.000000e+00> : vector<2x96xf32>
    %291 = tpu.matmul %289, %290, %cst_156 {dimension_numbers = #tpu.dot_dimension_numbers<[1], [0], [0], [1], [0, 0, 1, 1], [], []>} : vector<2x32xbf16>, vector<32x96xbf16>, vector<2x96xf32> -> vector<2x96xf32>
    %c0_157 = arith.constant 0 : index
    %c0_158 = arith.constant 0 : index
    %292 = vector.load %arg13[%c0_157, %c0_158] : memref<1x96xf32, #tpu.memory_space<vmem>>, vector<1x96xf32>
    %293 = vector.broadcast %292 : vector<1x96xf32> to vector<2x96xf32>
    %294 = arith.addf %291, %293 : vector<2x96xf32>
    %c0_159 = arith.constant 0 : index
    %c0_160 = arith.constant 0 : index
    %295 = vector.load %arg14[%c0_159, %c0_160] : memref<32x96xbf16, #tpu.memory_space<vmem>>, vector<32x96xbf16>
    %cst_161 = arith.constant dense<0.000000e+00> : vector<2x96xf32>
    %296 = tpu.matmul %257, %295, %cst_161 {dimension_numbers = #tpu.dot_dimension_numbers<[1], [0], [0], [1], [0, 0, 1, 1], [], []>} : vector<2x32xbf16>, vector<32x96xbf16>, vector<2x96xf32> -> vector<2x96xf32>
    %c0_162 = arith.constant 0 : index
    %c0_163 = arith.constant 0 : index
    %297 = vector.load %arg15[%c0_162, %c0_163] : memref<1x96xf32, #tpu.memory_space<vmem>>, vector<1x96xf32>
    %298 = vector.broadcast %297 : vector<1x96xf32> to vector<2x96xf32>
    %299 = arith.addf %296, %298 : vector<2x96xf32>
    %300 = vector.extract_strided_slice %294 {offsets = [0, 0], sizes = [2, 32], strides = [1, 1]} : vector<2x96xf32> to vector<2x32xf32>
    %301 = vector.extract_strided_slice %299 {offsets = [0, 0], sizes = [2, 32], strides = [1, 1]} : vector<2x96xf32> to vector<2x32xf32>
    %302 = arith.addf %300, %301 : vector<2x32xf32>
    %303 = arith.negf %302 : vector<2x32xf32>
    %304 = math.exp %303 : vector<2x32xf32>
    %cst_164 = arith.constant 1.000000e+00 : f32
    %305 = vector.broadcast %cst_164 : f32 to vector<2x32xf32>
    %306 = arith.addf %305, %304 : vector<2x32xf32>
    %307 = arith.divf %305, %306 : vector<2x32xf32>
    %308 = vector.extract_strided_slice %294 {offsets = [0, 32], sizes = [2, 32], strides = [1, 1]} : vector<2x96xf32> to vector<2x32xf32>
    %309 = vector.extract_strided_slice %299 {offsets = [0, 32], sizes = [2, 32], strides = [1, 1]} : vector<2x96xf32> to vector<2x32xf32>
    %310 = arith.addf %308, %309 : vector<2x32xf32>
    %311 = arith.negf %310 : vector<2x32xf32>
    %312 = math.exp %311 : vector<2x32xf32>
    %cst_165 = arith.constant 1.000000e+00 : f32
    %313 = vector.broadcast %cst_165 : f32 to vector<2x32xf32>
    %314 = arith.addf %313, %312 : vector<2x32xf32>
    %315 = arith.divf %313, %314 : vector<2x32xf32>
    %316 = vector.extract_strided_slice %294 {offsets = [0, 64], sizes = [2, 32], strides = [1, 1]} : vector<2x96xf32> to vector<2x32xf32>
    %317 = vector.extract_strided_slice %299 {offsets = [0, 64], sizes = [2, 32], strides = [1, 1]} : vector<2x96xf32> to vector<2x32xf32>
    %318 = arith.mulf %307, %317 : vector<2x32xf32>
    %319 = arith.addf %316, %318 : vector<2x32xf32>
    %320 = math.tanh %319 : vector<2x32xf32>
    %cst_166 = arith.constant 1.000000e+00 : f32
    %321 = vector.broadcast %cst_166 : f32 to vector<2x32xf32>
    %322 = arith.subf %321, %315 : vector<2x32xf32>
    %323 = arith.mulf %322, %320 : vector<2x32xf32>
    %324 = arith.mulf %315, %244 : vector<2x32xf32>
    %325 = arith.addf %323, %324 : vector<2x32xf32>
    %326 = arith.index_cast %c3_i32 : i32 to index
    %c0_167 = arith.constant 0 : index
    %c0_168 = arith.constant 0 : index
    %327 = vector.load %arg20[%326, %c0_167, %c0_168] : memref<4x2x128xf32, #tpu.memory_space<vmem>>, vector<1x2x128xf32>
    %328 = vector.shape_cast %327 : vector<1x2x128xf32> to vector<2x128xf32>
    %329 = vector.shape_cast %275 : vector<2x128xf32> to vector<1x2x128xf32>
    tpu.vector_store %arg20[%326, %c0_167, %c0_168], %329 {strides = array<i32>} : memref<4x2x128xf32, #tpu.memory_space<vmem>>, vector<1x2x128xf32>,
    %330 = arith.index_cast %c3_i32 : i32 to index
    %c0_169 = arith.constant 0 : index
    %c0_170 = arith.constant 0 : index
    %331 = vector.load %arg22[%330, %c0_169, %c0_170] : memref<4x2x32xf32, #tpu.memory_space<vmem>>, vector<1x2x32xf32>
    %332 = vector.shape_cast %331 : vector<1x2x32xf32> to vector<2x32xf32>
    %333 = vector.shape_cast %325 : vector<2x32xf32> to vector<1x2x32xf32>
    tpu.vector_store %arg22[%330, %c0_169, %c0_170], %333 {strides = array<i32>} : memref<4x2x32xf32, #tpu.memory_space<vmem>>, vector<1x2x32xf32>,
    %c4_i32 = arith.constant 4 : i32
    %c0_171 = arith.constant 0 : index
    %c0_172 = arith.constant 0 : index
    %334 = vector.load %arg19[%c0_171, %c0_172] : memref<2x32xf32, #tpu.memory_space<vmem>>, vector<2x32xf32>
    tpu.vector_store %arg19[%c0_171, %c0_172], %325 {strides = array<i32>} : memref<2x32xf32, #tpu.memory_space<vmem>>, vector<2x32xf32>,
    %c0_173 = arith.constant 0 : index
    %c0_174 = arith.constant 0 : index
    %c0_175 = arith.constant 0 : index
    %335 = vector.load %arg22[%c0_173, %c0_174, %c0_175] : memref<4x2x32xf32, #tpu.memory_space<vmem>>, vector<4x2x32xf32>
    %336 = vector.shape_cast %335 : vector<4x2x32xf32> to vector<8x32xf32>
    %337 = arith.truncf %336 : vector<8x32xf32> to vector<8x32xbf16>
    %c0_176 = arith.constant 0 : index
    %c0_177 = arith.constant 0 : index
    %338 = vector.load %arg16[%c0_176, %c0_177] : memref<32x16xbf16, #tpu.memory_space<vmem>>, vector<32x16xbf16>
    %cst_178 = arith.constant dense<0.000000e+00> : vector<8x16xf32>
    %339 = tpu.matmul %337, %338, %cst_178 {dimension_numbers = #tpu.dot_dimension_numbers<[1], [0], [0], [1], [0, 0, 1, 1], [], []>} : vector<8x32xbf16>, vector<32x16xbf16>, vector<8x16xf32> -> vector<8x16xf32>
    %c0_179 = arith.constant 0 : index
    %c0_180 = arith.constant 0 : index
    %340 = vector.load %arg17[%c0_179, %c0_180] : memref<1x16xf32, #tpu.memory_space<vmem>>, vector<1x16xf32>
    %341 = vector.broadcast %340 : vector<1x16xf32> to vector<8x16xf32>
    %342 = arith.addf %339, %341 : vector<8x16xf32>
    %343 = math.tanh %342 : vector<8x16xf32>
    %344 = vector.shape_cast %343 : vector<8x16xf32> to vector<4x2x16xf32>
    %c0_181 = arith.constant 0 : index
    %c0_182 = arith.constant 0 : index
    %c0_183 = arith.constant 0 : index
    %345 = vector.load %arg18[%c0_181, %c0_182, %c0_183] : memref<4x2x16xf32, #tpu.memory_space<vmem>>, vector<4x2x16xf32>
    tpu.vector_store %arg18[%c0_181, %c0_182, %c0_183], %344 {strides = array<i32>} : memref<4x2x16xf32, #tpu.memory_space<vmem>>, vector<4x2x16xf32>,
    return
  }
  func.func @transform_0(%arg0: i32) -> (i32, i32, i32) {
    %c0_i32 = arith.constant 0 : i32
    %c0_i32_0 = arith.constant 0 : i32
    %c0_i32_1 = arith.constant 0 : i32
    %c0_i32_2 = arith.constant 0 : i32
    return %c0_i32, %c0_i32_0, %c0_i32_1 : i32, i32, i32
  }
  func.func @transform_1(%arg0: i32) -> (i32, i32) {
    %c0_i32 = arith.constant 0 : i32
    %c0_i32_0 = arith.constant 0 : i32
    %c0_i32_1 = arith.constant 0 : i32
    return %c0_i32, %c0_i32_0 : i32, i32
  }
  func.func @transform_2(%arg0: i32) -> (i32, i32) {
    %c0_i32 = arith.constant 0 : i32
    %c0_i32_0 = arith.constant 0 : i32
    %c0_i32_1 = arith.constant 0 : i32
    return %c0_i32, %c0_i32_0 : i32, i32
  }
  func.func @transform_3(%arg0: i32) -> (i32, i32) {
    %c0_i32 = arith.constant 0 : i32
    %c0_i32_0 = arith.constant 0 : i32
    %c0_i32_1 = arith.constant 0 : i32
    return %c0_i32, %c0_i32_0 : i32, i32
  }
  func.func @transform_4(%arg0: i32) -> (i32, i32) {
    %c0_i32 = arith.constant 0 : i32
    %c0_i32_0 = arith.constant 0 : i32
    %c0_i32_1 = arith.constant 0 : i32
    return %c0_i32, %c0_i32_0 : i32, i32
  }
  func.func @transform_5(%arg0: i32) -> (i32, i32) {
    %c0_i32 = arith.constant 0 : i32
    %c0_i32_0 = arith.constant 0 : i32
    %c0_i32_1 = arith.constant 0 : i32
    return %c0_i32, %c0_i32_0 : i32, i32
  }
  func.func @transform_6(%arg0: i32) -> (i32, i32) {
    %c0_i32 = arith.constant 0 : i32
    %c0_i32_0 = arith.constant 0 : i32
    %c0_i32_1 = arith.constant 0 : i32
    return %c0_i32, %c0_i32_0 : i32, i32
  }
  func.func @transform_7(%arg0: i32) -> (i32, i32) {
    %c0_i32 = arith.constant 0 : i32
    %c0_i32_0 = arith.constant 0 : i32
    %c0_i32_1 = arith.constant 0 : i32
    return %c0_i32, %c0_i32_0 : i32, i32
  }
  func.func @transform_8(%arg0: i32) -> (i32, i32) {
    %c0_i32 = arith.constant 0 : i32
    %c0_i32_0 = arith.constant 0 : i32
    %c0_i32_1 = arith.constant 0 : i32
    return %c0_i32, %c0_i32_0 : i32, i32
  }
  func.func @transform_9(%arg0: i32) -> (i32, i32) {
    %c0_i32 = arith.constant 0 : i32
    %c0_i32_0 = arith.constant 0 : i32
    %c0_i32_1 = arith.constant 0 : i32
    return %c0_i32, %c0_i32_0 : i32, i32
  }
  func.func @transform_10(%arg0: i32) -> (i32, i32) {
    %c0_i32 = arith.constant 0 : i32
    %c0_i32_0 = arith.constant 0 : i32
    %c0_i32_1 = arith.constant 0 : i32
    return %c0_i32, %c0_i32_0 : i32, i32
  }
  func.func @transform_11(%arg0: i32) -> (i32, i32) {
    %c0_i32 = arith.constant 0 : i32
    %c0_i32_0 = arith.constant 0 : i32
    %c0_i32_1 = arith.constant 0 : i32
    return %c0_i32, %c0_i32_0 : i32, i32
  }
  func.func @transform_12(%arg0: i32) -> (i32, i32) {
    %c0_i32 = arith.constant 0 : i32
    %c0_i32_0 = arith.constant 0 : i32
    %c0_i32_1 = arith.constant 0 : i32
    return %c0_i32, %c0_i32_0 : i32, i32
  }
  func.func @transform_13(%arg0: i32) -> (i32, i32) {
    %c0_i32 = arith.constant 0 : i32
    %c0_i32_0 = arith.constant 0 : i32
    %c0_i32_1 = arith.constant 0 : i32
    return %c0_i32, %c0_i32_0 : i32, i32
  }
  func.func @transform_14(%arg0: i32) -> (i32, i32) {
    %c0_i32 = arith.constant 0 : i32
    %c0_i32_0 = arith.constant 0 : i32
    %c0_i32_1 = arith.constant 0 : i32
    return %c0_i32, %c0_i32_0 : i32, i32
  }
  func.func @transform_15(%arg0: i32) -> (i32, i32) {
    %c0_i32 = arith.constant 0 : i32
    %c0_i32_0 = arith.constant 0 : i32
    %c0_i32_1 = arith.constant 0 : i32
    return %c0_i32, %c0_i32_0 : i32, i32
  }
  func.func @transform_16(%arg0: i32) -> (i32, i32) {
    %c0_i32 = arith.constant 0 : i32
    %c0_i32_0 = arith.constant 0 : i32
    %c0_i32_1 = arith.constant 0 : i32
    return %c0_i32, %c0_i32_0 : i32, i32
  }
  func.func @transform_17(%arg0: i32) -> (i32, i32, i32) {
    %c0_i32 = arith.constant 0 : i32
    %c0_i32_0 = arith.constant 0 : i32
    %c0_i32_1 = arith.constant 0 : i32
    %c0_i32_2 = arith.constant 0 : i32
    return %c0_i32, %c0_i32_0, %c0_i32_1 : i32, i32, i32
  }
  func.func @transform_18(%arg0: i32) -> (i32, i32) {
    %c0_i32 = arith.constant 0 : i32
    %c0_i32_0 = arith.constant 0 : i32
    %c0_i32_1 = arith.constant 0 : i32
    return %c0_i32, %c0_i32_0 : i32, i32
  }
  func.func @transform_19(%arg0: i32) -> (i32, i32, i32) {
    %c0_i32 = arith.constant 0 : i32
    %c0_i32_0 = arith.constant 0 : i32
    %c0_i32_1 = arith.constant 0 : i32
    %c0_i32_2 = arith.constant 0 : i32
    return %c0_i32, %c0_i32_0, %c0_i32_1 : i32, i32, i32
  }
}

</mosaic_0001>

<llo_original>
// kernel: decoder_rnn_att_decode.1
$region0: #{decoder_rnn_att_decode.1}
  #allocation0 [shape = 'u32[]', space=smem, size = 0x4, offset = 0x4, fixed_abs, tag = 'smem constant byte address 0x4 - core index']
  #allocation1 [shape = 'u32[144,128]{1,0:T(1,128)}', space=vmem, size = 0x12000, scoped, tag = 'internal scratch']
  #allocation2 [shape = 'f32[4,2,32]{2,1,0:T(2,128)}', space=vmem, size = 0x1000, scoped, tag = 'scratch operand']
  #allocation3 [shape = 'f32[4,2,32]{2,1,0:T(2,128)}', space=vmem, size = 0x1000, scoped, tag = 'scratch operand']
  %s0 = inlined_call_operand.vmem [shape: bf16[4,2,16], index: 0, kind: input, shape index: {}]
  %s1 = inlined_call_operand.vmem [shape: f32[2,32], index: 1, kind: input, shape index: {}]
  %s2 = inlined_call_operand.vmem [shape: bf16[128,32], index: 2, kind: input, shape index: {}]
  %s3 = inlined_call_operand.vmem [shape: bf16[16,32], index: 3, kind: input, shape index: {}]
  %s4 = inlined_call_operand.vmem [shape: f32[1,32], index: 4, kind: input, shape index: {}]
  %s5 = inlined_call_operand.vmem [shape: bf16[32,128], index: 5, kind: input, shape index: {}]
  %s6 = inlined_call_operand.vmem [shape: bf16[32,128], index: 6, kind: input, shape index: {}]
  %s7 = inlined_call_operand.vmem [shape: f32[1,128], index: 7, kind: input, shape index: {}]
  %s8 = inlined_call_operand.vmem [shape: bf16[32,32], index: 8, kind: input, shape index: {}]
  %s9 = inlined_call_operand.vmem [shape: bf16[32,32], index: 9, kind: input, shape index: {}]
  %s10 = inlined_call_operand.vmem [shape: f32[1,32], index: 10, kind: input, shape index: {}]
  %s11 = inlined_call_operand.vmem [shape: bf16[32,96], index: 11, kind: input, shape index: {}]
  %s12 = inlined_call_operand.vmem [shape: f32[1,96], index: 12, kind: input, shape index: {}]
  %s13 = inlined_call_operand.vmem [shape: bf16[32,96], index: 13, kind: input, shape index: {}]
  %s14 = inlined_call_operand.vmem [shape: f32[1,96], index: 14, kind: input, shape index: {}]
  %s15 = inlined_call_operand.vmem [shape: bf16[32,16], index: 15, kind: input, shape index: {}]
  %s16 = inlined_call_operand.vmem [shape: f32[1,16], index: 16, kind: input, shape index: {}]
  %s17 = inlined_call_operand.hbm [shape: f32[4,2,16], index: 17, kind: output, shape index: {0}]
  %s18 = inlined_call_operand.hbm [shape: f32[2,32], index: 18, kind: output, shape index: {1}]
  %s19 = inlined_call_operand.hbm [shape: f32[4,2,128], index: 19, kind: output, shape index: {2}]
  %20 = xla_tuple %s17, %s18, %s19
  %s21 = sld [smem:[#allocation0]]
  $region94: #{decoder_rnn_att_decode.1} parent=0
    _
  %s23 = ssub.s32 1, %s21
  %s24 = scalar_select 0, %s23, %s21
  $region1: #{decoder_rnn_att_decode.1} parent=0
    #allocation4 [shape = 'u8[4096]{0}', space=vmem, size = 0x1000, scoped, tag = 'output window, operand 0, single buffered']
    #allocation5 [shape = 's32[1]{0}', space=sflag, size = 0x4, scoped, tag = 'scoped memory for decoder_rnn_att_decode.1']
    #allocation6 [shape = 'u8[1024]{0}', space=vmem, size = 0x400, scoped, tag = 'output window, operand 1, single buffered']
    #allocation7 [shape = 's32[1]{0}', space=sflag, size = 0x4, scoped, tag = 'scoped memory for decoder_rnn_att_decode.1']
    #allocation8 [shape = 'u8[4096]{0}', space=vmem, size = 0x1000, scoped, tag = 'output window, operand 2, single buffered']
    %25 = vsyncpa [#allocation5], 0
    %26 = vsyncpa [#allocation7], 0
    // Predicated region
    $region2: #{decoder_rnn_att_decode.1} parent=1 // pred_check
      _
    $region3: #{decoder_rnn_att_decode.1} parent=1 // pred_check_branch
      %28 = sbr.rel (0) target = $region5
    $region4: #{decoder_rnn_att_decode.1} parent=1 // pred_region
      _
    $region5: #{decoder_rnn_att_decode.1} parent=1 // pred_fallthru
      _
    // Predicated region
    $region6: #{decoder_rnn_att_decode.1} parent=1 // pred_check
      _
    $region7: #{decoder_rnn_att_decode.1} parent=1 // pred_check_branch
      %30 = sbr.rel (0) target = $region9
    $region8: #{decoder_rnn_att_decode.1} parent=1 // pred_region
      _
    $region9: #{decoder_rnn_att_decode.1} parent=1 // pred_fallthru
      _
    // Predicated region
    $region10: #{decoder_rnn_att_decode.1} parent=1 // pred_check
      _
    $region11: #{decoder_rnn_att_decode.1} parent=1 // pred_check_branch
      %32 = sbr.rel (0) target = $region13
    $region12: #{decoder_rnn_att_decode.1} parent=1 // pred_region
      _
    $region13: #{decoder_rnn_att_decode.1} parent=1 // pred_fallthru
      _
    // Predicated region
    $region14: #{decoder_rnn_att_decode.1} parent=1 // pred_check
      _
    $region15: #{decoder_rnn_att_decode.1} parent=1 // pred_check_branch
      %34 = sbr.rel (0) target = $region17
    $region16: #{decoder_rnn_att_decode.1} parent=1 // pred_region
      _
    $region17: #{decoder_rnn_att_decode.1} parent=1 // pred_fallthru
      _
    // Predicated region
    $region18: #{decoder_rnn_att_decode.1} parent=1 // pred_check
      _
    $region19: #{decoder_rnn_att_decode.1} parent=1 // pred_check_branch
      %36 = sbr.rel (0) target = $region21
    $region20: #{decoder_rnn_att_decode.1} parent=1 // pred_region
      _
    $region21: #{decoder_rnn_att_decode.1} parent=1 // pred_fallthru
      _
    // Predicated region
    $region22: #{decoder_rnn_att_decode.1} parent=1 // pred_check
      _
    $region23: #{decoder_rnn_att_decode.1} parent=1 // pred_check_branch
      %38 = sbr.rel (0) target = $region25
    $region24: #{decoder_rnn_att_decode.1} parent=1 // pred_region
      _
    $region25: #{decoder_rnn_att_decode.1} parent=1 // pred_fallthru
      _
    // Predicated region
    $region26: #{decoder_rnn_att_decode.1} parent=1 // pred_check
      _
    $region27: #{decoder_rnn_att_decode.1} parent=1 // pred_check_branch
      %40 = sbr.rel (0) target = $region29
    $region28: #{decoder_rnn_att_decode.1} parent=1 // pred_region
      _
    $region29: #{decoder_rnn_att_decode.1} parent=1 // pred_fallthru
      _
    // Predicated region
    $region30: #{decoder_rnn_att_decode.1} parent=1 // pred_check
      _
    $region31: #{decoder_rnn_att_decode.1} parent=1 // pred_check_branch
      %42 = sbr.rel (0) target = $region33
    $region32: #{decoder_rnn_att_decode.1} parent=1 // pred_region
      _
    $region33: #{decoder_rnn_att_decode.1} parent=1 // pred_fallthru
      _
    // Predicated region
    $region34: #{decoder_rnn_att_decode.1} parent=1 // pred_check
      _
    $region35: #{decoder_rnn_att_decode.1} parent=1 // pred_check_branch
      %44 = sbr.rel (0) target = $region37
    $region36: #{decoder_rnn_att_decode.1} parent=1 // pred_region
      _
    $region37: #{decoder_rnn_att_decode.1} parent=1 // pred_fallthru
      _
    // Predicated region
    $region38: #{decoder_rnn_att_decode.1} parent=1 // pred_check
      _
    $region39: #{decoder_rnn_att_decode.1} parent=1 // pred_check_branch
      %46 = sbr.rel (0) target = $region41
    $region40: #{decoder_rnn_att_decode.1} parent=1 // pred_region
      _
    $region41: #{decoder_rnn_att_decode.1} parent=1 // pred_fallthru
      _
    // Predicated region
    $region42: #{decoder_rnn_att_decode.1} parent=1 // pred_check
      _
    $region43: #{decoder_rnn_att_decode.1} parent=1 // pred_check_branch
      %48 = sbr.rel (0) target = $region45
    $region44: #{decoder_rnn_att_decode.1} parent=1 // pred_region
      _
    $region45: #{decoder_rnn_att_decode.1} parent=1 // pred_fallthru
      _
    // Predicated region
    $region46: #{decoder_rnn_att_decode.1} parent=1 // pred_check
      _
    $region47: #{decoder_rnn_att_decode.1} parent=1 // pred_check_branch
      %50 = sbr.rel (0) target = $region49
    $region48: #{decoder_rnn_att_decode.1} parent=1 // pred_region
      _
    $region49: #{decoder_rnn_att_decode.1} parent=1 // pred_fallthru
      _
    // Predicated region
    $region50: #{decoder_rnn_att_decode.1} parent=1 // pred_check
      _
    $region51: #{decoder_rnn_att_decode.1} parent=1 // pred_check_branch
      %52 = sbr.rel (0) target = $region53
    $region52: #{decoder_rnn_att_decode.1} parent=1 // pred_region
      _
    $region53: #{decoder_rnn_att_decode.1} parent=1 // pred_fallthru
      _
    // Predicated region
    $region54: #{decoder_rnn_att_decode.1} parent=1 // pred_check
      _
    $region55: #{decoder_rnn_att_decode.1} parent=1 // pred_check_branch
      %54 = sbr.rel (0) target = $region57
    $region56: #{decoder_rnn_att_decode.1} parent=1 // pred_region
      _
    $region57: #{decoder_rnn_att_decode.1} parent=1 // pred_fallthru
      _
    // Predicated region
    $region58: #{decoder_rnn_att_decode.1} parent=1 // pred_check
      _
    $region59: #{decoder_rnn_att_decode.1} parent=1 // pred_check_branch
      %56 = sbr.rel (0) target = $region61
    $region60: #{decoder_rnn_att_decode.1} parent=1 // pred_region
      _
    $region61: #{decoder_rnn_att_decode.1} parent=1 // pred_fallthru
      _
    // Predicated region
    $region62: #{decoder_rnn_att_decode.1} parent=1 // pred_check
      _
    $region63: #{decoder_rnn_att_decode.1} parent=1 // pred_check_branch
      %58 = sbr.rel (0) target = $region65
    $region64: #{decoder_rnn_att_decode.1} parent=1 // pred_region
      _
    $region65: #{decoder_rnn_att_decode.1} parent=1 // pred_fallthru
      _
    // Predicated region
    $region66: #{decoder_rnn_att_decode.1} parent=1 // pred_check
      _
    $region67: #{decoder_rnn_att_decode.1} parent=1 // pred_check_branch
      %60 = sbr.rel (0) target = $region69
    $region68: #{decoder_rnn_att_decode.1} parent=1 // pred_region
      _
    $region69: #{decoder_rnn_att_decode.1} parent=1 // pred_fallthru
      _
    %v62 = vld [vmem:[%s0] sm:$0x1]
    %v63 = vld [vmem:[%s0 + $0x1] sm:$0x1]
    %v64 = vld [vmem:[%s0 + $0x2] sm:$0x1]
    %v65 = vld [vmem:[%s0 + $0x3] sm:$0x1]
    %v66 = vld [vmem:[%s3] sm:$0xf]
    %v67 = vld [vmem:[%s3 + $0x4] sm:$0xf]
    %v68 = vld [vmem:[%s4] sm:$0x1]
    %v70 = vlaneseq
    %v71 = vshrl.u32 %v70, 7
    %v72 = vsub.s32 0, %v71
    %v73 = vrot.slane %v68, %v72
    %v79 = vcombine.low %v62, %v63
    %v80 = vcombine.low %v64, %v65
    %v82 = vunpack.c.l.s4 1966171168
    %v83 = vunpack.c.0.s8 %v82
    %v84 = vlaneseq
    %v85 = vshrl.u32 %v84, 7
    %v86 = vsub.s32 %v83, %v85
    %v87 = vrot.slane %v79, %v86
    %v89 = vunpack.c.l.s4 1966171168
    %v90 = vunpack.c.0.s8 %v89
    %v91 = vlaneseq
    %v92 = vshrl.u32 %v91, 7
    %v93 = vsub.s32 %v90, %v92
    %v94 = vrot.slane %v80, %v93
    %v95 = vcombine.low %v87, %v94
    %v97 = vunpack.c.l.s4 1966171168
    %v98 = vunpack.c.0.s8 %v97
    %v99 = vlaneseq
    %v100 = vshrl.u32 %v99, 7
    %v101 = vsub.s32 %v98, %v100
    %v102 = vrot.slane %v95, %v101
    %v105 = vunpack.c.l.b16 %v66
    %v106 = vunpack.c.l.b16 %v67
    %v107 = vpack.c.b16 %v106, %v105
    %vm109 = vcmask 130048
    %v111 = vsel %vm109, %v102, 0
    %113 = vmatprep.subr.bf16.mxu0 0
    %114 = vmatpush1.bf16.msra.mxu0 %v107
    %115 = vmatprep.subr.bf16.mxu0 0
    %116 = vmatpush1.bf16.msra.mxu0 0
    %117 = vmatprep.subr.bf16.mxu0 0
    %118 = vmatpush1.bf16.msra.mxu0 0
    %119 = vmatprep.subr.bf16.mxu0 0
    %120 = vmatpush1.bf16.msra.mxu0 0
    %121 = vmatprep.subr.bf16.mxu0 0
    %122 = vmatpush1.bf16.msra.mxu0 0
    %123 = vmatprep.subr.bf16.mxu0 0
    %124 = vmatpush1.bf16.msra.mxu0 0
    %125 = vmatprep.subr.bf16.mxu0 0
    %126 = vmatpush1.bf16.msra.mxu0 0
    %127 = vmatprep.subr.bf16.mxu0 0
    %128 = vmatpush1.bf16.msra.mxu0 0
    %129 = vmatprep.subr.bf16.mxu0 0
    %130 = vmatpush1.bf16.msra.mxu0 0
    %131 = vmatprep.subr.bf16.mxu0 0
    %132 = vmatpush1.bf16.msra.mxu0 0
    %133 = vmatprep.subr.bf16.mxu0 0
    %134 = vmatpush1.bf16.msra.mxu0 0
    %135 = vmatprep.subr.bf16.mxu0 0
    %136 = vmatpush1.bf16.msra.mxu0 0
    %137 = vmatprep.subr.bf16.mxu0 0
    %138 = vmatpush1.bf16.msra.mxu0 0
    %139 = vmatprep.subr.bf16.mxu0 0
    %140 = vmatpush1.bf16.msra.mxu0 0
    %141 = vmatprep.subr.bf16.mxu0 0
    %142 = vmatpush1.bf16.msra.mxu0 0
    %143 = vmatprep.subr.bf16.mxu0 0
    %144 = vmatpush1.bf16.msra.mxu0 0
    %145 = vmatprep.mubr.bf16.mxu0 0
    %146 = vmatmul.mubr.bf16.gmra.mrb[0].mxu0 %v111
    %v147 = vpop.f32.mrb[0].mxu0
    %v148 = vadd.f32 %v73, %v147
    %v149 = vpop.f32.mrb[0].mxu0
    %v150 = vpop.f32.mrb[0].mxu0
    %v151 = vpop.f32.mrb[0].mxu0
    %152 = vdwg.mxu0
    %v154 = vcombine.high %v148, %v148
    %v156 = vunpack.c.l.s4 1983009808
    %v157 = vunpack.c.0.s8 %v156
    %v158 = vlaneseq
    %v159 = vshrl.u32 %v158, 7
    %v160 = vsub.s32 %v157, %v159
    %v161 = vrot.slane %v148, %v160
    %v163 = vunpack.c.l.s4 1983009808
    %v164 = vunpack.c.0.s8 %v163
    %v165 = vlaneseq
    %v166 = vshrl.u32 %v165, 7
    %v167 = vsub.s32 %v164, %v166
    %v168 = vrot.slane %v154, %v167
    %v169 = vcombine.high %v161, %v161
    %v170 = vcombine.high %v168, %v168
    %vm175 = vcmask 254976
    %176 = vst.msk [vmem:[#allocation2] sm:$0x3] %vm175, %v161
    %177 = vst.msk [vmem:[#allocation2 + $0x2] sm:$0x3] %vm175, %v169
    %178 = vst.msk [vmem:[#allocation2 + $0x4] sm:$0x3] %vm175, %v168
    %179 = vst.msk [vmem:[#allocation2 + $0x6] sm:$0x3] %vm175, %v170
    %v180 = vld [vmem:[%s1] sm:$0x3]
    %v181 = vld [vmem:[#allocation2] sm:$0x3]
    %v182 = vpack.c.bf16 %v181, %v181
    %v183 = vpack.c.bf16 %v180, %v180
    %v184 = vld [vmem:[%s5] sm:$0xf]
    %v185 = vld [vmem:[%s5 + $0x4] sm:$0xf]
    %v186 = vld [vmem:[%s5 + $0x8] sm:$0xf]
    %v187 = vld [vmem:[%s5 + $0xc] sm:$0xf]
    %v188 = vld [vmem:[%s6] sm:$0xf]
    %v189 = vld [vmem:[%s6 + $0x4] sm:$0xf]
    %v190 = vld [vmem:[%s6 + $0x8] sm:$0xf]
    %v191 = vld [vmem:[%s6 + $0xc] sm:$0xf]
    %v196 = vunpack.c.l.b16 %v188
    %v197 = vunpack.c.l.b16 %v189
    %v198 = vunpack.c.l.b16 %v190
    %v199 = vunpack.c.l.b16 %v191
    %v200 = vpack.c.b16 %v197, %v196
    %v201 = vpack.c.b16 %v199, %v198
    %vm204 = vcmask 261120
    %v206 = vsel %vm204, %v183, 0
    %208 = vmatprep.subr.bf16.mxu0 0
    %209 = vmatpush1.bf16.msra.mxu0 %v200
    %210 = vmatprep.subr.bf16.mxu0 0
    %211 = vmatpush1.bf16.msra.mxu0 %v201
    %212 = vmatprep.subr.bf16.mxu0 0
    %213 = vmatpush1.bf16.msra.mxu0 0
    %214 = vmatprep.subr.bf16.mxu0 0
    %215 = vmatpush1.bf16.msra.mxu0 0
    %216 = vmatprep.subr.bf16.mxu0 0
    %217 = vmatpush1.bf16.msra.mxu0 0
    %218 = vmatprep.subr.bf16.mxu0 0
    %219 = vmatpush1.bf16.msra.mxu0 0
    %220 = vmatprep.subr.bf16.mxu0 0
    %221 = vmatpush1.bf16.msra.mxu0 0
    %222 = vmatprep.subr.bf16.mxu0 0
    %223 = vmatpush1.bf16.msra.mxu0 0
    %224 = vmatprep.subr.bf16.mxu0 0
    %225 = vmatpush1.bf16.msra.mxu0 0
    %226 = vmatprep.subr.bf16.mxu0 0
    %227 = vmatpush1.bf16.msra.mxu0 0
    %228 = vmatprep.subr.bf16.mxu0 0
    %229 = vmatpush1.bf16.msra.mxu0 0
    %230 = vmatprep.subr.bf16.mxu0 0
    %231 = vmatpush1.bf16.msra.mxu0 0
    %232 = vmatprep.subr.bf16.mxu0 0
    %233 = vmatpush1.bf16.msra.mxu0 0
    %234 = vmatprep.subr.bf16.mxu0 0
    %235 = vmatpush1.bf16.msra.mxu0 0
    %236 = vmatprep.subr.bf16.mxu0 0
    %237 = vmatpush1.bf16.msra.mxu0 0
    %238 = vmatprep.subr.bf16.mxu0 0
    %239 = vmatpush1.bf16.msra.mxu0 0
    %240 = vmatprep.mubr.bf16.mxu0 0
    %241 = vmatmul.mubr.bf16.gmra.mrb[0].mxu0 %v206
    %v242 = vpop.f32.mrb[0].mxu0
    %v243 = vadd.f32 0.0, %v242
    %v244 = vpop.f32.mrb[0].mxu0
    %v245 = vpop.f32.mrb[0].mxu0
    %v246 = vpop.f32.mrb[0].mxu0
    %247 = vdwg.mxu0
    %v252 = vunpack.c.l.b16 %v184
    %v253 = vunpack.c.l.b16 %v185
    %v254 = vunpack.c.l.b16 %v186
    %v255 = vunpack.c.l.b16 %v187
    %v256 = vpack.c.b16 %v253, %v252
    %v257 = vpack.c.b16 %v255, %v254
    %v261 = vsel %vm204, %v182, 0
    %263 = vmatprep.subr.bf16.mxu0 0
    %264 = vmatpush1.bf16.msra.mxu0 %v256
    %265 = vmatprep.subr.bf16.mxu0 0
    %266 = vmatpush1.bf16.msra.mxu0 %v257
    %267 = vmatprep.subr.bf16.mxu0 0
    %268 = vmatpush1.bf16.msra.mxu0 0
    %269 = vmatprep.subr.bf16.mxu0 0
    %270 = vmatpush1.bf16.msra.mxu0 0
    %271 = vmatprep.subr.bf16.mxu0 0
    %272 = vmatpush1.bf16.msra.mxu0 0
    %273 = vmatprep.subr.bf16.mxu0 0
    %274 = vmatpush1.bf16.msra.mxu0 0
    %275 = vmatprep.subr.bf16.mxu0 0
    %276 = vmatpush1.bf16.msra.mxu0 0
    %277 = vmatprep.subr.bf16.mxu0 0
    %278 = vmatpush1.bf16.msra.mxu0 0
    %279 = vmatprep.subr.bf16.mxu0 0
    %280 = vmatpush1.bf16.msra.mxu0 0
    %281 = vmatprep.subr.bf16.mxu0 0
    %282 = vmatpush1.bf16.msra.mxu0 0
    %283 = vmatprep.subr.bf16.mxu0 0
    %284 = vmatpush1.bf16.msra.mxu0 0
    %285 = vmatprep.subr.bf16.mxu0 0
    %286 = vmatpush1.bf16.msra.mxu0 0
    %287 = vmatprep.subr.bf16.mxu0 0
    %288 = vmatpush1.bf16.msra.mxu0 0
    %289 = vmatprep.subr.bf16.mxu0 0
    %290 = vmatpush1.bf16.msra.mxu0 0
    %291 = vmatprep.subr.bf16.mxu0 0
    %292 = vmatpush1.bf16.msra.mxu0 0
    %293 = vmatprep.subr.bf16.mxu0 0
    %294 = vmatpush1.bf16.msra.mxu0 0
    %295 = vmatprep.mubr.bf16.mxu0 0
    %296 = vmatmul.mubr.bf16.gmra.mrb[0].mxu0 %v261
    %v297 = vpop.f32.mrb[0].mxu0
    %v298 = vadd.f32 %v243, %v297
    %v299 = vpop.f32.mrb[0].mxu0
    %v300 = vpop.f32.mrb[0].mxu0
    %v301 = vpop.f32.mrb[0].mxu0
    %302 = vdwg.mxu0
    %v303 = vld [vmem:[%s7] sm:$0x1]
    %v305 = vlaneseq
    %v306 = vshrl.u32 %v305, 7
    %v307 = vsub.s32 0, %v306
    %v308 = vrot.slane %v303, %v307
    %v310 = vadd.f32 %v298, %v308
    %vm311 = vcmask 1041408
    %v312 = vsel %vm311, %v310, -inf
    %313 = vmax.xlane.f32.xlu0 %v312
    %v314 = vpop.xlane.xlu0 %313
    %v315 = vsub.f32 %v310, %v314
    %v316 = vmul.f32 %v315, 1.442695
    %v317 = vpow.pop %v316
    %v318 = vsel %vm311, %v317, 0.0
    %319 = vadd.xlane.f32.xlu0 %v318
    %v320 = vpop.xlane.xlu0 %319
    %v321 = vrcp.pop %v320
    %v322 = vmul.f32 %v317, %v321
    %v323 = vpack.c.bf16 %v322, %v322
    %v324 = vld [vmem:[%s2] sm:$0xf]
    %v325 = vld [vmem:[%s2 + $0x4] sm:$0xf]
    %v326 = vld [vmem:[%s2 + $0x8] sm:$0xf]
    %v327 = vld [vmem:[%s2 + $0xc] sm:$0xf]
    %v328 = vld [vmem:[%s2 + $0x10] sm:$0xf]
    %v329 = vld [vmem:[%s2 + $0x14] sm:$0xf]
    %v330 = vld [vmem:[%s2 + $0x18] sm:$0xf]
    %v331 = vld [vmem:[%s2 + $0x1c] sm:$0xf]
    %v332 = vld [vmem:[%s2 + $0x20] sm:$0xf]
    %v333 = vld [vmem:[%s2 + $0x24] sm:$0xf]
    %v334 = vld [vmem:[%s2 + $0x28] sm:$0xf]
    %v335 = vld [vmem:[%s2 + $0x2c] sm:$0xf]
    %v336 = vld [vmem:[%s2 + $0x30] sm:$0xf]
    %v337 = vld [vmem:[%s2 + $0x34] sm:$0xf]
    %v338 = vld [vmem:[%s2 + $0x38] sm:$0xf]
    %v339 = vld [vmem:[%s2 + $0x3c] sm:$0xf]
    %v356 = vunpack.c.l.b16 %v324
    %v357 = vunpack.c.l.b16 %v325
    %v358 = vunpack.c.l.b16 %v326
    %v359 = vunpack.c.l.b16 %v327
    %v360 = vunpack.c.l.b16 %v328
    %v361 = vunpack.c.l.b16 %v329
    %v362 = vunpack.c.l.b16 %v330
    %v363 = vunpack.c.l.b16 %v331
    %v364 = vunpack.c.l.b16 %v332
    %v365 = vunpack.c.l.b16 %v333
    %v366 = vunpack.c.l.b16 %v334
    %v367 = vunpack.c.l.b16 %v335
    %v368 = vunpack.c.l.b16 %v336
    %v369 = vunpack.c.l.b16 %v337
    %v370 = vunpack.c.l.b16 %v338
    %v371 = vunpack.c.l.b16 %v339
    %v372 = vpack.c.b16 %v357, %v356
    %v373 = vpack.c.b16 %v359, %v358
    %v374 = vpack.c.b16 %v361, %v360
    %v375 = vpack.c.b16 %v363, %v362
    %v376 = vpack.c.b16 %v365, %v364
    %v377 = vpack.c.b16 %v367, %v366
    %v378 = vpack.c.b16 %v369, %v368
    %v379 = vpack.c.b16 %v371, %v370
    %388 = vmatprep.subr.bf16.mxu0 0
    %389 = vmatpush1.bf16.msra.mxu0 %v372
    %390 = vmatprep.subr.bf16.mxu0 0
    %391 = vmatpush1.bf16.msra.mxu0 %v373
    %392 = vmatprep.subr.bf16.mxu0 0
    %393 = vmatpush1.bf16.msra.mxu0 %v374
    %394 = vmatprep.subr.bf16.mxu0 0
    %395 = vmatpush1.bf16.msra.mxu0 %v375
    %396 = vmatprep.subr.bf16.mxu0 0
    %397 = vmatpush1.bf16.msra.mxu0 %v376
    %398 = vmatprep.subr.bf16.mxu0 0
    %399 = vmatpush1.bf16.msra.mxu0 %v377
    %400 = vmatprep.subr.bf16.mxu0 0
    %401 = vmatpush1.bf16.msra.mxu0 %v378
    %402 = vmatprep.subr.bf16.mxu0 0
    %403 = vmatpush1.bf16.msra.mxu0 %v379
    %404 = vmatprep.subr.bf16.mxu0 0
    %405 = vmatpush1.bf16.msra.mxu0 0
    %406 = vmatprep.subr.bf16.mxu0 0
    %407 = vmatpush1.bf16.msra.mxu0 0
    %408 = vmatprep.subr.bf16.mxu0 0
    %409 = vmatpush1.bf16.msra.mxu0 0
    %410 = vmatprep.subr.bf16.mxu0 0
    %411 = vmatpush1.bf16.msra.mxu0 0
    %412 = vmatprep.subr.bf16.mxu0 0
    %413 = vmatpush1.bf16.msra.mxu0 0
    %414 = vmatprep.subr.bf16.mxu0 0
    %415 = vmatpush1.bf16.msra.mxu0 0
    %416 = vmatprep.subr.bf16.mxu0 0
    %417 = vmatpush1.bf16.msra.mxu0 0
    %418 = vmatprep.subr.bf16.mxu0 0
    %419 = vmatpush1.bf16.msra.mxu0 0
    %420 = vmatprep.mubr.bf16.mxu0 0
    %421 = vmatmul.mubr.bf16.gmra.mrb[0].mxu0 %v323
    %v422 = vpop.f32.mrb[0].mxu0
    %v423 = vadd.f32 0.0, %v422
    %v424 = vpop.f32.mrb[0].mxu0
    %v425 = vpop.f32.mrb[0].mxu0
    %v426 = vpop.f32.mrb[0].mxu0
    %427 = vdwg.mxu0
    %v428 = vld [vmem:[%s8] sm:$0xf]
    %v429 = vld [vmem:[%s8 + $0x4] sm:$0xf]
    %v430 = vld [vmem:[%s8 + $0x8] sm:$0xf]
    %v431 = vld [vmem:[%s8 + $0xc] sm:$0xf]
    %v432 = vpack.c.bf16 %v423, %v423
    %v433 = vld [vmem:[%s9] sm:$0xf]
    %v434 = vld [vmem:[%s9 + $0x4] sm:$0xf]
    %v435 = vld [vmem:[%s9 + $0x8] sm:$0xf]
    %v436 = vld [vmem:[%s9 + $0xc] sm:$0xf]
    %v441 = vunpack.c.l.b16 %v433
    %v442 = vunpack.c.l.b16 %v434
    %v443 = vunpack.c.l.b16 %v435
    %v444 = vunpack.c.l.b16 %v436
    %v445 = vpack.c.b16 %v442, %v441
    %v446 = vpack.c.b16 %v444, %v443
    %v450 = vsel %vm204, %v432, 0
    %452 = vmatprep.subr.bf16.mxu0 0
    %453 = vmatpush1.bf16.msra.mxu0 %v445
    %454 = vmatprep.subr.bf16.mxu0 0
    %455 = vmatpush1.bf16.msra.mxu0 %v446
    %456 = vmatprep.subr.bf16.mxu0 0
    %457 = vmatpush1.bf16.msra.mxu0 0
    %458 = vmatprep.subr.bf16.mxu0 0
    %459 = vmatpush1.bf16.msra.mxu0 0
    %460 = vmatprep.subr.bf16.mxu0 0
    %461 = vmatpush1.bf16.msra.mxu0 0
    %462 = vmatprep.subr.bf16.mxu0 0
    %463 = vmatpush1.bf16.msra.mxu0 0
    %464 = vmatprep.subr.bf16.mxu0 0
    %465 = vmatpush1.bf16.msra.mxu0 0
    %466 = vmatprep.subr.bf16.mxu0 0
    %467 = vmatpush1.bf16.msra.mxu0 0
    %468 = vmatprep.subr.bf16.mxu0 0
    %469 = vmatpush1.bf16.msra.mxu0 0
    %470 = vmatprep.subr.bf16.mxu0 0
    %471 = vmatpush1.bf16.msra.mxu0 0
    %472 = vmatprep.subr.bf16.mxu0 0
    %473 = vmatpush1.bf16.msra.mxu0 0
    %474 = vmatprep.subr.bf16.mxu0 0
    %475 = vmatpush1.bf16.msra.mxu0 0
    %476 = vmatprep.subr.bf16.mxu0 0
    %477 = vmatpush1.bf16.msra.mxu0 0
    %478 = vmatprep.subr.bf16.mxu0 0
    %479 = vmatpush1.bf16.msra.mxu0 0
    %480 = vmatprep.subr.bf16.mxu0 0
    %481 = vmatpush1.bf16.msra.mxu0 0
    %482 = vmatprep.subr.bf16.mxu0 0
    %483 = vmatpush1.bf16.msra.mxu0 0
    %484 = vmatprep.mubr.bf16.mxu0 0
    %485 = vmatmul.mubr.bf16.gmra.mrb[0].mxu0 %v450
    %v486 = vpop.f32.mrb[0].mxu0
    %v487 = vadd.f32 0.0, %v486
    %v488 = vpop.f32.mrb[0].mxu0
    %v489 = vpop.f32.mrb[0].mxu0
    %v490 = vpop.f32.mrb[0].mxu0
    %491 = vdwg.mxu0
    %v496 = vunpack.c.l.b16 %v428
    %v497 = vunpack.c.l.b16 %v429
    %v498 = vunpack.c.l.b16 %v430
    %v499 = vunpack.c.l.b16 %v431
    %v500 = vpack.c.b16 %v497, %v496
    %v501 = vpack.c.b16 %v499, %v498
    %504 = vmatprep.subr.bf16.mxu0 0
    %505 = vmatpush1.bf16.msra.mxu0 %v500
    %506 = vmatprep.subr.bf16.mxu0 0
    %507 = vmatpush1.bf16.msra.mxu0 %v501
    %508 = vmatprep.subr.bf16.mxu0 0
    %509 = vmatpush1.bf16.msra.mxu0 0
    %510 = vmatprep.subr.bf16.mxu0 0
    %511 = vmatpush1.bf16.msra.mxu0 0
    %512 = vmatprep.subr.bf16.mxu0 0
    %513 = vmatpush1.bf16.msra.mxu0 0
    %514 = vmatprep.subr.bf16.mxu0 0
    %515 = vmatpush1.bf16.msra.mxu0 0
    %516 = vmatprep.subr.bf16.mxu0 0
    %517 = vmatpush1.bf16.msra.mxu0 0
    %518 = vmatprep.subr.bf16.mxu0 0
    %519 = vmatpush1.bf16.msra.mxu0 0
    %520 = vmatprep.subr.bf16.mxu0 0
    %521 = vmatpush1.bf16.msra.mxu0 0
    %522 = vmatprep.subr.bf16.mxu0 0
    %523 = vmatpush1.bf16.msra.mxu0 0
    %524 = vmatprep.subr.bf16.mxu0 0
    %525 = vmatpush1.bf16.msra.mxu0 0
    %526 = vmatprep.subr.bf16.mxu0 0
    %527 = vmatpush1.bf16.msra.mxu0 0
    %528 = vmatprep.subr.bf16.mxu0 0
    %529 = vmatpush1.bf16.msra.mxu0 0
    %530 = vmatprep.subr.bf16.mxu0 0
    %531 = vmatpush1.bf16.msra.mxu0 0
    %532 = vmatprep.subr.bf16.mxu0 0
    %533 = vmatpush1.bf16.msra.mxu0 0
    %534 = vmatprep.subr.bf16.mxu0 0
    %535 = vmatpush1.bf16.msra.mxu0 0
    %536 = vmatprep.mubr.bf16.mxu0 0
    %537 = vmatmul.mubr.bf16.gmra.mrb[0].mxu0 %v261
    %v538 = vpop.f32.mrb[0].mxu0
    %v539 = vadd.f32 %v487, %v538
    %v540 = vpop.f32.mrb[0].mxu0
    %v541 = vpop.f32.mrb[0].mxu0
    %v542 = vpop.f32.mrb[0].mxu0
    %543 = vdwg.mxu0
    %v544 = vld [vmem:[%s10] sm:$0x1]
    %v546 = vlaneseq
    %v547 = vshrl.u32 %v546, 7
    %v548 = vsub.s32 0, %v547
    %v549 = vrot.slane %v544, %v548
    %v551 = vadd.f32 %v539, %v549
    %v552 = vtanh.pop %v551
    %v553 = vpack.c.bf16 %v552, %v552
    %v554 = vld [vmem:[%s11] sm:$0xf]
    %v555 = vld [vmem:[%s11 + $0x4] sm:$0xf]
    %v556 = vld [vmem:[%s11 + $0x8] sm:$0xf]
    %v557 = vld [vmem:[%s11 + $0xc] sm:$0xf]
    %v558 = vld [vmem:[%s12] sm:$0x1]
    %v560 = vlaneseq
    %v561 = vshrl.u32 %v560, 7
    %v562 = vsub.s32 0, %v561
    %v563 = vrot.slane %v558, %v562
    %v569 = vunpack.c.l.b16 %v554
    %v570 = vunpack.c.l.b16 %v555
    %v571 = vunpack.c.l.b16 %v556
    %v572 = vunpack.c.l.b16 %v557
    %v573 = vpack.c.b16 %v570, %v569
    %v574 = vpack.c.b16 %v572, %v571
    %v578 = vsel %vm204, %v553, 0
    %580 = vmatprep.subr.bf16.mxu0 0
    %581 = vmatpush1.bf16.msra.mxu0 %v573
    %582 = vmatprep.subr.bf16.mxu0 0
    %583 = vmatpush1.bf16.msra.mxu0 %v574
    %584 = vmatprep.subr.bf16.mxu0 0
    %585 = vmatpush1.bf16.msra.mxu0 0
    %586 = vmatprep.subr.bf16.mxu0 0
    %587 = vmatpush1.bf16.msra.mxu0 0
    %588 = vmatprep.subr.bf16.mxu0 0
    %589 = vmatpush1.bf16.msra.mxu0 0
    %590 = vmatprep.subr.bf16.mxu0 0
    %591 = vmatpush1.bf16.msra.mxu0 0
    %592 = vmatprep.subr.bf16.mxu0 0
    %593 = vmatpush1.bf16.msra.mxu0 0
    %594 = vmatprep.subr.bf16.mxu0 0
    %595 = vmatpush1.bf16.msra.mxu0 0
    %596 = vmatprep.subr.bf16.mxu0 0
    %597 = vmatpush1.bf16.msra.mxu0 0
    %598 = vmatprep.subr.bf16.mxu0 0
    %599 = vmatpush1.bf16.msra.mxu0 0
    %600 = vmatprep.subr.bf16.mxu0 0
    %601 = vmatpush1.bf16.msra.mxu0 0
    %602 = vmatprep.subr.bf16.mxu0 0
    %603 = vmatpush1.bf16.msra.mxu0 0
    %604 = vmatprep.subr.bf16.mxu0 0
    %605 = vmatpush1.bf16.msra.mxu0 0
    %606 = vmatprep.subr.bf16.mxu0 0
    %607 = vmatpush1.bf16.msra.mxu0 0
    %608 = vmatprep.subr.bf16.mxu0 0
    %609 = vmatpush1.bf16.msra.mxu0 0
    %610 = vmatprep.subr.bf16.mxu0 0
    %611 = vmatpush1.bf16.msra.mxu0 0
    %612 = vmatprep.mubr.bf16.mxu0 0
    %613 = vmatmul.mubr.bf16.gmra.mrb[0].mxu0 %v578
    %v614 = vpop.f32.mrb[0].mxu0
    %v615 = vadd.f32 %v563, %v614
    %v616 = vpop.f32.mrb[0].mxu0
    %v617 = vpop.f32.mrb[0].mxu0
    %v618 = vpop.f32.mrb[0].mxu0
    %619 = vdwg.mxu0
    %v620 = vld [vmem:[%s13] sm:$0xf]
    %v621 = vld [vmem:[%s13 + $0x4] sm:$0xf]
    %v622 = vld [vmem:[%s13 + $0x8] sm:$0xf]
    %v623 = vld [vmem:[%s13 + $0xc] sm:$0xf]
    %v624 = vld [vmem:[%s14] sm:$0x1]
    %v626 = vlaneseq
    %v627 = vshrl.u32 %v626, 7
    %v628 = vsub.s32 0, %v627
    %v629 = vrot.slane %v624, %v628
    %v635 = vunpack.c.l.b16 %v620
    %v636 = vunpack.c.l.b16 %v621
    %v637 = vunpack.c.l.b16 %v622
    %v638 = vunpack.c.l.b16 %v623
    %v639 = vpack.c.b16 %v636, %v635
    %v640 = vpack.c.b16 %v638, %v637
    %643 = vmatprep.subr.bf16.mxu0 0
    %644 = vmatpush1.bf16.msra.mxu0 %v639
    %645 = vmatprep.subr.bf16.mxu0 0
    %646 = vmatpush1.bf16.msra.mxu0 %v640
    %647 = vmatprep.subr.bf16.mxu0 0
    %648 = vmatpush1.bf16.msra.mxu0 0
    %649 = vmatprep.subr.bf16.mxu0 0
    %650 = vmatpush1.bf16.msra.mxu0 0
    %651 = vmatprep.subr.bf16.mxu0 0
    %652 = vmatpush1.bf16.msra.mxu0 0
    %653 = vmatprep.subr.bf16.mxu0 0
    %654 = vmatpush1.bf16.msra.mxu0 0
    %655 = vmatprep.subr.bf16.mxu0 0
    %656 = vmatpush1.bf16.msra.mxu0 0
    %657 = vmatprep.subr.bf16.mxu0 0
    %658 = vmatpush1.bf16.msra.mxu0 0
    %659 = vmatprep.subr.bf16.mxu0 0
    %660 = vmatpush1.bf16.msra.mxu0 0
    %661 = vmatprep.subr.bf16.mxu0 0
    %662 = vmatpush1.bf16.msra.mxu0 0
    %663 = vmatprep.subr.bf16.mxu0 0
    %664 = vmatpush1.bf16.msra.mxu0 0
    %665 = vmatprep.subr.bf16.mxu0 0
    %666 = vmatpush1.bf16.msra.mxu0 0
    %667 = vmatprep.subr.bf16.mxu0 0
    %668 = vmatpush1.bf16.msra.mxu0 0
    %669 = vmatprep.subr.bf16.mxu0 0
    %670 = vmatpush1.bf16.msra.mxu0 0
    %671 = vmatprep.subr.bf16.mxu0 0
    %672 = vmatpush1.bf16.msra.mxu0 0
    %673 = vmatprep.subr.bf16.mxu0 0
    %674 = vmatpush1.bf16.msra.mxu0 0
    %675 = vmatprep.mubr.bf16.mxu0 0
    %676 = vmatmul.mubr.bf16.gmra.mrb[0].mxu0 %v206
    %v677 = vpop.f32.mrb[0].mxu0
    %v678 = vadd.f32 %v629, %v677
    %v679 = vpop.f32.mrb[0].mxu0
    %v680 = vpop.f32.mrb[0].mxu0
    %v681 = vpop.f32.mrb[0].mxu0
    %682 = vdwg.mxu0
    %v683 = vadd.f32 %v615, %v678
    %v684 = vxor.u32 %v683, 2147483648
    %v685 = vmul.f32 %v684, 1.442695
    %v686 = vpow.pop %v685
    %v687 = vadd.f32 %v686, 1.0
    %v688 = vrcp.pop %v687
    %v689 = vmul.f32 1.0, %v688
    %691 = vrot.lane.b32.xlu0 %v678, 64
    %v692 = vpop.permute.xlu0 %691
    %v694 = vmul.f32 %v689, %v692
    %696 = vrot.lane.b32.xlu0 %v694, 64
    %v697 = vpop.permute.xlu0 %696
    %v699 = vadd.f32 %v615, %v697
    %v700 = vtanh.pop %v699
    %v701 = vsub.f32 1.0, %v689
    %703 = vrot.lane.b32.xlu0 %v700, 96
    %v704 = vpop.permute.xlu0 %703
    %v706 = vmul.f32 %v701, %v704
    %708 = vrot.lane.b32.xlu0 %v180, 32
    %v709 = vpop.permute.xlu0 %708
    %v711 = vmul.f32 %v689, %v709
    %v712 = vadd.f32 %v706, %v711
    %713 = vst [vmem:[#allocation8] sm:$0x3] %v322
    %715 = vrot.lane.b32.xlu0 %v712, 96
    %v716 = vpop.permute.xlu0 %715
    %718 = vst.msk [vmem:[#allocation3] sm:$0x3] %vm175, %v716
    %s719 = scalar_lea.vmem [#allocation2], 2
    %v720 = vld [vmem:[%s719] sm:$0x3]
    %v721 = vpack.c.bf16 %v720, %v720
    %v722 = vpack.c.bf16 %v712, %v712
    %v723 = vld [vmem:[%s5] sm:$0xf]
    %v724 = vld [vmem:[%s5 + $0x4] sm:$0xf]
    %v725 = vld [vmem:[%s5 + $0x8] sm:$0xf]
    %v726 = vld [vmem:[%s5 + $0xc] sm:$0xf]
    %v727 = vld [vmem:[%s6] sm:$0xf]
    %v728 = vld [vmem:[%s6 + $0x4] sm:$0xf]
    %v729 = vld [vmem:[%s6 + $0x8] sm:$0xf]
    %v730 = vld [vmem:[%s6 + $0xc] sm:$0xf]
    %732 = vrot.lane.b32.xlu0 %v722, 96
    %v733 = vpop.permute.xlu0 %732
    %v738 = vunpack.c.l.b16 %v727
    %v739 = vunpack.c.l.b16 %v728
    %v740 = vunpack.c.l.b16 %v729
    %v741 = vunpack.c.l.b16 %v730
    %v742 = vpack.c.b16 %v739, %v738
    %v743 = vpack.c.b16 %v741, %v740
    %v747 = vsel %vm204, %v733, 0
    %749 = vmatprep.subr.bf16.mxu0 0
    %750 = vmatpush1.bf16.msra.mxu0 %v742
    %751 = vmatprep.subr.bf16.mxu0 0
    %752 = vmatpush1.bf16.msra.mxu0 %v743
    %753 = vmatprep.subr.bf16.mxu0 0
    %754 = vmatpush1.bf16.msra.mxu0 0
    %755 = vmatprep.subr.bf16.mxu0 0
    %756 = vmatpush1.bf16.msra.mxu0 0
    %757 = vmatprep.subr.bf16.mxu0 0
    %758 = vmatpush1.bf16.msra.mxu0 0
    %759 = vmatprep.subr.bf16.mxu0 0
    %760 = vmatpush1.bf16.msra.mxu0 0
    %761 = vmatprep.subr.bf16.mxu0 0
    %762 = vmatpush1.bf16.msra.mxu0 0
    %763 = vmatprep.subr.bf16.mxu0 0
    %764 = vmatpush1.bf16.msra.mxu0 0
    %765 = vmatprep.subr.bf16.mxu0 0
    %766 = vmatpush1.bf16.msra.mxu0 0
    %767 = vmatprep.subr.bf16.mxu0 0
    %768 = vmatpush1.bf16.msra.mxu0 0
    %769 = vmatprep.subr.bf16.mxu0 0
    %770 = vmatpush1.bf16.msra.mxu0 0
    %771 = vmatprep.subr.bf16.mxu0 0
    %772 = vmatpush1.bf16.msra.mxu0 0
    %773 = vmatprep.subr.bf16.mxu0 0
    %774 = vmatpush1.bf16.msra.mxu0 0
    %775 = vmatprep.subr.bf16.mxu0 0
    %776 = vmatpush1.bf16.msra.mxu0 0
    %777 = vmatprep.subr.bf16.mxu0 0
    %778 = vmatpush1.bf16.msra.mxu0 0
    %779 = vmatprep.subr.bf16.mxu0 0
    %780 = vmatpush1.bf16.msra.mxu0 0
    %781 = vmatprep.mubr.bf16.mxu0 0
    %782 = vmatmul.mubr.bf16.gmra.mrb[0].mxu0 %v747
    %v783 = vpop.f32.mrb[0].mxu0
    %v784 = vadd.f32 0.0, %v783
    %v785 = vpop.f32.mrb[0].mxu0
    %v786 = vpop.f32.mrb[0].mxu0
    %v787 = vpop.f32.mrb[0].mxu0
    %788 = vdwg.mxu0
    %v793 = vunpack.c.l.b16 %v723
    %v794 = vunpack.c.l.b16 %v724
    %v795 = vunpack.c.l.b16 %v725
    %v796 = vunpack.c.l.b16 %v726
    %v797 = vpack.c.b16 %v794, %v793
    %v798 = vpack.c.b16 %v796, %v795
    %v802 = vsel %vm204, %v721, 0
    %804 = vmatprep.subr.bf16.mxu0 0
    %805 = vmatpush1.bf16.msra.mxu0 %v797
    %806 = vmatprep.subr.bf16.mxu0 0
    %807 = vmatpush1.bf16.msra.mxu0 %v798
    %808 = vmatprep.subr.bf16.mxu0 0
    %809 = vmatpush1.bf16.msra.mxu0 0
    %810 = vmatprep.subr.bf16.mxu0 0
    %811 = vmatpush1.bf16.msra.mxu0 0
    %812 = vmatprep.subr.bf16.mxu0 0
    %813 = vmatpush1.bf16.msra.mxu0 0
    %814 = vmatprep.subr.bf16.mxu0 0
    %815 = vmatpush1.bf16.msra.mxu0 0
    %816 = vmatprep.subr.bf16.mxu0 0
    %817 = vmatpush1.bf16.msra.mxu0 0
    %818 = vmatprep.subr.bf16.mxu0 0
    %819 = vmatpush1.bf16.msra.mxu0 0
    %820 = vmatprep.subr.bf16.mxu0 0
    %821 = vmatpush1.bf16.msra.mxu0 0
    %822 = vmatprep.subr.bf16.mxu0 0
    %823 = vmatpush1.bf16.msra.mxu0 0
    %824 = vmatprep.subr.bf16.mxu0 0
    %825 = vmatpush1.bf16.msra.mxu0 0
    %826 = vmatprep.subr.bf16.mxu0 0
    %827 = vmatpush1.bf16.msra.mxu0 0
    %828 = vmatprep.subr.bf16.mxu0 0
    %829 = vmatpush1.bf16.msra.mxu0 0
    %830 = vmatprep.subr.bf16.mxu0 0
    %831 = vmatpush1.bf16.msra.mxu0 0
    %832 = vmatprep.subr.bf16.mxu0 0
    %833 = vmatpush1.bf16.msra.mxu0 0
    %834 = vmatprep.subr.bf16.mxu0 0
    %835 = vmatpush1.bf16.msra.mxu0 0
    %836 = vmatprep.mubr.bf16.mxu0 0
    %837 = vmatmul.mubr.bf16.gmra.mrb[0].mxu0 %v802
    %v838 = vpop.f32.mrb[0].mxu0
    %v839 = vadd.f32 %v784, %v838
    %v840 = vpop.f32.mrb[0].mxu0
    %v841 = vpop.f32.mrb[0].mxu0
    %v842 = vpop.f32.mrb[0].mxu0
    %843 = vdwg.mxu0
    %v844 = vld [vmem:[%s7] sm:$0x1]
    %v846 = vlaneseq
    %v847 = vshrl.u32 %v846, 7
    %v848 = vsub.s32 0, %v847
    %v849 = vrot.slane %v844, %v848
    %v851 = vadd.f32 %v839, %v849
    %v852 = vsel %vm311, %v851, -inf
    %853 = vmax.xlane.f32.xlu0 %v852
    %v854 = vpop.xlane.xlu0 %853
    %v855 = vsub.f32 %v851, %v854
    %v856 = vmul.f32 %v855, 1.442695
    %v857 = vpow.pop %v856
    %v858 = vsel %vm311, %v857, 0.0
    %859 = vadd.xlane.f32.xlu0 %v858
    %v860 = vpop.xlane.xlu0 %859
    %v861 = vrcp.pop %v860
    %v862 = vmul.f32 %v857, %v861
    %v863 = vpack.c.bf16 %v862, %v862
    %v864 = vld [vmem:[%s2] sm:$0xf]
    %v865 = vld [vmem:[%s2 + $0x4] sm:$0xf]
    %v866 = vld [vmem:[%s2 + $0x8] sm:$0xf]
    %v867 = vld [vmem:[%s2 + $0xc] sm:$0xf]
    %v868 = vld [vmem:[%s2 + $0x10] sm:$0xf]
    %v869 = vld [vmem:[%s2 + $0x14] sm:$0xf]
    %v870 = vld [vmem:[%s2 + $0x18] sm:$0xf]
    %v871 = vld [vmem:[%s2 + $0x1c] sm:$0xf]
    %v872 = vld [vmem:[%s2 + $0x20] sm:$0xf]
    %v873 = vld [vmem:[%s2 + $0x24] sm:$0xf]
    %v874 = vld [vmem:[%s2 + $0x28] sm:$0xf]
    %v875 = vld [vmem:[%s2 + $0x2c] sm:$0xf]
    %v876 = vld [vmem:[%s2 + $0x30] sm:$0xf]
    %v877 = vld [vmem:[%s2 + $0x34] sm:$0xf]
    %v878 = vld [vmem:[%s2 + $0x38] sm:$0xf]
    %v879 = vld [vmem:[%s2 + $0x3c] sm:$0xf]
    %v896 = vunpack.c.l.b16 %v864
    %v897 = vunpack.c.l.b16 %v865
    %v898 = vunpack.c.l.b16 %v866
    %v899 = vunpack.c.l.b16 %v867
    %v900 = vunpack.c.l.b16 %v868
    %v901 = vunpack.c.l.b16 %v869
    %v902 = vunpack.c.l.b16 %v870
    %v903 = vunpack.c.l.b16 %v871
    %v904 = vunpack.c.l.b16 %v872
    %v905 = vunpack.c.l.b16 %v873
    %v906 = vunpack.c.l.b16 %v874
    %v907 = vunpack.c.l.b16 %v875
    %v908 = vunpack.c.l.b16 %v876
    %v909 = vunpack.c.l.b16 %v877
    %v910 = vunpack.c.l.b16 %v878
    %v911 = vunpack.c.l.b16 %v879
    %v912 = vpack.c.b16 %v897, %v896
    %v913 = vpack.c.b16 %v899, %v898
    %v914 = vpack.c.b16 %v901, %v900
    %v915 = vpack.c.b16 %v903, %v902
    %v916 = vpack.c.b16 %v905, %v904
    %v917 = vpack.c.b16 %v907, %v906
    %v918 = vpack.c.b16 %v909, %v908
    %v919 = vpack.c.b16 %v911, %v910
    %928 = vmatprep.subr.bf16.mxu0 0
    %929 = vmatpush1.bf16.msra.mxu0 %v912
    %930 = vmatprep.subr.bf16.mxu0 0
    %931 = vmatpush1.bf16.msra.mxu0 %v913
    %932 = vmatprep.subr.bf16.mxu0 0
    %933 = vmatpush1.bf16.msra.mxu0 %v914
    %934 = vmatprep.subr.bf16.mxu0 0
    %935 = vmatpush1.bf16.msra.mxu0 %v915
    %936 = vmatprep.subr.bf16.mxu0 0
    %937 = vmatpush1.bf16.msra.mxu0 %v916
    %938 = vmatprep.subr.bf16.mxu0 0
    %939 = vmatpush1.bf16.msra.mxu0 %v917
    %940 = vmatprep.subr.bf16.mxu0 0
    %941 = vmatpush1.bf16.msra.mxu0 %v918
    %942 = vmatprep.subr.bf16.mxu0 0
    %943 = vmatpush1.bf16.msra.mxu0 %v919
    %944 = vmatprep.subr.bf16.mxu0 0
    %945 = vmatpush1.bf16.msra.mxu0 0
    %946 = vmatprep.subr.bf16.mxu0 0
    %947 = vmatpush1.bf16.msra.mxu0 0
    %948 = vmatprep.subr.bf16.mxu0 0
    %949 = vmatpush1.bf16.msra.mxu0 0
    %950 = vmatprep.subr.bf16.mxu0 0
    %951 = vmatpush1.bf16.msra.mxu0 0
    %952 = vmatprep.subr.bf16.mxu0 0
    %953 = vmatpush1.bf16.msra.mxu0 0
    %954 = vmatprep.subr.bf16.mxu0 0
    %955 = vmatpush1.bf16.msra.mxu0 0
    %956 = vmatprep.subr.bf16.mxu0 0
    %957 = vmatpush1.bf16.msra.mxu0 0
    %958 = vmatprep.subr.bf16.mxu0 0
    %959 = vmatpush1.bf16.msra.mxu0 0
    %960 = vmatprep.mubr.bf16.mxu0 0
    %961 = vmatmul.mubr.bf16.gmra.mrb[0].mxu0 %v863
    %v962 = vpop.f32.mrb[0].mxu0
    %v963 = vadd.f32 0.0, %v962
    %v964 = vpop.f32.mrb[0].mxu0
    %v965 = vpop.f32.mrb[0].mxu0
    %v966 = vpop.f32.mrb[0].mxu0
    %967 = vdwg.mxu0
    %v968 = vld [vmem:[%s8] sm:$0xf]
    %v969 = vld [vmem:[%s8 + $0x4] sm:$0xf]
    %v970 = vld [vmem:[%s8 + $0x8] sm:$0xf]
    %v971 = vld [vmem:[%s8 + $0xc] sm:$0xf]
    %v972 = vpack.c.bf16 %v963, %v963
    %v973 = vld [vmem:[%s9] sm:$0xf]
    %v974 = vld [vmem:[%s9 + $0x4] sm:$0xf]
    %v975 = vld [vmem:[%s9 + $0x8] sm:$0xf]
    %v976 = vld [vmem:[%s9 + $0xc] sm:$0xf]
    %v981 = vunpack.c.l.b16 %v973
    %v982 = vunpack.c.l.b16 %v974
    %v983 = vunpack.c.l.b16 %v975
    %v984 = vunpack.c.l.b16 %v976
    %v985 = vpack.c.b16 %v982, %v981
    %v986 = vpack.c.b16 %v984, %v983
    %v990 = vsel %vm204, %v972, 0
    %992 = vmatprep.subr.bf16.mxu0 0
    %993 = vmatpush1.bf16.msra.mxu0 %v985
    %994 = vmatprep.subr.bf16.mxu0 0
    %995 = vmatpush1.bf16.msra.mxu0 %v986
    %996 = vmatprep.subr.bf16.mxu0 0
    %997 = vmatpush1.bf16.msra.mxu0 0
    %998 = vmatprep.subr.bf16.mxu0 0
    %999 = vmatpush1.bf16.msra.mxu0 0
    %1000 = vmatprep.subr.bf16.mxu0 0
    %1001 = vmatpush1.bf16.msra.mxu0 0
    %1002 = vmatprep.subr.bf16.mxu0 0
    %1003 = vmatpush1.bf16.msra.mxu0 0
    %1004 = vmatprep.subr.bf16.mxu0 0
    %1005 = vmatpush1.bf16.msra.mxu0 0
    %1006 = vmatprep.subr.bf16.mxu0 0
    %1007 = vmatpush1.bf16.msra.mxu0 0
    %1008 = vmatprep.subr.bf16.mxu0 0
    %1009 = vmatpush1.bf16.msra.mxu0 0
    %1010 = vmatprep.subr.bf16.mxu0 0
    %1011 = vmatpush1.bf16.msra.mxu0 0
    %1012 = vmatprep.subr.bf16.mxu0 0
    %1013 = vmatpush1.bf16.msra.mxu0 0
    %1014 = vmatprep.subr.bf16.mxu0 0
    %1015 = vmatpush1.bf16.msra.mxu0 0
    %1016 = vmatprep.subr.bf16.mxu0 0
    %1017 = vmatpush1.bf16.msra.mxu0 0
    %1018 = vmatprep.subr.bf16.mxu0 0
    %1019 = vmatpush1.bf16.msra.mxu0 0
    %1020 = vmatprep.subr.bf16.mxu0 0
    %1021 = vmatpush1.bf16.msra.mxu0 0
    %1022 = vmatprep.subr.bf16.mxu0 0
    %1023 = vmatpush1.bf16.msra.mxu0 0
    %1024 = vmatprep.mubr.bf16.mxu0 0
    %1025 = vmatmul.mubr.bf16.gmra.mrb[0].mxu0 %v990
    %v1026 = vpop.f32.mrb[0].mxu0
    %v1027 = vadd.f32 0.0, %v1026
    %v1028 = vpop.f32.mrb[0].mxu0
    %v1029 = vpop.f32.mrb[0].mxu0
    %v1030 = vpop.f32.mrb[0].mxu0
    %1031 = vdwg.mxu0
    %v1036 = vunpack.c.l.b16 %v968
    %v1037 = vunpack.c.l.b16 %v969
    %v1038 = vunpack.c.l.b16 %v970
    %v1039 = vunpack.c.l.b16 %v971
    %v1040 = vpack.c.b16 %v1037, %v1036
    %v1041 = vpack.c.b16 %v1039, %v1038
    %1044 = vmatprep.subr.bf16.mxu0 0
    %1045 = vmatpush1.bf16.msra.mxu0 %v1040
    %1046 = vmatprep.subr.bf16.mxu0 0
    %1047 = vmatpush1.bf16.msra.mxu0 %v1041
    %1048 = vmatprep.subr.bf16.mxu0 0
    %1049 = vmatpush1.bf16.msra.mxu0 0
    %1050 = vmatprep.subr.bf16.mxu0 0
    %1051 = vmatpush1.bf16.msra.mxu0 0
    %1052 = vmatprep.subr.bf16.mxu0 0
    %1053 = vmatpush1.bf16.msra.mxu0 0
    %1054 = vmatprep.subr.bf16.mxu0 0
    %1055 = vmatpush1.bf16.msra.mxu0 0
    %1056 = vmatprep.subr.bf16.mxu0 0
    %1057 = vmatpush1.bf16.msra.mxu0 0
    %1058 = vmatprep.subr.bf16.mxu0 0
    %1059 = vmatpush1.bf16.msra.mxu0 0
    %1060 = vmatprep.subr.bf16.mxu0 0
    %1061 = vmatpush1.bf16.msra.mxu0 0
    %1062 = vmatprep.subr.bf16.mxu0 0
    %1063 = vmatpush1.bf16.msra.mxu0 0
    %1064 = vmatprep.subr.bf16.mxu0 0
    %1065 = vmatpush1.bf16.msra.mxu0 0
    %1066 = vmatprep.subr.bf16.mxu0 0
    %1067 = vmatpush1.bf16.msra.mxu0 0
    %1068 = vmatprep.subr.bf16.mxu0 0
    %1069 = vmatpush1.bf16.msra.mxu0 0
    %1070 = vmatprep.subr.bf16.mxu0 0
    %1071 = vmatpush1.bf16.msra.mxu0 0
    %1072 = vmatprep.subr.bf16.mxu0 0
    %1073 = vmatpush1.bf16.msra.mxu0 0
    %1074 = vmatprep.subr.bf16.mxu0 0
    %1075 = vmatpush1.bf16.msra.mxu0 0
    %1076 = vmatprep.mubr.bf16.mxu0 0
    %1077 = vmatmul.mubr.bf16.gmra.mrb[0].mxu0 %v802
    %v1078 = vpop.f32.mrb[0].mxu0
    %v1079 = vadd.f32 %v1027, %v1078
    %v1080 = vpop.f32.mrb[0].mxu0
    %v1081 = vpop.f32.mrb[0].mxu0
    %v1082 = vpop.f32.mrb[0].mxu0
    %1083 = vdwg.mxu0
    %v1084 = vld [vmem:[%s10] sm:$0x1]
    %v1086 = vlaneseq
    %v1087 = vshrl.u32 %v1086, 7
    %v1088 = vsub.s32 0, %v1087
    %v1089 = vrot.slane %v1084, %v1088
    %v1091 = vadd.f32 %v1079, %v1089
    %v1092 = vtanh.pop %v1091
    %v1093 = vpack.c.bf16 %v1092, %v1092
    %v1094 = vld [vmem:[%s11] sm:$0xf]
    %v1095 = vld [vmem:[%s11 + $0x4] sm:$0xf]
    %v1096 = vld [vmem:[%s11 + $0x8] sm:$0xf]
    %v1097 = vld [vmem:[%s11 + $0xc] sm:$0xf]
    %v1098 = vld [vmem:[%s12] sm:$0x1]
    %v1100 = vlaneseq
    %v1101 = vshrl.u32 %v1100, 7
    %v1102 = vsub.s32 0, %v1101
    %v1103 = vrot.slane %v1098, %v1102
    %v1109 = vunpack.c.l.b16 %v1094
    %v1110 = vunpack.c.l.b16 %v1095
    %v1111 = vunpack.c.l.b16 %v1096
    %v1112 = vunpack.c.l.b16 %v1097
    %v1113 = vpack.c.b16 %v1110, %v1109
    %v1114 = vpack.c.b16 %v1112, %v1111
    %v1118 = vsel %vm204, %v1093, 0
    %1120 = vmatprep.subr.bf16.mxu0 0
    %1121 = vmatpush1.bf16.msra.mxu0 %v1113
    %1122 = vmatprep.subr.bf16.mxu0 0
    %1123 = vmatpush1.bf16.msra.mxu0 %v1114
    %1124 = vmatprep.subr.bf16.mxu0 0
    %1125 = vmatpush1.bf16.msra.mxu0 0
    %1126 = vmatprep.subr.bf16.mxu0 0
    %1127 = vmatpush1.bf16.msra.mxu0 0
    %1128 = vmatprep.subr.bf16.mxu0 0
    %1129 = vmatpush1.bf16.msra.mxu0 0
    %1130 = vmatprep.subr.bf16.mxu0 0
    %1131 = vmatpush1.bf16.msra.mxu0 0
    %1132 = vmatprep.subr.bf16.mxu0 0
    %1133 = vmatpush1.bf16.msra.mxu0 0
    %1134 = vmatprep.subr.bf16.mxu0 0
    %1135 = vmatpush1.bf16.msra.mxu0 0
    %1136 = vmatprep.subr.bf16.mxu0 0
    %1137 = vmatpush1.bf16.msra.mxu0 0
    %1138 = vmatprep.subr.bf16.mxu0 0
    %1139 = vmatpush1.bf16.msra.mxu0 0
    %1140 = vmatprep.subr.bf16.mxu0 0
    %1141 = vmatpush1.bf16.msra.mxu0 0
    %1142 = vmatprep.subr.bf16.mxu0 0
    %1143 = vmatpush1.bf16.msra.mxu0 0
    %1144 = vmatprep.subr.bf16.mxu0 0
    %1145 = vmatpush1.bf16.msra.mxu0 0
    %1146 = vmatprep.subr.bf16.mxu0 0
    %1147 = vmatpush1.bf16.msra.mxu0 0
    %1148 = vmatprep.subr.bf16.mxu0 0
    %1149 = vmatpush1.bf16.msra.mxu0 0
    %1150 = vmatprep.subr.bf16.mxu0 0
    %1151 = vmatpush1.bf16.msra.mxu0 0
    %1152 = vmatprep.mubr.bf16.mxu0 0
    %1153 = vmatmul.mubr.bf16.gmra.mrb[0].mxu0 %v1118
    %v1154 = vpop.f32.mrb[0].mxu0
    %v1155 = vadd.f32 %v1103, %v1154
    %v1156 = vpop.f32.mrb[0].mxu0
    %v1157 = vpop.f32.mrb[0].mxu0
    %v1158 = vpop.f32.mrb[0].mxu0
    %1159 = vdwg.mxu0
    %v1160 = vld [vmem:[%s13] sm:$0xf]
    %v1161 = vld [vmem:[%s13 + $0x4] sm:$0xf]
    %v1162 = vld [vmem:[%s13 + $0x8] sm:$0xf]
    %v1163 = vld [vmem:[%s13 + $0xc] sm:$0xf]
    %v1164 = vld [vmem:[%s14] sm:$0x1]
    %v1166 = vlaneseq
    %v1167 = vshrl.u32 %v1166, 7
    %v1168 = vsub.s32 0, %v1167
    %v1169 = vrot.slane %v1164, %v1168
    %v1175 = vunpack.c.l.b16 %v1160
    %v1176 = vunpack.c.l.b16 %v1161
    %v1177 = vunpack.c.l.b16 %v1162
    %v1178 = vunpack.c.l.b16 %v1163
    %v1179 = vpack.c.b16 %v1176, %v1175
    %v1180 = vpack.c.b16 %v1178, %v1177
    %1183 = vmatprep.subr.bf16.mxu0 0
    %1184 = vmatpush1.bf16.msra.mxu0 %v1179
    %1185 = vmatprep.subr.bf16.mxu0 0
    %1186 = vmatpush1.bf16.msra.mxu0 %v1180
    %1187 = vmatprep.subr.bf16.mxu0 0
    %1188 = vmatpush1.bf16.msra.mxu0 0
    %1189 = vmatprep.subr.bf16.mxu0 0
    %1190 = vmatpush1.bf16.msra.mxu0 0
    %1191 = vmatprep.subr.bf16.mxu0 0
    %1192 = vmatpush1.bf16.msra.mxu0 0
    %1193 = vmatprep.subr.bf16.mxu0 0
    %1194 = vmatpush1.bf16.msra.mxu0 0
    %1195 = vmatprep.subr.bf16.mxu0 0
    %1196 = vmatpush1.bf16.msra.mxu0 0
    %1197 = vmatprep.subr.bf16.mxu0 0
    %1198 = vmatpush1.bf16.msra.mxu0 0
    %1199 = vmatprep.subr.bf16.mxu0 0
    %1200 = vmatpush1.bf16.msra.mxu0 0
    %1201 = vmatprep.subr.bf16.mxu0 0
    %1202 = vmatpush1.bf16.msra.mxu0 0
    %1203 = vmatprep.subr.bf16.mxu0 0
    %1204 = vmatpush1.bf16.msra.mxu0 0
    %1205 = vmatprep.subr.bf16.mxu0 0
    %1206 = vmatpush1.bf16.msra.mxu0 0
    %1207 = vmatprep.subr.bf16.mxu0 0
    %1208 = vmatpush1.bf16.msra.mxu0 0
    %1209 = vmatprep.subr.bf16.mxu0 0
    %1210 = vmatpush1.bf16.msra.mxu0 0
    %1211 = vmatprep.subr.bf16.mxu0 0
    %1212 = vmatpush1.bf16.msra.mxu0 0
    %1213 = vmatprep.subr.bf16.mxu0 0
    %1214 = vmatpush1.bf16.msra.mxu0 0
    %1215 = vmatprep.mubr.bf16.mxu0 0
    %1216 = vmatmul.mubr.bf16.gmra.mrb[0].mxu0 %v747
    %v1217 = vpop.f32.mrb[0].mxu0
    %v1218 = vadd.f32 %v1169, %v1217
    %v1219 = vpop.f32.mrb[0].mxu0
    %v1220 = vpop.f32.mrb[0].mxu0
    %v1221 = vpop.f32.mrb[0].mxu0
    %1222 = vdwg.mxu0
    %v1223 = vadd.f32 %v1155, %v1218
    %v1224 = vxor.u32 %v1223, 2147483648
    %v1225 = vmul.f32 %v1224, 1.442695
    %v1226 = vpow.pop %v1225
    %v1227 = vadd.f32 %v1226, 1.0
    %v1228 = vrcp.pop %v1227
    %v1229 = vmul.f32 1.0, %v1228
    %1231 = vrot.lane.b32.xlu0 %v1218, 64
    %v1232 = vpop.permute.xlu0 %1231
    %v1234 = vmul.f32 %v1229, %v1232
    %1236 = vrot.lane.b32.xlu0 %v1234, 64
    %v1237 = vpop.permute.xlu0 %1236
    %v1239 = vadd.f32 %v1155, %v1237
    %v1240 = vtanh.pop %v1239
    %v1241 = vsub.f32 1.0, %v1229
    %1243 = vrot.lane.b32.xlu0 %v1240, 96
    %v1244 = vpop.permute.xlu0 %1243
    %v1246 = vmul.f32 %v1241, %v1244
    %v1247 = vmul.f32 %v1229, %v712
    %v1248 = vadd.f32 %v1246, %v1247
    %s1249 = scalar_lea.vmem [#allocation8], 2
    %1250 = vst [vmem:[%s1249] sm:$0x3] %v862
    %1252 = vrot.lane.b32.xlu0 %v1248, 96
    %v1253 = vpop.permute.xlu0 %1252
    %s1255 = scalar_lea.vmem [#allocation3], 2
    %1256 = vst.msk [vmem:[%s1255] sm:$0x3] %vm175, %v1253
    %s1257 = scalar_lea.vmem [#allocation2], 4
    %v1258 = vld [vmem:[%s1257] sm:$0x3]
    %v1259 = vpack.c.bf16 %v1258, %v1258
    %v1260 = vpack.c.bf16 %v1248, %v1248
    %v1261 = vld [vmem:[%s5] sm:$0xf]
    %v1262 = vld [vmem:[%s5 + $0x4] sm:$0xf]
    %v1263 = vld [vmem:[%s5 + $0x8] sm:$0xf]
    %v1264 = vld [vmem:[%s5 + $0xc] sm:$0xf]
    %v1265 = vld [vmem:[%s6] sm:$0xf]
    %v1266 = vld [vmem:[%s6 + $0x4] sm:$0xf]
    %v1267 = vld [vmem:[%s6 + $0x8] sm:$0xf]
    %v1268 = vld [vmem:[%s6 + $0xc] sm:$0xf]
    %1270 = vrot.lane.b32.xlu0 %v1260, 96
    %v1271 = vpop.permute.xlu0 %1270
    %v1276 = vunpack.c.l.b16 %v1265
    %v1277 = vunpack.c.l.b16 %v1266
    %v1278 = vunpack.c.l.b16 %v1267
    %v1279 = vunpack.c.l.b16 %v1268
    %v1280 = vpack.c.b16 %v1277, %v1276
    %v1281 = vpack.c.b16 %v1279, %v1278
    %v1285 = vsel %vm204, %v1271, 0
    %1287 = vmatprep.subr.bf16.mxu0 0
    %1288 = vmatpush1.bf16.msra.mxu0 %v1280
    %1289 = vmatprep.subr.bf16.mxu0 0
    %1290 = vmatpush1.bf16.msra.mxu0 %v1281
    %1291 = vmatprep.subr.bf16.mxu0 0
    %1292 = vmatpush1.bf16.msra.mxu0 0
    %1293 = vmatprep.subr.bf16.mxu0 0
    %1294 = vmatpush1.bf16.msra.mxu0 0
    %1295 = vmatprep.subr.bf16.mxu0 0
    %1296 = vmatpush1.bf16.msra.mxu0 0
    %1297 = vmatprep.subr.bf16.mxu0 0
    %1298 = vmatpush1.bf16.msra.mxu0 0
    %1299 = vmatprep.subr.bf16.mxu0 0
    %1300 = vmatpush1.bf16.msra.mxu0 0
    %1301 = vmatprep.subr.bf16.mxu0 0
    %1302 = vmatpush1.bf16.msra.mxu0 0
    %1303 = vmatprep.subr.bf16.mxu0 0
    %1304 = vmatpush1.bf16.msra.mxu0 0
    %1305 = vmatprep.subr.bf16.mxu0 0
    %1306 = vmatpush1.bf16.msra.mxu0 0
    %1307 = vmatprep.subr.bf16.mxu0 0
    %1308 = vmatpush1.bf16.msra.mxu0 0
    %1309 = vmatprep.subr.bf16.mxu0 0
    %1310 = vmatpush1.bf16.msra.mxu0 0
    %1311 = vmatprep.subr.bf16.mxu0 0
    %1312 = vmatpush1.bf16.msra.mxu0 0
    %1313 = vmatprep.subr.bf16.mxu0 0
    %1314 = vmatpush1.bf16.msra.mxu0 0
    %1315 = vmatprep.subr.bf16.mxu0 0
    %1316 = vmatpush1.bf16.msra.mxu0 0
    %1317 = vmatprep.subr.bf16.mxu0 0
    %1318 = vmatpush1.bf16.msra.mxu0 0
    %1319 = vmatprep.mubr.bf16.mxu0 0
    %1320 = vmatmul.mubr.bf16.gmra.mrb[0].mxu0 %v1285
    %v1321 = vpop.f32.mrb[0].mxu0
    %v1322 = vadd.f32 0.0, %v1321
    %v1323 = vpop.f32.mrb[0].mxu0
    %v1324 = vpop.f32.mrb[0].mxu0
    %v1325 = vpop.f32.mrb[0].mxu0
    %1326 = vdwg.mxu0
    %v1331 = vunpack.c.l.b16 %v1261
    %v1332 = vunpack.c.l.b16 %v1262
    %v1333 = vunpack.c.l.b16 %v1263
    %v1334 = vunpack.c.l.b16 %v1264
    %v1335 = vpack.c.b16 %v1332, %v1331
    %v1336 = vpack.c.b16 %v1334, %v1333
    %v1340 = vsel %vm204, %v1259, 0
    %1342 = vmatprep.subr.bf16.mxu0 0
    %1343 = vmatpush1.bf16.msra.mxu0 %v1335
    %1344 = vmatprep.subr.bf16.mxu0 0
    %1345 = vmatpush1.bf16.msra.mxu0 %v1336
    %1346 = vmatprep.subr.bf16.mxu0 0
    %1347 = vmatpush1.bf16.msra.mxu0 0
    %1348 = vmatprep.subr.bf16.mxu0 0
    %1349 = vmatpush1.bf16.msra.mxu0 0
    %1350 = vmatprep.subr.bf16.mxu0 0
    %1351 = vmatpush1.bf16.msra.mxu0 0
    %1352 = vmatprep.subr.bf16.mxu0 0
    %1353 = vmatpush1.bf16.msra.mxu0 0
    %1354 = vmatprep.subr.bf16.mxu0 0
    %1355 = vmatpush1.bf16.msra.mxu0 0
    %1356 = vmatprep.subr.bf16.mxu0 0
    %1357 = vmatpush1.bf16.msra.mxu0 0
    %1358 = vmatprep.subr.bf16.mxu0 0
    %1359 = vmatpush1.bf16.msra.mxu0 0
    %1360 = vmatprep.subr.bf16.mxu0 0
    %1361 = vmatpush1.bf16.msra.mxu0 0
    %1362 = vmatprep.subr.bf16.mxu0 0
    %1363 = vmatpush1.bf16.msra.mxu0 0
    %1364 = vmatprep.subr.bf16.mxu0 0
    %1365 = vmatpush1.bf16.msra.mxu0 0
    %1366 = vmatprep.subr.bf16.mxu0 0
    %1367 = vmatpush1.bf16.msra.mxu0 0
    %1368 = vmatprep.subr.bf16.mxu0 0
    %1369 = vmatpush1.bf16.msra.mxu0 0
    %1370 = vmatprep.subr.bf16.mxu0 0
    %1371 = vmatpush1.bf16.msra.mxu0 0
    %1372 = vmatprep.subr.bf16.mxu0 0
    %1373 = vmatpush1.bf16.msra.mxu0 0
    %1374 = vmatprep.mubr.bf16.mxu0 0
    %1375 = vmatmul.mubr.bf16.gmra.mrb[0].mxu0 %v1340
    %v1376 = vpop.f32.mrb[0].mxu0
    %v1377 = vadd.f32 %v1322, %v1376
    %v1378 = vpop.f32.mrb[0].mxu0
    %v1379 = vpop.f32.mrb[0].mxu0
    %v1380 = vpop.f32.mrb[0].mxu0
    %1381 = vdwg.mxu0
    %v1382 = vld [vmem:[%s7] sm:$0x1]
    %v1384 = vlaneseq
    %v1385 = vshrl.u32 %v1384, 7
    %v1386 = vsub.s32 0, %v1385
    %v1387 = vrot.slane %v1382, %v1386
    %v1389 = vadd.f32 %v1377, %v1387
    %v1390 = vsel %vm311, %v1389, -inf
    %1391 = vmax.xlane.f32.xlu0 %v1390
    %v1392 = vpop.xlane.xlu0 %1391
    %v1393 = vsub.f32 %v1389, %v1392
    %v1394 = vmul.f32 %v1393, 1.442695
    %v1395 = vpow.pop %v1394
    %v1396 = vsel %vm311, %v1395, 0.0
    %1397 = vadd.xlane.f32.xlu0 %v1396
    %v1398 = vpop.xlane.xlu0 %1397
    %v1399 = vrcp.pop %v1398
    %v1400 = vmul.f32 %v1395, %v1399
    %v1401 = vpack.c.bf16 %v1400, %v1400
    %v1402 = vld [vmem:[%s2] sm:$0xf]
    %v1403 = vld [vmem:[%s2 + $0x4] sm:$0xf]
    %v1404 = vld [vmem:[%s2 + $0x8] sm:$0xf]
    %v1405 = vld [vmem:[%s2 + $0xc] sm:$0xf]
    %v1406 = vld [vmem:[%s2 + $0x10] sm:$0xf]
    %v1407 = vld [vmem:[%s2 + $0x14] sm:$0xf]
    %v1408 = vld [vmem:[%s2 + $0x18] sm:$0xf]
    %v1409 = vld [vmem:[%s2 + $0x1c] sm:$0xf]
    %v1410 = vld [vmem:[%s2 + $0x20] sm:$0xf]
    %v1411 = vld [vmem:[%s2 + $0x24] sm:$0xf]
    %v1412 = vld [vmem:[%s2 + $0x28] sm:$0xf]
    %v1413 = vld [vmem:[%s2 + $0x2c] sm:$0xf]
    %v1414 = vld [vmem:[%s2 + $0x30] sm:$0xf]
    %v1415 = vld [vmem:[%s2 + $0x34] sm:$0xf]
    %v1416 = vld [vmem:[%s2 + $0x38] sm:$0xf]
    %v1417 = vld [vmem:[%s2 + $0x3c] sm:$0xf]
    %v1434 = vunpack.c.l.b16 %v1402
    %v1435 = vunpack.c.l.b16 %v1403
    %v1436 = vunpack.c.l.b16 %v1404
    %v1437 = vunpack.c.l.b16 %v1405
    %v1438 = vunpack.c.l.b16 %v1406
    %v1439 = vunpack.c.l.b16 %v1407
    %v1440 = vunpack.c.l.b16 %v1408
    %v1441 = vunpack.c.l.b16 %v1409
    %v1442 = vunpack.c.l.b16 %v1410
    %v1443 = vunpack.c.l.b16 %v1411
    %v1444 = vunpack.c.l.b16 %v1412
    %v1445 = vunpack.c.l.b16 %v1413
    %v1446 = vunpack.c.l.b16 %v1414
    %v1447 = vunpack.c.l.b16 %v1415
    %v1448 = vunpack.c.l.b16 %v1416
    %v1449 = vunpack.c.l.b16 %v1417
    %v1450 = vpack.c.b16 %v1435, %v1434
    %v1451 = vpack.c.b16 %v1437, %v1436
    %v1452 = vpack.c.b16 %v1439, %v1438
    %v1453 = vpack.c.b16 %v1441, %v1440
    %v1454 = vpack.c.b16 %v1443, %v1442
    %v1455 = vpack.c.b16 %v1445, %v1444
    %v1456 = vpack.c.b16 %v1447, %v1446
    %v1457 = vpack.c.b16 %v1449, %v1448
    %1466 = vmatprep.subr.bf16.mxu0 0
    %1467 = vmatpush1.bf16.msra.mxu0 %v1450
    %1468 = vmatprep.subr.bf16.mxu0 0
    %1469 = vmatpush1.bf16.msra.mxu0 %v1451
    %1470 = vmatprep.subr.bf16.mxu0 0
    %1471 = vmatpush1.bf16.msra.mxu0 %v1452
    %1472 = vmatprep.subr.bf16.mxu0 0
    %1473 = vmatpush1.bf16.msra.mxu0 %v1453
    %1474 = vmatprep.subr.bf16.mxu0 0
    %1475 = vmatpush1.bf16.msra.mxu0 %v1454
    %1476 = vmatprep.subr.bf16.mxu0 0
    %1477 = vmatpush1.bf16.msra.mxu0 %v1455
    %1478 = vmatprep.subr.bf16.mxu0 0
    %1479 = vmatpush1.bf16.msra.mxu0 %v1456
    %1480 = vmatprep.subr.bf16.mxu0 0
    %1481 = vmatpush1.bf16.msra.mxu0 %v1457
    %1482 = vmatprep.subr.bf16.mxu0 0
    %1483 = vmatpush1.bf16.msra.mxu0 0
    %1484 = vmatprep.subr.bf16.mxu0 0
    %1485 = vmatpush1.bf16.msra.mxu0 0
    %1486 = vmatprep.subr.bf16.mxu0 0
    %1487 = vmatpush1.bf16.msra.mxu0 0
    %1488 = vmatprep.subr.bf16.mxu0 0
    %1489 = vmatpush1.bf16.msra.mxu0 0
    %1490 = vmatprep.subr.bf16.mxu0 0
    %1491 = vmatpush1.bf16.msra.mxu0 0
    %1492 = vmatprep.subr.bf16.mxu0 0
    %1493 = vmatpush1.bf16.msra.mxu0 0
    %1494 = vmatprep.subr.bf16.mxu0 0
    %1495 = vmatpush1.bf16.msra.mxu0 0
    %1496 = vmatprep.subr.bf16.mxu0 0
    %1497 = vmatpush1.bf16.msra.mxu0 0
    %1498 = vmatprep.mubr.bf16.mxu0 0
    %1499 = vmatmul.mubr.bf16.gmra.mrb[0].mxu0 %v1401
    %v1500 = vpop.f32.mrb[0].mxu0
    %v1501 = vadd.f32 0.0, %v1500
    %v1502 = vpop.f32.mrb[0].mxu0
    %v1503 = vpop.f32.mrb[0].mxu0
    %v1504 = vpop.f32.mrb[0].mxu0
    %1505 = vdwg.mxu0
    %v1506 = vld [vmem:[%s8] sm:$0xf]
    %v1507 = vld [vmem:[%s8 + $0x4] sm:$0xf]
    %v1508 = vld [vmem:[%s8 + $0x8] sm:$0xf]
    %v1509 = vld [vmem:[%s8 + $0xc] sm:$0xf]
    %v1510 = vpack.c.bf16 %v1501, %v1501
    %v1511 = vld [vmem:[%s9] sm:$0xf]
    %v1512 = vld [vmem:[%s9 + $0x4] sm:$0xf]
    %v1513 = vld [vmem:[%s9 + $0x8] sm:$0xf]
    %v1514 = vld [vmem:[%s9 + $0xc] sm:$0xf]
    %v1519 = vunpack.c.l.b16 %v1511
    %v1520 = vunpack.c.l.b16 %v1512
    %v1521 = vunpack.c.l.b16 %v1513
    %v1522 = vunpack.c.l.b16 %v1514
    %v1523 = vpack.c.b16 %v1520, %v1519
    %v1524 = vpack.c.b16 %v1522, %v1521
    %v1528 = vsel %vm204, %v1510, 0
    %1530 = vmatprep.subr.bf16.mxu0 0
    %1531 = vmatpush1.bf16.msra.mxu0 %v1523
    %1532 = vmatprep.subr.bf16.mxu0 0
    %1533 = vmatpush1.bf16.msra.mxu0 %v1524
    %1534 = vmatprep.subr.bf16.mxu0 0
    %1535 = vmatpush1.bf16.msra.mxu0 0
    %1536 = vmatprep.subr.bf16.mxu0 0
    %1537 = vmatpush1.bf16.msra.mxu0 0
    %1538 = vmatprep.subr.bf16.mxu0 0
    %1539 = vmatpush1.bf16.msra.mxu0 0
    %1540 = vmatprep.subr.bf16.mxu0 0
    %1541 = vmatpush1.bf16.msra.mxu0 0
    %1542 = vmatprep.subr.bf16.mxu0 0
    %1543 = vmatpush1.bf16.msra.mxu0 0
    %1544 = vmatprep.subr.bf16.mxu0 0
    %1545 = vmatpush1.bf16.msra.mxu0 0
    %1546 = vmatprep.subr.bf16.mxu0 0
    %1547 = vmatpush1.bf16.msra.mxu0 0
    %1548 = vmatprep.subr.bf16.mxu0 0
    %1549 = vmatpush1.bf16.msra.mxu0 0
    %1550 = vmatprep.subr.bf16.mxu0 0
    %1551 = vmatpush1.bf16.msra.mxu0 0
    %1552 = vmatprep.subr.bf16.mxu0 0
    %1553 = vmatpush1.bf16.msra.mxu0 0
    %1554 = vmatprep.subr.bf16.mxu0 0
    %1555 = vmatpush1.bf16.msra.mxu0 0
    %1556 = vmatprep.subr.bf16.mxu0 0
    %1557 = vmatpush1.bf16.msra.mxu0 0
    %1558 = vmatprep.subr.bf16.mxu0 0
    %1559 = vmatpush1.bf16.msra.mxu0 0
    %1560 = vmatprep.subr.bf16.mxu0 0
    %1561 = vmatpush1.bf16.msra.mxu0 0
    %1562 = vmatprep.mubr.bf16.mxu0 0
    %1563 = vmatmul.mubr.bf16.gmra.mrb[0].mxu0 %v1528
    %v1564 = vpop.f32.mrb[0].mxu0
    %v1565 = vadd.f32 0.0, %v1564
    %v1566 = vpop.f32.mrb[0].mxu0
    %v1567 = vpop.f32.mrb[0].mxu0
    %v1568 = vpop.f32.mrb[0].mxu0
    %1569 = vdwg.mxu0
    %v1574 = vunpack.c.l.b16 %v1506
    %v1575 = vunpack.c.l.b16 %v1507
    %v1576 = vunpack.c.l.b16 %v1508
    %v1577 = vunpack.c.l.b16 %v1509
    %v1578 = vpack.c.b16 %v1575, %v1574
    %v1579 = vpack.c.b16 %v1577, %v1576
    %1582 = vmatprep.subr.bf16.mxu0 0
    %1583 = vmatpush1.bf16.msra.mxu0 %v1578
    %1584 = vmatprep.subr.bf16.mxu0 0
    %1585 = vmatpush1.bf16.msra.mxu0 %v1579
    %1586 = vmatprep.subr.bf16.mxu0 0
    %1587 = vmatpush1.bf16.msra.mxu0 0
    %1588 = vmatprep.subr.bf16.mxu0 0
    %1589 = vmatpush1.bf16.msra.mxu0 0
    %1590 = vmatprep.subr.bf16.mxu0 0
    %1591 = vmatpush1.bf16.msra.mxu0 0
    %1592 = vmatprep.subr.bf16.mxu0 0
    %1593 = vmatpush1.bf16.msra.mxu0 0
    %1594 = vmatprep.subr.bf16.mxu0 0
    %1595 = vmatpush1.bf16.msra.mxu0 0
    %1596 = vmatprep.subr.bf16.mxu0 0
    %1597 = vmatpush1.bf16.msra.mxu0 0
    %1598 = vmatprep.subr.bf16.mxu0 0
    %1599 = vmatpush1.bf16.msra.mxu0 0
    %1600 = vmatprep.subr.bf16.mxu0 0
    %1601 = vmatpush1.bf16.msra.mxu0 0
    %1602 = vmatprep.subr.bf16.mxu0 0
    %1603 = vmatpush1.bf16.msra.mxu0 0
    %1604 = vmatprep.subr.bf16.mxu0 0
    %1605 = vmatpush1.bf16.msra.mxu0 0
    %1606 = vmatprep.subr.bf16.mxu0 0
    %1607 = vmatpush1.bf16.msra.mxu0 0
    %1608 = vmatprep.subr.bf16.mxu0 0
    %1609 = vmatpush1.bf16.msra.mxu0 0
    %1610 = vmatprep.subr.bf16.mxu0 0
    %1611 = vmatpush1.bf16.msra.mxu0 0
    %1612 = vmatprep.subr.bf16.mxu0 0
    %1613 = vmatpush1.bf16.msra.mxu0 0
    %1614 = vmatprep.mubr.bf16.mxu0 0
    %1615 = vmatmul.mubr.bf16.gmra.mrb[0].mxu0 %v1340
    %v1616 = vpop.f32.mrb[0].mxu0
    %v1617 = vadd.f32 %v1565, %v1616
    %v1618 = vpop.f32.mrb[0].mxu0
    %v1619 = vpop.f32.mrb[0].mxu0
    %v1620 = vpop.f32.mrb[0].mxu0
    %1621 = vdwg.mxu0
    %v1622 = vld [vmem:[%s10] sm:$0x1]
    %v1624 = vlaneseq
    %v1625 = vshrl.u32 %v1624, 7
    %v1626 = vsub.s32 0, %v1625
    %v1627 = vrot.slane %v1622, %v1626
    %v1629 = vadd.f32 %v1617, %v1627
    %v1630 = vtanh.pop %v1629
    %v1631 = vpack.c.bf16 %v1630, %v1630
    %v1632 = vld [vmem:[%s11] sm:$0xf]
    %v1633 = vld [vmem:[%s11 + $0x4] sm:$0xf]
    %v1634 = vld [vmem:[%s11 + $0x8] sm:$0xf]
    %v1635 = vld [vmem:[%s11 + $0xc] sm:$0xf]
    %v1636 = vld [vmem:[%s12] sm:$0x1]
    %v1638 = vlaneseq
    %v1639 = vshrl.u32 %v1638, 7
    %v1640 = vsub.s32 0, %v1639
    %v1641 = vrot.slane %v1636, %v1640
    %v1647 = vunpack.c.l.b16 %v1632
    %v1648 = vunpack.c.l.b16 %v1633
    %v1649 = vunpack.c.l.b16 %v1634
    %v1650 = vunpack.c.l.b16 %v1635
    %v1651 = vpack.c.b16 %v1648, %v1647
    %v1652 = vpack.c.b16 %v1650, %v1649
    %v1656 = vsel %vm204, %v1631, 0
    %1658 = vmatprep.subr.bf16.mxu0 0
    %1659 = vmatpush1.bf16.msra.mxu0 %v1651
    %1660 = vmatprep.subr.bf16.mxu0 0
    %1661 = vmatpush1.bf16.msra.mxu0 %v1652
    %1662 = vmatprep.subr.bf16.mxu0 0
    %1663 = vmatpush1.bf16.msra.mxu0 0
    %1664 = vmatprep.subr.bf16.mxu0 0
    %1665 = vmatpush1.bf16.msra.mxu0 0
    %1666 = vmatprep.subr.bf16.mxu0 0
    %1667 = vmatpush1.bf16.msra.mxu0 0
    %1668 = vmatprep.subr.bf16.mxu0 0
    %1669 = vmatpush1.bf16.msra.mxu0 0
    %1670 = vmatprep.subr.bf16.mxu0 0
    %1671 = vmatpush1.bf16.msra.mxu0 0
    %1672 = vmatprep.subr.bf16.mxu0 0
    %1673 = vmatpush1.bf16.msra.mxu0 0
    %1674 = vmatprep.subr.bf16.mxu0 0
    %1675 = vmatpush1.bf16.msra.mxu0 0
    %1676 = vmatprep.subr.bf16.mxu0 0
    %1677 = vmatpush1.bf16.msra.mxu0 0
    %1678 = vmatprep.subr.bf16.mxu0 0
    %1679 = vmatpush1.bf16.msra.mxu0 0
    %1680 = vmatprep.subr.bf16.mxu0 0
    %1681 = vmatpush1.bf16.msra.mxu0 0
    %1682 = vmatprep.subr.bf16.mxu0 0
    %1683 = vmatpush1.bf16.msra.mxu0 0
    %1684 = vmatprep.subr.bf16.mxu0 0
    %1685 = vmatpush1.bf16.msra.mxu0 0
    %1686 = vmatprep.subr.bf16.mxu0 0
    %1687 = vmatpush1.bf16.msra.mxu0 0
    %1688 = vmatprep.subr.bf16.mxu0 0
    %1689 = vmatpush1.bf16.msra.mxu0 0
    %1690 = vmatprep.mubr.bf16.mxu0 0
    %1691 = vmatmul.mubr.bf16.gmra.mrb[0].mxu0 %v1656
    %v1692 = vpop.f32.mrb[0].mxu0
    %v1693 = vadd.f32 %v1641, %v1692
    %v1694 = vpop.f32.mrb[0].mxu0
    %v1695 = vpop.f32.mrb[0].mxu0
    %v1696 = vpop.f32.mrb[0].mxu0
    %1697 = vdwg.mxu0
    %v1698 = vld [vmem:[%s13] sm:$0xf]
    %v1699 = vld [vmem:[%s13 + $0x4] sm:$0xf]
    %v1700 = vld [vmem:[%s13 + $0x8] sm:$0xf]
    %v1701 = vld [vmem:[%s13 + $0xc] sm:$0xf]
    %v1702 = vld [vmem:[%s14] sm:$0x1]
    %v1704 = vlaneseq
    %v1705 = vshrl.u32 %v1704, 7
    %v1706 = vsub.s32 0, %v1705
    %v1707 = vrot.slane %v1702, %v1706
    %v1713 = vunpack.c.l.b16 %v1698
    %v1714 = vunpack.c.l.b16 %v1699
    %v1715 = vunpack.c.l.b16 %v1700
    %v1716 = vunpack.c.l.b16 %v1701
    %v1717 = vpack.c.b16 %v1714, %v1713
    %v1718 = vpack.c.b16 %v1716, %v1715
    %1721 = vmatprep.subr.bf16.mxu0 0
    %1722 = vmatpush1.bf16.msra.mxu0 %v1717
    %1723 = vmatprep.subr.bf16.mxu0 0
    %1724 = vmatpush1.bf16.msra.mxu0 %v1718
    %1725 = vmatprep.subr.bf16.mxu0 0
    %1726 = vmatpush1.bf16.msra.mxu0 0
    %1727 = vmatprep.subr.bf16.mxu0 0
    %1728 = vmatpush1.bf16.msra.mxu0 0
    %1729 = vmatprep.subr.bf16.mxu0 0
    %1730 = vmatpush1.bf16.msra.mxu0 0
    %1731 = vmatprep.subr.bf16.mxu0 0
    %1732 = vmatpush1.bf16.msra.mxu0 0
    %1733 = vmatprep.subr.bf16.mxu0 0
    %1734 = vmatpush1.bf16.msra.mxu0 0
    %1735 = vmatprep.subr.bf16.mxu0 0
    %1736 = vmatpush1.bf16.msra.mxu0 0
    %1737 = vmatprep.subr.bf16.mxu0 0
    %1738 = vmatpush1.bf16.msra.mxu0 0
    %1739 = vmatprep.subr.bf16.mxu0 0
    %1740 = vmatpush1.bf16.msra.mxu0 0
    %1741 = vmatprep.subr.bf16.mxu0 0
    %1742 = vmatpush1.bf16.msra.mxu0 0
    %1743 = vmatprep.subr.bf16.mxu0 0
    %1744 = vmatpush1.bf16.msra.mxu0 0
    %1745 = vmatprep.subr.bf16.mxu0 0
    %1746 = vmatpush1.bf16.msra.mxu0 0
    %1747 = vmatprep.subr.bf16.mxu0 0
    %1748 = vmatpush1.bf16.msra.mxu0 0
    %1749 = vmatprep.subr.bf16.mxu0 0
    %1750 = vmatpush1.bf16.msra.mxu0 0
    %1751 = vmatprep.subr.bf16.mxu0 0
    %1752 = vmatpush1.bf16.msra.mxu0 0
    %1753 = vmatprep.mubr.bf16.mxu0 0
    %1754 = vmatmul.mubr.bf16.gmra.mrb[0].mxu0 %v1285
    %v1755 = vpop.f32.mrb[0].mxu0
    %v1756 = vadd.f32 %v1707, %v1755
    %v1757 = vpop.f32.mrb[0].mxu0
    %v1758 = vpop.f32.mrb[0].mxu0
    %v1759 = vpop.f32.mrb[0].mxu0
    %1760 = vdwg.mxu0
    %v1761 = vadd.f32 %v1693, %v1756
    %v1762 = vxor.u32 %v1761, 2147483648
    %v1763 = vmul.f32 %v1762, 1.442695
    %v1764 = vpow.pop %v1763
    %v1765 = vadd.f32 %v1764, 1.0
    %v1766 = vrcp.pop %v1765
    %v1767 = vmul.f32 1.0, %v1766
    %1769 = vrot.lane.b32.xlu0 %v1756, 64
    %v1770 = vpop.permute.xlu0 %1769
    %v1772 = vmul.f32 %v1767, %v1770
    %1774 = vrot.lane.b32.xlu0 %v1772, 64
    %v1775 = vpop.permute.xlu0 %1774
    %v1777 = vadd.f32 %v1693, %v1775
    %v1778 = vtanh.pop %v1777
    %v1779 = vsub.f32 1.0, %v1767
    %1781 = vrot.lane.b32.xlu0 %v1778, 96
    %v1782 = vpop.permute.xlu0 %1781
    %v1784 = vmul.f32 %v1779, %v1782
    %v1785 = vmul.f32 %v1767, %v1248
    %v1786 = vadd.f32 %v1784, %v1785
    %s1787 = scalar_lea.vmem [#allocation8], 4
    %1788 = vst [vmem:[%s1787] sm:$0x3] %v1400
    %1790 = vrot.lane.b32.xlu0 %v1786, 96
    %v1791 = vpop.permute.xlu0 %1790
    %s1793 = scalar_lea.vmem [#allocation3], 4
    %1794 = vst.msk [vmem:[%s1793] sm:$0x3] %vm175, %v1791
    %s1795 = scalar_lea.vmem [#allocation2], 6
    %v1796 = vld [vmem:[%s1795] sm:$0x3]
    %v1797 = vpack.c.bf16 %v1796, %v1796
    %v1798 = vpack.c.bf16 %v1786, %v1786
    %v1799 = vld [vmem:[%s5] sm:$0xf]
    %v1800 = vld [vmem:[%s5 + $0x4] sm:$0xf]
    %v1801 = vld [vmem:[%s5 + $0x8] sm:$0xf]
    %v1802 = vld [vmem:[%s5 + $0xc] sm:$0xf]
    %v1803 = vld [vmem:[%s6] sm:$0xf]
    %v1804 = vld [vmem:[%s6 + $0x4] sm:$0xf]
    %v1805 = vld [vmem:[%s6 + $0x8] sm:$0xf]
    %v1806 = vld [vmem:[%s6 + $0xc] sm:$0xf]
    %1808 = vrot.lane.b32.xlu0 %v1798, 96
    %v1809 = vpop.permute.xlu0 %1808
    %v1814 = vunpack.c.l.b16 %v1803
    %v1815 = vunpack.c.l.b16 %v1804
    %v1816 = vunpack.c.l.b16 %v1805
    %v1817 = vunpack.c.l.b16 %v1806
    %v1818 = vpack.c.b16 %v1815, %v1814
    %v1819 = vpack.c.b16 %v1817, %v1816
    %v1823 = vsel %vm204, %v1809, 0
    %1825 = vmatprep.subr.bf16.mxu0 0
    %1826 = vmatpush1.bf16.msra.mxu0 %v1818
    %1827 = vmatprep.subr.bf16.mxu0 0
    %1828 = vmatpush1.bf16.msra.mxu0 %v1819
    %1829 = vmatprep.subr.bf16.mxu0 0
    %1830 = vmatpush1.bf16.msra.mxu0 0
    %1831 = vmatprep.subr.bf16.mxu0 0
    %1832 = vmatpush1.bf16.msra.mxu0 0
    %1833 = vmatprep.subr.bf16.mxu0 0
    %1834 = vmatpush1.bf16.msra.mxu0 0
    %1835 = vmatprep.subr.bf16.mxu0 0
    %1836 = vmatpush1.bf16.msra.mxu0 0
    %1837 = vmatprep.subr.bf16.mxu0 0
    %1838 = vmatpush1.bf16.msra.mxu0 0
    %1839 = vmatprep.subr.bf16.mxu0 0
    %1840 = vmatpush1.bf16.msra.mxu0 0
    %1841 = vmatprep.subr.bf16.mxu0 0
    %1842 = vmatpush1.bf16.msra.mxu0 0
    %1843 = vmatprep.subr.bf16.mxu0 0
    %1844 = vmatpush1.bf16.msra.mxu0 0
    %1845 = vmatprep.subr.bf16.mxu0 0
    %1846 = vmatpush1.bf16.msra.mxu0 0
    %1847 = vmatprep.subr.bf16.mxu0 0
    %1848 = vmatpush1.bf16.msra.mxu0 0
    %1849 = vmatprep.subr.bf16.mxu0 0
    %1850 = vmatpush1.bf16.msra.mxu0 0
    %1851 = vmatprep.subr.bf16.mxu0 0
    %1852 = vmatpush1.bf16.msra.mxu0 0
    %1853 = vmatprep.subr.bf16.mxu0 0
    %1854 = vmatpush1.bf16.msra.mxu0 0
    %1855 = vmatprep.subr.bf16.mxu0 0
    %1856 = vmatpush1.bf16.msra.mxu0 0
    %1857 = vmatprep.mubr.bf16.mxu0 0
    %1858 = vmatmul.mubr.bf16.gmra.mrb[0].mxu0 %v1823
    %v1859 = vpop.f32.mrb[0].mxu0
    %v1860 = vadd.f32 0.0, %v1859
    %v1861 = vpop.f32.mrb[0].mxu0
    %v1862 = vpop.f32.mrb[0].mxu0
    %v1863 = vpop.f32.mrb[0].mxu0
    %1864 = vdwg.mxu0
    %v1869 = vunpack.c.l.b16 %v1799
    %v1870 = vunpack.c.l.b16 %v1800
    %v1871 = vunpack.c.l.b16 %v1801
    %v1872 = vunpack.c.l.b16 %v1802
    %v1873 = vpack.c.b16 %v1870, %v1869
    %v1874 = vpack.c.b16 %v1872, %v1871
    %v1878 = vsel %vm204, %v1797, 0
    %1880 = vmatprep.subr.bf16.mxu0 0
    %1881 = vmatpush1.bf16.msra.mxu0 %v1873
    %1882 = vmatprep.subr.bf16.mxu0 0
    %1883 = vmatpush1.bf16.msra.mxu0 %v1874
    %1884 = vmatprep.subr.bf16.mxu0 0
    %1885 = vmatpush1.bf16.msra.mxu0 0
    %1886 = vmatprep.subr.bf16.mxu0 0
    %1887 = vmatpush1.bf16.msra.mxu0 0
    %1888 = vmatprep.subr.bf16.mxu0 0
    %1889 = vmatpush1.bf16.msra.mxu0 0
    %1890 = vmatprep.subr.bf16.mxu0 0
    %1891 = vmatpush1.bf16.msra.mxu0 0
    %1892 = vmatprep.subr.bf16.mxu0 0
    %1893 = vmatpush1.bf16.msra.mxu0 0
    %1894 = vmatprep.subr.bf16.mxu0 0
    %1895 = vmatpush1.bf16.msra.mxu0 0
    %1896 = vmatprep.subr.bf16.mxu0 0
    %1897 = vmatpush1.bf16.msra.mxu0 0
    %1898 = vmatprep.subr.bf16.mxu0 0
    %1899 = vmatpush1.bf16.msra.mxu0 0
    %1900 = vmatprep.subr.bf16.mxu0 0
    %1901 = vmatpush1.bf16.msra.mxu0 0
    %1902 = vmatprep.subr.bf16.mxu0 0
    %1903 = vmatpush1.bf16.msra.mxu0 0
    %1904 = vmatprep.subr.bf16.mxu0 0
    %1905 = vmatpush1.bf16.msra.mxu0 0
    %1906 = vmatprep.subr.bf16.mxu0 0
    %1907 = vmatpush1.bf16.msra.mxu0 0
    %1908 = vmatprep.subr.bf16.mxu0 0
    %1909 = vmatpush1.bf16.msra.mxu0 0
    %1910 = vmatprep.subr.bf16.mxu0 0
    %1911 = vmatpush1.bf16.msra.mxu0 0
    %1912 = vmatprep.mubr.bf16.mxu0 0
    %1913 = vmatmul.mubr.bf16.gmra.mrb[0].mxu0 %v1878
    %v1914 = vpop.f32.mrb[0].mxu0
    %v1915 = vadd.f32 %v1860, %v1914
    %v1916 = vpop.f32.mrb[0].mxu0
    %v1917 = vpop.f32.mrb[0].mxu0
    %v1918 = vpop.f32.mrb[0].mxu0
    %1919 = vdwg.mxu0
    %v1920 = vld [vmem:[%s7] sm:$0x1]
    %v1922 = vlaneseq
    %v1923 = vshrl.u32 %v1922, 7
    %v1924 = vsub.s32 0, %v1923
    %v1925 = vrot.slane %v1920, %v1924
    %v1927 = vadd.f32 %v1915, %v1925
    %v1928 = vsel %vm311, %v1927, -inf
    %1929 = vmax.xlane.f32.xlu0 %v1928
    %v1930 = vpop.xlane.xlu0 %1929
    %v1931 = vsub.f32 %v1927, %v1930
    %v1932 = vmul.f32 %v1931, 1.442695
    %v1933 = vpow.pop %v1932
    %v1934 = vsel %vm311, %v1933, 0.0
    %1935 = vadd.xlane.f32.xlu0 %v1934
    %v1936 = vpop.xlane.xlu0 %1935
    %v1937 = vrcp.pop %v1936
    %v1938 = vmul.f32 %v1933, %v1937
    %v1939 = vpack.c.bf16 %v1938, %v1938
    %v1940 = vld [vmem:[%s2] sm:$0xf]
    %v1941 = vld [vmem:[%s2 + $0x4] sm:$0xf]
    %v1942 = vld [vmem:[%s2 + $0x8] sm:$0xf]
    %v1943 = vld [vmem:[%s2 + $0xc] sm:$0xf]
    %v1944 = vld [vmem:[%s2 + $0x10] sm:$0xf]
    %v1945 = vld [vmem:[%s2 + $0x14] sm:$0xf]
    %v1946 = vld [vmem:[%s2 + $0x18] sm:$0xf]
    %v1947 = vld [vmem:[%s2 + $0x1c] sm:$0xf]
    %v1948 = vld [vmem:[%s2 + $0x20] sm:$0xf]
    %v1949 = vld [vmem:[%s2 + $0x24] sm:$0xf]
    %v1950 = vld [vmem:[%s2 + $0x28] sm:$0xf]
    %v1951 = vld [vmem:[%s2 + $0x2c] sm:$0xf]
    %v1952 = vld [vmem:[%s2 + $0x30] sm:$0xf]
    %v1953 = vld [vmem:[%s2 + $0x34] sm:$0xf]
    %v1954 = vld [vmem:[%s2 + $0x38] sm:$0xf]
    %v1955 = vld [vmem:[%s2 + $0x3c] sm:$0xf]
    %v1972 = vunpack.c.l.b16 %v1940
    %v1973 = vunpack.c.l.b16 %v1941
    %v1974 = vunpack.c.l.b16 %v1942
    %v1975 = vunpack.c.l.b16 %v1943
    %v1976 = vunpack.c.l.b16 %v1944
    %v1977 = vunpack.c.l.b16 %v1945
    %v1978 = vunpack.c.l.b16 %v1946
    %v1979 = vunpack.c.l.b16 %v1947
    %v1980 = vunpack.c.l.b16 %v1948
    %v1981 = vunpack.c.l.b16 %v1949
    %v1982 = vunpack.c.l.b16 %v1950
    %v1983 = vunpack.c.l.b16 %v1951
    %v1984 = vunpack.c.l.b16 %v1952
    %v1985 = vunpack.c.l.b16 %v1953
    %v1986 = vunpack.c.l.b16 %v1954
    %v1987 = vunpack.c.l.b16 %v1955
    %v1988 = vpack.c.b16 %v1973, %v1972
    %v1989 = vpack.c.b16 %v1975, %v1974
    %v1990 = vpack.c.b16 %v1977, %v1976
    %v1991 = vpack.c.b16 %v1979, %v1978
    %v1992 = vpack.c.b16 %v1981, %v1980
    %v1993 = vpack.c.b16 %v1983, %v1982
    %v1994 = vpack.c.b16 %v1985, %v1984
    %v1995 = vpack.c.b16 %v1987, %v1986
    %2004 = vmatprep.subr.bf16.mxu0 0
    %2005 = vmatpush1.bf16.msra.mxu0 %v1988
    %2006 = vmatprep.subr.bf16.mxu0 0
    %2007 = vmatpush1.bf16.msra.mxu0 %v1989
    %2008 = vmatprep.subr.bf16.mxu0 0
    %2009 = vmatpush1.bf16.msra.mxu0 %v1990
    %2010 = vmatprep.subr.bf16.mxu0 0
    %2011 = vmatpush1.bf16.msra.mxu0 %v1991
    %2012 = vmatprep.subr.bf16.mxu0 0
    %2013 = vmatpush1.bf16.msra.mxu0 %v1992
    %2014 = vmatprep.subr.bf16.mxu0 0
    %2015 = vmatpush1.bf16.msra.mxu0 %v1993
    %2016 = vmatprep.subr.bf16.mxu0 0
    %2017 = vmatpush1.bf16.msra.mxu0 %v1994
    %2018 = vmatprep.subr.bf16.mxu0 0
    %2019 = vmatpush1.bf16.msra.mxu0 %v1995
    %2020 = vmatprep.subr.bf16.mxu0 0
    %2021 = vmatpush1.bf16.msra.mxu0 0
    %2022 = vmatprep.subr.bf16.mxu0 0
    %2023 = vmatpush1.bf16.msra.mxu0 0
    %2024 = vmatprep.subr.bf16.mxu0 0
    %2025 = vmatpush1.bf16.msra.mxu0 0
    %2026 = vmatprep.subr.bf16.mxu0 0
    %2027 = vmatpush1.bf16.msra.mxu0 0
    %2028 = vmatprep.subr.bf16.mxu0 0
    %2029 = vmatpush1.bf16.msra.mxu0 0
    %2030 = vmatprep.subr.bf16.mxu0 0
    %2031 = vmatpush1.bf16.msra.mxu0 0
    %2032 = vmatprep.subr.bf16.mxu0 0
    %2033 = vmatpush1.bf16.msra.mxu0 0
    %2034 = vmatprep.subr.bf16.mxu0 0
    %2035 = vmatpush1.bf16.msra.mxu0 0
    %2036 = vmatprep.mubr.bf16.mxu0 0
    %2037 = vmatmul.mubr.bf16.gmra.mrb[0].mxu0 %v1939
    %v2038 = vpop.f32.mrb[0].mxu0
    %v2039 = vadd.f32 0.0, %v2038
    %v2040 = vpop.f32.mrb[0].mxu0
    %v2041 = vpop.f32.mrb[0].mxu0
    %v2042 = vpop.f32.mrb[0].mxu0
    %2043 = vdwg.mxu0
    %v2044 = vld [vmem:[%s8] sm:$0xf]
    %v2045 = vld [vmem:[%s8 + $0x4] sm:$0xf]
    %v2046 = vld [vmem:[%s8 + $0x8] sm:$0xf]
    %v2047 = vld [vmem:[%s8 + $0xc] sm:$0xf]
    %v2048 = vpack.c.bf16 %v2039, %v2039
    %v2049 = vld [vmem:[%s9] sm:$0xf]
    %v2050 = vld [vmem:[%s9 + $0x4] sm:$0xf]
    %v2051 = vld [vmem:[%s9 + $0x8] sm:$0xf]
    %v2052 = vld [vmem:[%s9 + $0xc] sm:$0xf]
    %v2057 = vunpack.c.l.b16 %v2049
    %v2058 = vunpack.c.l.b16 %v2050
    %v2059 = vunpack.c.l.b16 %v2051
    %v2060 = vunpack.c.l.b16 %v2052
    %v2061 = vpack.c.b16 %v2058, %v2057
    %v2062 = vpack.c.b16 %v2060, %v2059
    %v2066 = vsel %vm204, %v2048, 0
    %2068 = vmatprep.subr.bf16.mxu0 0
    %2069 = vmatpush1.bf16.msra.mxu0 %v2061
    %2070 = vmatprep.subr.bf16.mxu0 0
    %2071 = vmatpush1.bf16.msra.mxu0 %v2062
    %2072 = vmatprep.subr.bf16.mxu0 0
    %2073 = vmatpush1.bf16.msra.mxu0 0
    %2074 = vmatprep.subr.bf16.mxu0 0
    %2075 = vmatpush1.bf16.msra.mxu0 0
    %2076 = vmatprep.subr.bf16.mxu0 0
    %2077 = vmatpush1.bf16.msra.mxu0 0
    %2078 = vmatprep.subr.bf16.mxu0 0
    %2079 = vmatpush1.bf16.msra.mxu0 0
    %2080 = vmatprep.subr.bf16.mxu0 0
    %2081 = vmatpush1.bf16.msra.mxu0 0
    %2082 = vmatprep.subr.bf16.mxu0 0
    %2083 = vmatpush1.bf16.msra.mxu0 0
    %2084 = vmatprep.subr.bf16.mxu0 0
    %2085 = vmatpush1.bf16.msra.mxu0 0
    %2086 = vmatprep.subr.bf16.mxu0 0
    %2087 = vmatpush1.bf16.msra.mxu0 0
    %2088 = vmatprep.subr.bf16.mxu0 0
    %2089 = vmatpush1.bf16.msra.mxu0 0
    %2090 = vmatprep.subr.bf16.mxu0 0
    %2091 = vmatpush1.bf16.msra.mxu0 0
    %2092 = vmatprep.subr.bf16.mxu0 0
    %2093 = vmatpush1.bf16.msra.mxu0 0
    %2094 = vmatprep.subr.bf16.mxu0 0
    %2095 = vmatpush1.bf16.msra.mxu0 0
    %2096 = vmatprep.subr.bf16.mxu0 0
    %2097 = vmatpush1.bf16.msra.mxu0 0
    %2098 = vmatprep.subr.bf16.mxu0 0
    %2099 = vmatpush1.bf16.msra.mxu0 0
    %2100 = vmatprep.mubr.bf16.mxu0 0
    %2101 = vmatmul.mubr.bf16.gmra.mrb[0].mxu0 %v2066
    %v2102 = vpop.f32.mrb[0].mxu0
    %v2103 = vadd.f32 0.0, %v2102
    %v2104 = vpop.f32.mrb[0].mxu0
    %v2105 = vpop.f32.mrb[0].mxu0
    %v2106 = vpop.f32.mrb[0].mxu0
    %2107 = vdwg.mxu0
    %v2112 = vunpack.c.l.b16 %v2044
    %v2113 = vunpack.c.l.b16 %v2045
    %v2114 = vunpack.c.l.b16 %v2046
    %v2115 = vunpack.c.l.b16 %v2047
    %v2116 = vpack.c.b16 %v2113, %v2112
    %v2117 = vpack.c.b16 %v2115, %v2114
    %2120 = vmatprep.subr.bf16.mxu0 0
    %2121 = vmatpush1.bf16.msra.mxu0 %v2116
    %2122 = vmatprep.subr.bf16.mxu0 0
    %2123 = vmatpush1.bf16.msra.mxu0 %v2117
    %2124 = vmatprep.subr.bf16.mxu0 0
    %2125 = vmatpush1.bf16.msra.mxu0 0
    %2126 = vmatprep.subr.bf16.mxu0 0
    %2127 = vmatpush1.bf16.msra.mxu0 0
    %2128 = vmatprep.subr.bf16.mxu0 0
    %2129 = vmatpush1.bf16.msra.mxu0 0
    %2130 = vmatprep.subr.bf16.mxu0 0
    %2131 = vmatpush1.bf16.msra.mxu0 0
    %2132 = vmatprep.subr.bf16.mxu0 0
    %2133 = vmatpush1.bf16.msra.mxu0 0
    %2134 = vmatprep.subr.bf16.mxu0 0
    %2135 = vmatpush1.bf16.msra.mxu0 0
    %2136 = vmatprep.subr.bf16.mxu0 0
    %2137 = vmatpush1.bf16.msra.mxu0 0
    %2138 = vmatprep.subr.bf16.mxu0 0
    %2139 = vmatpush1.bf16.msra.mxu0 0
    %2140 = vmatprep.subr.bf16.mxu0 0
    %2141 = vmatpush1.bf16.msra.mxu0 0
    %2142 = vmatprep.subr.bf16.mxu0 0
    %2143 = vmatpush1.bf16.msra.mxu0 0
    %2144 = vmatprep.subr.bf16.mxu0 0
    %2145 = vmatpush1.bf16.msra.mxu0 0
    %2146 = vmatprep.subr.bf16.mxu0 0
    %2147 = vmatpush1.bf16.msra.mxu0 0
    %2148 = vmatprep.subr.bf16.mxu0 0
    %2149 = vmatpush1.bf16.msra.mxu0 0
    %2150 = vmatprep.subr.bf16.mxu0 0
    %2151 = vmatpush1.bf16.msra.mxu0 0
    %2152 = vmatprep.mubr.bf16.mxu0 0
    %2153 = vmatmul.mubr.bf16.gmra.mrb[0].mxu0 %v1878
    %v2154 = vpop.f32.mrb[0].mxu0
    %v2155 = vadd.f32 %v2103, %v2154
    %v2156 = vpop.f32.mrb[0].mxu0
    %v2157 = vpop.f32.mrb[0].mxu0
    %v2158 = vpop.f32.mrb[0].mxu0
    %2159 = vdwg.mxu0
    %v2160 = vld [vmem:[%s10] sm:$0x1]
    %v2162 = vlaneseq
    %v2163 = vshrl.u32 %v2162, 7
    %v2164 = vsub.s32 0, %v2163
    %v2165 = vrot.slane %v2160, %v2164
    %v2167 = vadd.f32 %v2155, %v2165
    %v2168 = vtanh.pop %v2167
    %v2169 = vpack.c.bf16 %v2168, %v2168
    %v2170 = vld [vmem:[%s11] sm:$0xf]
    %v2171 = vld [vmem:[%s11 + $0x4] sm:$0xf]
    %v2172 = vld [vmem:[%s11 + $0x8] sm:$0xf]
    %v2173 = vld [vmem:[%s11 + $0xc] sm:$0xf]
    %v2174 = vld [vmem:[%s12] sm:$0x1]
    %v2176 = vlaneseq
    %v2177 = vshrl.u32 %v2176, 7
    %v2178 = vsub.s32 0, %v2177
    %v2179 = vrot.slane %v2174, %v2178
    %v2185 = vunpack.c.l.b16 %v2170
    %v2186 = vunpack.c.l.b16 %v2171
    %v2187 = vunpack.c.l.b16 %v2172
    %v2188 = vunpack.c.l.b16 %v2173
    %v2189 = vpack.c.b16 %v2186, %v2185
    %v2190 = vpack.c.b16 %v2188, %v2187
    %v2194 = vsel %vm204, %v2169, 0
    %2196 = vmatprep.subr.bf16.mxu0 0
    %2197 = vmatpush1.bf16.msra.mxu0 %v2189
    %2198 = vmatprep.subr.bf16.mxu0 0
    %2199 = vmatpush1.bf16.msra.mxu0 %v2190
    %2200 = vmatprep.subr.bf16.mxu0 0
    %2201 = vmatpush1.bf16.msra.mxu0 0
    %2202 = vmatprep.subr.bf16.mxu0 0
    %2203 = vmatpush1.bf16.msra.mxu0 0
    %2204 = vmatprep.subr.bf16.mxu0 0
    %2205 = vmatpush1.bf16.msra.mxu0 0
    %2206 = vmatprep.subr.bf16.mxu0 0
    %2207 = vmatpush1.bf16.msra.mxu0 0
    %2208 = vmatprep.subr.bf16.mxu0 0
    %2209 = vmatpush1.bf16.msra.mxu0 0
    %2210 = vmatprep.subr.bf16.mxu0 0
    %2211 = vmatpush1.bf16.msra.mxu0 0
    %2212 = vmatprep.subr.bf16.mxu0 0
    %2213 = vmatpush1.bf16.msra.mxu0 0
    %2214 = vmatprep.subr.bf16.mxu0 0
    %2215 = vmatpush1.bf16.msra.mxu0 0
    %2216 = vmatprep.subr.bf16.mxu0 0
    %2217 = vmatpush1.bf16.msra.mxu0 0
    %2218 = vmatprep.subr.bf16.mxu0 0
    %2219 = vmatpush1.bf16.msra.mxu0 0
    %2220 = vmatprep.subr.bf16.mxu0 0
    %2221 = vmatpush1.bf16.msra.mxu0 0
    %2222 = vmatprep.subr.bf16.mxu0 0
    %2223 = vmatpush1.bf16.msra.mxu0 0
    %2224 = vmatprep.subr.bf16.mxu0 0
    %2225 = vmatpush1.bf16.msra.mxu0 0
    %2226 = vmatprep.subr.bf16.mxu0 0
    %2227 = vmatpush1.bf16.msra.mxu0 0
    %2228 = vmatprep.mubr.bf16.mxu0 0
    %2229 = vmatmul.mubr.bf16.gmra.mrb[0].mxu0 %v2194
    %v2230 = vpop.f32.mrb[0].mxu0
    %v2231 = vadd.f32 %v2179, %v2230
    %v2232 = vpop.f32.mrb[0].mxu0
    %v2233 = vpop.f32.mrb[0].mxu0
    %v2234 = vpop.f32.mrb[0].mxu0
    %2235 = vdwg.mxu0
    %v2236 = vld [vmem:[%s13] sm:$0xf]
    %v2237 = vld [vmem:[%s13 + $0x4] sm:$0xf]
    %v2238 = vld [vmem:[%s13 + $0x8] sm:$0xf]
    %v2239 = vld [vmem:[%s13 + $0xc] sm:$0xf]
    %v2240 = vld [vmem:[%s14] sm:$0x1]
    %v2242 = vlaneseq
    %v2243 = vshrl.u32 %v2242, 7
    %v2244 = vsub.s32 0, %v2243
    %v2245 = vrot.slane %v2240, %v2244
    %v2251 = vunpack.c.l.b16 %v2236
    %v2252 = vunpack.c.l.b16 %v2237
    %v2253 = vunpack.c.l.b16 %v2238
    %v2254 = vunpack.c.l.b16 %v2239
    %v2255 = vpack.c.b16 %v2252, %v2251
    %v2256 = vpack.c.b16 %v2254, %v2253
    %2259 = vmatprep.subr.bf16.mxu0 0
    %2260 = vmatpush1.bf16.msra.mxu0 %v2255
    %2261 = vmatprep.subr.bf16.mxu0 0
    %2262 = vmatpush1.bf16.msra.mxu0 %v2256
    %2263 = vmatprep.subr.bf16.mxu0 0
    %2264 = vmatpush1.bf16.msra.mxu0 0
    %2265 = vmatprep.subr.bf16.mxu0 0
    %2266 = vmatpush1.bf16.msra.mxu0 0
    %2267 = vmatprep.subr.bf16.mxu0 0
    %2268 = vmatpush1.bf16.msra.mxu0 0
    %2269 = vmatprep.subr.bf16.mxu0 0
    %2270 = vmatpush1.bf16.msra.mxu0 0
    %2271 = vmatprep.subr.bf16.mxu0 0
    %2272 = vmatpush1.bf16.msra.mxu0 0
    %2273 = vmatprep.subr.bf16.mxu0 0
    %2274 = vmatpush1.bf16.msra.mxu0 0
    %2275 = vmatprep.subr.bf16.mxu0 0
    %2276 = vmatpush1.bf16.msra.mxu0 0
    %2277 = vmatprep.subr.bf16.mxu0 0
    %2278 = vmatpush1.bf16.msra.mxu0 0
    %2279 = vmatprep.subr.bf16.mxu0 0
    %2280 = vmatpush1.bf16.msra.mxu0 0
    %2281 = vmatprep.subr.bf16.mxu0 0
    %2282 = vmatpush1.bf16.msra.mxu0 0
    %2283 = vmatprep.subr.bf16.mxu0 0
    %2284 = vmatpush1.bf16.msra.mxu0 0
    %2285 = vmatprep.subr.bf16.mxu0 0
    %2286 = vmatpush1.bf16.msra.mxu0 0
    %2287 = vmatprep.subr.bf16.mxu0 0
    %2288 = vmatpush1.bf16.msra.mxu0 0
    %2289 = vmatprep.subr.bf16.mxu0 0
    %2290 = vmatpush1.bf16.msra.mxu0 0
    %2291 = vmatprep.mubr.bf16.mxu0 0
    %2292 = vmatmul.mubr.bf16.gmra.mrb[0].mxu0 %v1823
    %v2293 = vpop.f32.mrb[0].mxu0
    %v2294 = vadd.f32 %v2245, %v2293
    %v2295 = vpop.f32.mrb[0].mxu0
    %v2296 = vpop.f32.mrb[0].mxu0
    %v2297 = vpop.f32.mrb[0].mxu0
    %2298 = vdwg.mxu0
    %v2299 = vadd.f32 %v2231, %v2294
    %v2300 = vxor.u32 %v2299, 2147483648
    %v2301 = vmul.f32 %v2300, 1.442695
    %v2302 = vpow.pop %v2301
    %v2303 = vadd.f32 %v2302, 1.0
    %v2304 = vrcp.pop %v2303
    %v2305 = vmul.f32 1.0, %v2304
    %2307 = vrot.lane.b32.xlu0 %v2294, 64
    %v2308 = vpop.permute.xlu0 %2307
    %v2310 = vmul.f32 %v2305, %v2308
    %2312 = vrot.lane.b32.xlu0 %v2310, 64
    %v2313 = vpop.permute.xlu0 %2312
    %v2315 = vadd.f32 %v2231, %v2313
    %v2316 = vtanh.pop %v2315
    %v2317 = vsub.f32 1.0, %v2305
    %2319 = vrot.lane.b32.xlu0 %v2316, 96
    %v2320 = vpop.permute.xlu0 %2319
    %v2322 = vmul.f32 %v2317, %v2320
    %v2323 = vmul.f32 %v2305, %v1786
    %v2324 = vadd.f32 %v2322, %v2323
    %s2325 = scalar_lea.vmem [#allocation8], 6
    %2326 = vst [vmem:[%s2325] sm:$0x3] %v1938
    %2328 = vrot.lane.b32.xlu0 %v2324, 96
    %v2329 = vpop.permute.xlu0 %2328
    %s2331 = scalar_lea.vmem [#allocation3], 6
    %2332 = vst.msk [vmem:[%s2331] sm:$0x3] %vm175, %v2329
    %2333 = vst.msk [vmem:[#allocation6] sm:$0x3] %vm175, %v2329
    %v2334 = vld [vmem:[#allocation3] sm:$0x3]
    %v2335 = vld [vmem:[#allocation3 + $0x2] sm:$0x3]
    %v2336 = vld [vmem:[#allocation3 + $0x4] sm:$0x3]
    %v2337 = vld [vmem:[#allocation3 + $0x6] sm:$0x3]
    %v2342 = vcombine.low %v2334, %v2335
    %v2343 = vcombine.low %v2336, %v2337
    %v2345 = vunpack.c.l.s4 1983009808
    %v2346 = vunpack.c.0.s8 %v2345
    %v2347 = vlaneseq
    %v2348 = vshrl.u32 %v2347, 7
    %v2349 = vsub.s32 %v2346, %v2348
    %v2350 = vrot.slane %v2342, %v2349
    %v2352 = vunpack.c.l.s4 1983009808
    %v2353 = vunpack.c.0.s8 %v2352
    %v2354 = vlaneseq
    %v2355 = vshrl.u32 %v2354, 7
    %v2356 = vsub.s32 %v2353, %v2355
    %v2357 = vrot.slane %v2343, %v2356
    %v2358 = vcombine.low %v2350, %v2357
    %v2360 = vpack.c.bf16 %v2358, %v2358
    %v2361 = vld [vmem:[%s15] sm:$0xf]
    %v2362 = vld [vmem:[%s15 + $0x4] sm:$0xf]
    %v2363 = vld [vmem:[%s15 + $0x8] sm:$0xf]
    %v2364 = vld [vmem:[%s15 + $0xc] sm:$0xf]
    %v2365 = vld [vmem:[%s16] sm:$0x1]
    %v2367 = vlaneseq
    %v2368 = vshrl.u32 %v2367, 7
    %v2369 = vsub.s32 0, %v2368
    %v2370 = vrot.slane %v2365, %v2369
    %v2376 = vunpack.c.l.b16 %v2361
    %v2377 = vunpack.c.l.b16 %v2362
    %v2378 = vunpack.c.l.b16 %v2363
    %v2379 = vunpack.c.l.b16 %v2364
    %v2380 = vpack.c.b16 %v2377, %v2376
    %v2381 = vpack.c.b16 %v2379, %v2378
    %v2385 = vsel %vm204, %v2360, 0
    %2387 = vmatprep.subr.bf16.mxu0 0
    %2388 = vmatpush1.bf16.msra.mxu0 %v2380
    %2389 = vmatprep.subr.bf16.mxu0 0
    %2390 = vmatpush1.bf16.msra.mxu0 %v2381
    %2391 = vmatprep.subr.bf16.mxu0 0
    %2392 = vmatpush1.bf16.msra.mxu0 0
    %2393 = vmatprep.subr.bf16.mxu0 0
    %2394 = vmatpush1.bf16.msra.mxu0 0
    %2395 = vmatprep.subr.bf16.mxu0 0
    %2396 = vmatpush1.bf16.msra.mxu0 0
    %2397 = vmatprep.subr.bf16.mxu0 0
    %2398 = vmatpush1.bf16.msra.mxu0 0
    %2399 = vmatprep.subr.bf16.mxu0 0
    %2400 = vmatpush1.bf16.msra.mxu0 0
    %2401 = vmatprep.subr.bf16.mxu0 0
    %2402 = vmatpush1.bf16.msra.mxu0 0
    %2403 = vmatprep.subr.bf16.mxu0 0
    %2404 = vmatpush1.bf16.msra.mxu0 0
    %2405 = vmatprep.subr.bf16.mxu0 0
    %2406 = vmatpush1.bf16.msra.mxu0 0
    %2407 = vmatprep.subr.bf16.mxu0 0
    %2408 = vmatpush1.bf16.msra.mxu0 0
    %2409 = vmatprep.subr.bf16.mxu0 0
    %2410 = vmatpush1.bf16.msra.mxu0 0
    %2411 = vmatprep.subr.bf16.mxu0 0
    %2412 = vmatpush1.bf16.msra.mxu0 0
    %2413 = vmatprep.subr.bf16.mxu0 0
    %2414 = vmatpush1.bf16.msra.mxu0 0
    %2415 = vmatprep.subr.bf16.mxu0 0
    %2416 = vmatpush1.bf16.msra.mxu0 0
    %2417 = vmatprep.subr.bf16.mxu0 0
    %2418 = vmatpush1.bf16.msra.mxu0 0
    %2419 = vmatprep.mubr.bf16.mxu0 0
    %2420 = vmatmul.mubr.bf16.gmra.mrb[0].mxu0 %v2385
    %v2421 = vpop.f32.mrb[0].mxu0
    %v2422 = vadd.f32 %v2370, %v2421
    %v2423 = vpop.f32.mrb[0].mxu0
    %v2424 = vpop.f32.mrb[0].mxu0
    %v2425 = vpop.f32.mrb[0].mxu0
    %2426 = vdwg.mxu0
    %v2427 = vtanh.pop %v2422
    %v2429 = vcombine.high %v2427, %v2427
    %v2431 = vunpack.c.l.s4 1983009808
    %v2432 = vunpack.c.0.s8 %v2431
    %v2433 = vlaneseq
    %v2434 = vshrl.u32 %v2433, 7
    %v2435 = vsub.s32 %v2432, %v2434
    %v2436 = vrot.slane %v2427, %v2435
    %v2438 = vunpack.c.l.s4 1983009808
    %v2439 = vunpack.c.0.s8 %v2438
    %v2440 = vlaneseq
    %v2441 = vshrl.u32 %v2440, 7
    %v2442 = vsub.s32 %v2439, %v2441
    %v2443 = vrot.slane %v2429, %v2442
    %v2444 = vcombine.high %v2436, %v2436
    %v2445 = vcombine.high %v2443, %v2443
    %vm2450 = vcmask 123904
    %2451 = vst.msk [vmem:[#allocation4] sm:$0x3] %vm2450, %v2436
    %2452 = vst.msk [vmem:[#allocation4 + $0x2] sm:$0x3] %vm2450, %v2444
    %2453 = vst.msk [vmem:[#allocation4 + $0x4] sm:$0x3] %vm2450, %v2443
    %2454 = vst.msk [vmem:[#allocation4 + $0x6] sm:$0x3] %vm2450, %v2445
    // Predicated region
    $region70: #{decoder_rnn_att_decode.1} parent=1 // pred_check
      _
    $region71: #{decoder_rnn_att_decode.1} parent=1 // pred_check_branch
      %2456 = sbr.rel (0) target = $region73
    $region72: #{decoder_rnn_att_decode.1} parent=1 // pred_region
      %s2458 = ssub.s32 128, 128
      %2459 = vsyncadd [#allocation5], %s2458
      %s2460 = sshll.u32 [#allocation4], 4
      %s2461 = int_to_ptr.vmem [resolvable:$true] %s2460
      %2466 = dma.vmem_to_hbm [thread:$0]  %s2461, 128, %s17, [#allocation5], 32, 32, 2
    $region73: #{decoder_rnn_att_decode.1} parent=1 // pred_fallthru
      _
    // Predicated region
    $region74: #{decoder_rnn_att_decode.1} parent=1 // pred_check
      _
    $region75: #{decoder_rnn_att_decode.1} parent=1 // pred_check_branch
      %2468 = sbr.rel (0) target = $region77
    $region76: #{decoder_rnn_att_decode.1} parent=1 // pred_region
      %s2470 = ssub.s32 32, 32
      %2471 = vsyncadd [#allocation7], %s2470
      %s2473 = sshll.u32 [#allocation6], 4
      %s2474 = int_to_ptr.vmem [resolvable:$true] %s2473
      %2476 = dma.vmem_to_hbm [thread:$0]  %s2474, 32, %s18, [#allocation7]
    $region77: #{decoder_rnn_att_decode.1} parent=1 // pred_fallthru
      _
    // Predicated region
    $region78: #{decoder_rnn_att_decode.1} parent=1 // pred_check
      _
    $region79: #{decoder_rnn_att_decode.1} parent=1 // pred_check_branch
      %2478 = sbr.rel (0) target = $region81
    $region80: #{decoder_rnn_att_decode.1} parent=1 // pred_region
      %s2480 = ssub.s32 128, 128
      %2481 = vsyncadd [#allocation7], %s2480
      %s2482 = sshll.u32 [#allocation8], 4
      %s2483 = int_to_ptr.vmem [resolvable:$true] %s2482
      %2488 = dma.vmem_to_hbm [thread:$0]  %s2483, 128, %s19, [#allocation7], 32, 32, 2
    $region81: #{decoder_rnn_att_decode.1} parent=1 // pred_fallthru
      _
    // Predicated region
    $region82: #{decoder_rnn_att_decode.1} parent=1 // pred_check
      _
    $region83: #{decoder_rnn_att_decode.1} parent=1 // pred_check_branch
      %2490 = sbr.rel (0) target = $region85
    $region84: #{decoder_rnn_att_decode.1} parent=1 // pred_region
      %2491 = dma.done [#allocation5], 128
    $region85: #{decoder_rnn_att_decode.1} parent=1 // pred_fallthru
      _
    // Predicated region
    $region86: #{decoder_rnn_att_decode.1} parent=1 // pred_check
      _
    $region87: #{decoder_rnn_att_decode.1} parent=1 // pred_check_branch
      %2493 = sbr.rel (0) target = $region89
    $region88: #{decoder_rnn_att_decode.1} parent=1 // pred_region
      %2494 = dma.done [#allocation7], 32
    $region89: #{decoder_rnn_att_decode.1} parent=1 // pred_fallthru
      _
    // Predicated region
    $region90: #{decoder_rnn_att_decode.1} parent=1 // pred_check
      _
    $region91: #{decoder_rnn_att_decode.1} parent=1 // pred_check_branch
      %2496 = sbr.rel (0) target = $region93
    $region92: #{decoder_rnn_att_decode.1} parent=1 // pred_region
      %2497 = dma.done [#allocation7], 128
    $region93: #{decoder_rnn_att_decode.1} parent=1 // pred_fallthru
      _
    %2498 = vsyncpa [#allocation5], 1
    %2499 = vsyncpa [#allocation7], 1

</llo_original>
